<compile_context>
chip_gen: v7x
topology: tpu7x:2x2x1
jax: 0.10.0
libtpu: 0.0.40
codegen_flags: <defaults>
</compile_context>

<pallas_src>
import functools

import numpy as np
import jax
import jax.numpy as jnp
from jax.experimental import pallas as pl
from jax.experimental.pallas import tpu as pltpu

BN_EPS = 1e-5
LRELU_SLOPE = 0.01   # PyTorch nn.LeakyReLU default
LANE = 128           # lane-dense padding for latent / output dims


# ---------------------------------------------------------------------------
# Static layer description & packed-slab layout
# ---------------------------------------------------------------------------
def _layer_defs(data_dim, latent_dim, hidden_dims):
    """Every matmul in forward order: (name, in_features, out_features)."""
    defs = []
    in_f = data_dim
    for i, h in enumerate(hidden_dims):
        defs.append((f"enc{i}", in_f, h))
        in_f = h
    H = hidden_dims[-1]
    defs.append(("mv", H, 2 * LANE))     # fc_mu | fc_var merged, lane-padded
    defs.append(("di", LANE, H))         # decoder_input, latent rows padded to 128
    rev = list(reversed(hidden_dims))
    for i in range(len(rev) - 1):
        defs.append((f"dec{i}", rev[i], rev[i + 1]))
    defs.append(("fbn", rev[-1], rev[-1]))
    defs.append(("fo", rev[-1], LANE))   # final Linear(., data_dim) padded to 128
    return defs


def _bn_names(n_enc, n_dec):
    return ([f"enc{i}" for i in range(n_enc)]
            + [f"dec{i}" for i in range(n_dec)] + ["fbn"])


def _build_layout(defs):
    """Assign each weight a (slab_width, row_offset, in_f, out_f) window.

    Weights are grouped by output width rounded up to {128, 256, 512} lanes so the
    slabs are nearly dense; row offsets are 16-aligned (bf16 sublane tile)."""
    slab_rows = {128: 0, 256: 0, 512: 0}
    layout = {}
    for name, in_f, out_f in defs:
        sw = 128 if out_f <= 128 else out_f
        r0 = slab_rows[sw]
        layout[name] = (sw, r0, in_f, out_f)
        slab_rows[sw] = r0 + ((in_f + 15) // 16) * 16
    for sw in slab_rows:
        slab_rows[sw] = max(16, ((slab_rows[sw] + 15) // 16) * 16)
    return layout, slab_rows


# ---------------------------------------------------------------------------
# Fused kernel (entire forward pass, no grid — everything VMEM resident)
# ---------------------------------------------------------------------------
def _make_fused_kernel(defs, layout, data_dim, n_enc, n_dec):
    n_bn = n_enc + n_dec + 1
    H = layout["di"][3]          # hidden_dims[-1]
    del defs  # layout carries everything we need

    def kernel(xe_ref, w128_ref, w256_ref, w512_ref, p_ref, out_ref):
        wrefs = {128: w128_ref, 256: w256_ref, 512: w512_ref}

        def mm(a, name):
            # bf16 x bf16 matmul on the MXU, f32 accumulation; weight is a static
            # window of its packed slab (zero-cost ref slice).
            sw, r0, in_f, out_f = layout[name]
            w = wrefs[sw][r0:r0 + in_f, :out_f]
            return jnp.dot(a.astype(jnp.bfloat16), w,
                           preferred_element_type=jnp.float32)

        def bn_lrelu(y, bn_idx, width):
            # Training-mode BatchNorm1d (biased batch variance) + LeakyReLU(0.01).
            # Variance via E[y^2] - mean^2: two independent sublane reductions.
            g = p_ref[bn_idx:bn_idx + 1, :width]
            be = p_ref[n_bn + bn_idx:n_bn + bn_idx + 1, :width]
            mean = jnp.mean(y, axis=0, keepdims=True)
            msq = jnp.mean(y * y, axis=0, keepdims=True)
            var = jnp.maximum(msq - mean * mean, 0.0)
            yhat = (y - mean) * (g * jax.lax.rsqrt(var + BN_EPS)) + be
            return jnp.maximum(yhat, LRELU_SLOPE * yhat)

        # ---------------- encoder ----------------
        h = xe_ref[:, :data_dim]
        bn_idx = 0
        for i in range(n_enc):
            name = f"enc{i}"
            h = bn_lrelu(mm(h, name), bn_idx, layout[name][3])
            bn_idx += 1

        # -------- merged mu / log_var head --------
        mv = mm(h, "mv") + p_ref[2 * n_bn:2 * n_bn + 1, :2 * LANE]
        out_ref[:, LANE:3 * LANE] = mv      # mu | log_var, one lane-dense store

        # -------- reparameterize (fused) ----------
        # Padded lanes are inert: log_var pad = 0 -> exp = 1, eps pad = 0,
        # mu pad = 0, and the w_di rows >= latent_dim are zero.
        z = xe_ref[:, LANE:2 * LANE] * jnp.exp(0.5 * mv[:, LANE:]) + mv[:, :LANE]

        # ---------------- decoder ----------------
        d = mm(z, "di") + p_ref[2 * n_bn + 1:2 * n_bn + 2, :H]
        for i in range(n_dec):
            name = f"dec{i}"
            d = bn_lrelu(mm(d, name), bn_idx, layout[name][3])
            bn_idx += 1
        d = bn_lrelu(mm(d, "fbn"), bn_idx, layout["fbn"][3])
        out_ref[:, :LANE] = jnp.tanh(
            mm(d, "fo") + p_ref[2 * n_bn + 2:2 * n_bn + 3, :LANE])

    return kernel


# ---------------------------------------------------------------------------
# Parameter construction (deterministic, PyTorch-like uniform init by shape)
# Logical weights stored transposed: (in_features, out_features), f32.
# ---------------------------------------------------------------------------
def init_linear(key, in_dim, out_dim, *, bias=True):
    k1, k2 = jax.random.split(key)
    bound = 1.0 / float(np.sqrt(in_dim))
    w = jax.random.uniform(k1, (in_dim, out_dim), jnp.float32, -bound, bound)
    if not bias:
        return w
    b = jax.random.uniform(k2, (1, out_dim), jnp.float32, -bound, bound)
    return w, b


def build_params(key, data_dim, latent_dim, hidden_dims):
    keys = iter(jax.random.split(key, 64))
    P = {}

    # encoder: Linear (bias dropped: cancelled by BN mean) -> BN -> LeakyReLU
    in_f = data_dim
    for i, h in enumerate(hidden_dims):
        P[f"w_enc{i}"] = init_linear(next(keys), in_f, h, bias=False)
        P[f"g_enc{i}"] = jnp.ones((1, h), jnp.float32)
        P[f"be_enc{i}"] = jnp.zeros((1, h), jnp.float32)
        in_f = h

    # fc_mu + fc_var merged, lane-padded: cols [0:latent)=mu, [128:128+latent)=var
    H = hidden_dims[-1]
    w_mu, b_mu = init_linear(next(keys), H, latent_dim)
    w_var, b_var = init_linear(next(keys), H, latent_dim)
    w_mv = jnp.zeros((H, 2 * LANE), jnp.float32).at[:, :latent_dim].set(w_mu)
    w_mv = w_mv.at[:, LANE:LANE + latent_dim].set(w_var)
    b_mv = jnp.zeros((1, 2 * LANE), jnp.float32).at[:, :latent_dim].set(b_mu)
    b_mv = b_mv.at[:, LANE:LANE + latent_dim].set(b_var)
    P["w_mv"], P["b_mv"] = w_mv, b_mv

    # decoder_input: Linear(latent -> H), rows padded to 128
    w_di, b_di = init_linear(next(keys), latent_dim, H)
    P["w_di"] = jnp.zeros((LANE, H), jnp.float32).at[:latent_dim, :].set(w_di)
    P["b_di"] = b_di

    # decoder: reversed hidden dims, Linear (no bias) -> BN -> LeakyReLU
    rev = list(reversed(hidden_dims))
    for i in range(len(rev) - 1):
        P[f"w_dec{i}"] = init_linear(next(keys), rev[i], rev[i + 1], bias=False)
        P[f"g_dec{i}"] = jnp.ones((1, rev[i + 1]), jnp.float32)
        P[f"be_dec{i}"] = jnp.zeros((1, rev[i + 1]), jnp.float32)

    # final layer: Linear(32,32)+BN+LeakyReLU, then Linear(32, data_dim)+Tanh
    P["w_fbn"] = init_linear(next(keys), rev[-1], rev[-1], bias=False)
    P["g_fbn"] = jnp.ones((1, rev[-1]), jnp.float32)
    P["be_fbn"] = jnp.zeros((1, rev[-1]), jnp.float32)

    w_fo, b_fo = init_linear(next(keys), rev[-1], data_dim)
    P["w_fo"] = jnp.zeros((rev[-1], LANE), jnp.float32).at[:, :data_dim].set(w_fo)
    P["b_fo"] = jnp.zeros((1, LANE), jnp.float32).at[:, :data_dim].set(b_fo)
    return P


def pack_params(P, data_dim, latent_dim, hidden_dims):
    """Pack all weights into 3 bf16 slabs and all gammas/betas/biases into one f32
    slab. Done once, outside the forward."""
    defs = _layer_defs(data_dim, latent_dim, hidden_dims)
    layout, slab_rows = _build_layout(defs)
    n_enc = len(hidden_dims)
    n_dec = len(hidden_dims) - 1
    n_bn = n_enc + n_dec + 1

    slabs = {sw: np.zeros((slab_rows[sw], sw), np.float32) for sw in (128, 256, 512)}
    for name, in_f, out_f in defs:
        sw, r0, _, _ = layout[name]
        slabs[sw][r0:r0 + in_f, :out_f] = np.asarray(P["w_" + name], np.float32)

    pv_cols = ((max(o for _, _, o in defs) + 127) // 128) * 128
    pv_rows = ((2 * n_bn + 3 + 7) // 8) * 8
    pvec = np.zeros((pv_rows, pv_cols), np.float32)
    for i, nm in enumerate(_bn_names(n_enc, n_dec)):
        g = np.asarray(P["g_" + nm], np.float32)
        b = np.asarray(P["be_" + nm], np.float32)
        pvec[i, :g.shape[1]] = g[0]
        pvec[n_bn + i, :b.shape[1]] = b[0]
    b_mv = np.asarray(P["b_mv"], np.float32)
    b_di = np.asarray(P["b_di"], np.float32)
    b_fo = np.asarray(P["b_fo"], np.float32)
    pvec[2 * n_bn, :b_mv.shape[1]] = b_mv[0]
    pvec[2 * n_bn + 1, :b_di.shape[1]] = b_di[0]
    pvec[2 * n_bn + 2, :b_fo.shape[1]] = b_fo[0]

    return (jnp.asarray(slabs[128], jnp.bfloat16),
            jnp.asarray(slabs[256], jnp.bfloat16),
            jnp.asarray(slabs[512], jnp.bfloat16),
            jnp.asarray(pvec))


# ---------------------------------------------------------------------------
# Fused forward: one pallas_call, five packed inputs, one packed output.
# Returns [recon, input, mu, log_var] like the PyTorch module.
# ---------------------------------------------------------------------------
def betavae_forward(packed, x, eps, *, data_dim, latent_dim, hidden_dims):
    w128, w256, w512, pvec = packed
    B = x.shape[0]
    defs = _layer_defs(data_dim, latent_dim, hidden_dims)
    layout, _ = _build_layout(defs)
    n_enc = len(hidden_dims)
    n_dec = len(hidden_dims) - 1

    # Fused input slab: cols [0:data_dim)=x, [128:128+latent)=eps (rest zero).
    xe = jnp.zeros((B, 2 * LANE), jnp.float32)
    xe = xe.at[:, :data_dim].set(x).at[:, LANE:LANE + latent_dim].set(eps)

    kernel = _make_fused_kernel(defs, layout, data_dim, n_enc, n_dec)

    flops = 2 * B * sum(i * o for _, i, o in defs)
    io_bytes = sum(int(np.prod(a.shape)) * a.dtype.itemsize
                   for a in (w128, w256, w512, pvec))
    io_bytes += B * (2 * LANE + 3 * LANE) * 4
    cost = pl.CostEstimate(flops=flops, transcendentals=2 * B * LANE,
                           bytes_accessed=io_bytes)

    vmem = pl.BlockSpec(memory_space=pltpu.MemorySpace.VMEM)
    out = pl.pallas_call(
        kernel,
        out_shape=jax.ShapeDtypeStruct((B, 3 * LANE), jnp.float32),
        in_specs=[vmem] * 5,
        out_specs=vmem,
        cost_estimate=cost,
    )(xe, w128, w256, w512, pvec)

    recon = out[:, :data_dim]
    mu = out[:, LANE:LANE + latent_dim]
    log_var = out[:, 2 * LANE:2 * LANE + latent_dim]
    return [recon, x, mu, log_var]


# ---------------------------------------------------------------------------
# Pure-JAX reference (canonical BN/LeakyReLU formulation, same bf16 weights)
# ---------------------------------------------------------------------------
def betavae_reference(P, x, eps, *, data_dim, latent_dim, hidden_dims):
    def mm(a, w):
        return jnp.dot(a.astype(jnp.bfloat16), w.astype(jnp.bfloat16),
                       preferred_element_type=jnp.float32)

    def bn_lrelu(y, g, be):
        mean = jnp.mean(y, axis=0, keepdims=True)
        var = jnp.mean((y - mean) ** 2, axis=0, keepdims=True)
        yhat = (y - mean) * (g * jax.lax.rsqrt(var + BN_EPS)) + be
        return jnp.where(yhat >= 0, yhat, LRELU_SLOPE * yhat)

    h = x
    for i in range(len(hidden_dims)):
        h = bn_lrelu(mm(h, P[f"w_enc{i}"]), P[f"g_enc{i}"], P[f"be_enc{i}"])
    mv = mm(h, P["w_mv"]) + P["b_mv"]
    mu = mv[:, :latent_dim]
    lv = mv[:, LANE:LANE + latent_dim]
    eps_pad = jnp.zeros((x.shape[0], LANE), jnp.float32).at[:, :latent_dim].set(eps)
    z = eps_pad * jnp.exp(0.5 * mv[:, LANE:]) + mv[:, :LANE]
    d = mm(z, P["w_di"]) + P["b_di"]
    for i in range(len(hidden_dims) - 1):
        d = bn_lrelu(mm(d, P[f"w_dec{i}"]), P[f"g_dec{i}"], P[f"be_dec{i}"])
    d = bn_lrelu(mm(d, P["w_fbn"]), P["g_fbn"], P["be_fbn"])
    recon = jnp.tanh(mm(d, P["w_fo"]) + P["b_fo"])[:, :data_dim]
    return recon, mu, lv


# ---------------------------------------------------------------------------
if __name__ == "__main__":
    key = jax.random.PRNGKey(0)
    k_param, k_x, k_eps = jax.random.split(key, 3)

    B = 8
    data_dim = 16
    latent_dim = 10
    hidden_dims = [32, 64, 128, 256, 512]

    P = build_params(k_param, data_dim, latent_dim, hidden_dims)
    packed = pack_params(P, data_dim, latent_dim, hidden_dims)

    x = jax.random.normal(k_x, (B, data_dim), jnp.float32)
    # eps drawn host-side (equivalent of torch.randn_like in reparameterize)
    eps = jax.random.normal(k_eps, (B, latent_dim), jnp.float32)

    fwd = jax.jit(functools.partial(betavae_forward, data_dim=data_dim,
                                    latent_dim=latent_dim,
                                    hidden_dims=hidden_dims))
    recon, inp, mu, log_var = fwd(packed, x, eps)
    jax.block_until_ready((recon, inp, mu, log_var))

    assert recon.shape == (B, data_dim)
    assert mu.shape == (B, latent_dim)
    assert log_var.shape == (B, latent_dim)
    assert bool(jnp.all(jnp.isfinite(recon)))

    # Correctness against the pure-JAX reference (same bf16 weight recipe,
    # canonical BN formulation).
    r_ref, mu_ref, lv_ref = betavae_reference(P, x, eps, data_dim=data_dim,
                                              latent_dim=latent_dim,
                                              hidden_dims=hidden_dims)
    np.testing.assert_allclose(np.asarray(recon), np.asarray(r_ref),
                               rtol=2e-2, atol=2e-2)
    np.testing.assert_allclose(np.asarray(mu), np.asarray(mu_ref),
                               rtol=2e-2, atol=2e-2)
    np.testing.assert_allclose(np.asarray(log_var), np.asarray(lv_ref),
                               rtol=2e-2, atol=2e-2)

    print("KERNEL_OK")
</pallas_src>

<mosaic_0001>
module attributes {stable_mosaic.version = 11 : i64} {
  func.func @kernel(%arg0: memref<8x256xf32, #tpu.memory_space<vmem>>, %arg1: memref<624x128xbf16, #tpu.memory_space<vmem>>, %arg2: memref<1152x256xbf16, #tpu.memory_space<vmem>>, %arg3: memref<384x512xbf16, #tpu.memory_space<vmem>>, %arg4: memref<24x512xf32, #tpu.memory_space<vmem>>, %arg5: memref<8x384xf32, #tpu.memory_space<vmem>>) attributes {dimension_semantics = [], scalar_prefetch = 0 : i64, scratch_operands = 0 : i64, tpu.core_type = #tpu.core_type<tc>} {
    %c0 = arith.constant 0 : index
    %c0_0 = arith.constant 0 : index
    %0 = vector.load %arg0[%c0, %c0_0] : memref<8x256xf32, #tpu.memory_space<vmem>>, vector<8x16xf32>
    %c0_1 = arith.constant 0 : index
    %c0_2 = arith.constant 0 : index
    %1 = vector.load %arg1[%c0_1, %c0_2] : memref<624x128xbf16, #tpu.memory_space<vmem>>, vector<16x32xbf16>
    %2 = arith.truncf %0 : vector<8x16xf32> to vector<8x16xbf16>
    %cst = arith.constant dense<0.000000e+00> : vector<8x32xf32>
    %3 = tpu.matmul %2, %1, %cst {dimension_numbers = #tpu.dot_dimension_numbers<[1], [0], [0], [1], [0, 0, 1, 1], [], []>} : vector<8x16xbf16>, vector<16x32xbf16>, vector<8x32xf32> -> vector<8x32xf32>
    %c0_3 = arith.constant 0 : index
    %c0_4 = arith.constant 0 : index
    %4 = vector.load %arg4[%c0_3, %c0_4] : memref<24x512xf32, #tpu.memory_space<vmem>>, vector<1x32xf32>
    %c10 = arith.constant 10 : index
    %c0_5 = arith.constant 0 : index
    %5 = vector.load %arg4[%c10, %c0_5] : memref<24x512xf32, #tpu.memory_space<vmem>>, vector<1x32xf32>
    %cst_6 = arith.constant dense<0.000000e+00> : vector<32xf32>
    %6 = vector.multi_reduction <add>, %3, %cst_6 [0] : vector<8x32xf32> to vector<32xf32>
    %7 = vector.shape_cast %6 : vector<32xf32> to vector<1x32xf32>
    %cst_7 = arith.constant 8.000000e+00 : f32
    %8 = vector.broadcast %cst_7 : f32 to vector<1x32xf32>
    %9 = arith.divf %7, %8 : vector<1x32xf32>
    %10 = arith.mulf %3, %3 : vector<8x32xf32>
    %cst_8 = arith.constant dense<0.000000e+00> : vector<32xf32>
    %11 = vector.multi_reduction <add>, %10, %cst_8 [0] : vector<8x32xf32> to vector<32xf32>
    %12 = vector.shape_cast %11 : vector<32xf32> to vector<1x32xf32>
    %cst_9 = arith.constant 8.000000e+00 : f32
    %13 = vector.broadcast %cst_9 : f32 to vector<1x32xf32>
    %14 = arith.divf %12, %13 : vector<1x32xf32>
    %15 = arith.mulf %9, %9 : vector<1x32xf32>
    %16 = arith.subf %14, %15 : vector<1x32xf32>
    %cst_10 = arith.constant 0.000000e+00 : f32
    %17 = vector.broadcast %cst_10 : f32 to vector<1x32xf32>
    %18 = arith.maximumf %16, %17 : vector<1x32xf32>
    %19 = vector.broadcast %9 : vector<1x32xf32> to vector<8x32xf32>
    %20 = arith.subf %3, %19 : vector<8x32xf32>
    %cst_11 = arith.constant 9.99999974E-6 : f32
    %21 = vector.broadcast %cst_11 : f32 to vector<1x32xf32>
    %22 = arith.addf %18, %21 : vector<1x32xf32>
    %23 = math.rsqrt %22 : vector<1x32xf32>
    %24 = arith.mulf %4, %23 : vector<1x32xf32>
    %25 = vector.broadcast %24 : vector<1x32xf32> to vector<8x32xf32>
    %26 = arith.mulf %20, %25 : vector<8x32xf32>
    %27 = vector.broadcast %5 : vector<1x32xf32> to vector<8x32xf32>
    %28 = arith.addf %26, %27 : vector<8x32xf32>
    %cst_12 = arith.constant 0.00999999977 : f32
    %29 = vector.broadcast %cst_12 : f32 to vector<8x32xf32>
    %30 = arith.mulf %29, %28 : vector<8x32xf32>
    %31 = arith.maximumf %28, %30 : vector<8x32xf32>
    %c16 = arith.constant 16 : index
    %c0_13 = arith.constant 0 : index
    %32 = vector.load %arg1[%c16, %c0_13] : memref<624x128xbf16, #tpu.memory_space<vmem>>, vector<32x64xbf16>
    %33 = arith.truncf %31 : vector<8x32xf32> to vector<8x32xbf16>
    %cst_14 = arith.constant dense<0.000000e+00> : vector<8x64xf32>
    %34 = tpu.matmul %33, %32, %cst_14 {dimension_numbers = #tpu.dot_dimension_numbers<[1], [0], [0], [1], [0, 0, 1, 1], [], []>} : vector<8x32xbf16>, vector<32x64xbf16>, vector<8x64xf32> -> vector<8x64xf32>
    %c1 = arith.constant 1 : index
    %c0_15 = arith.constant 0 : index
    %35 = vector.load %arg4[%c1, %c0_15] : memref<24x512xf32, #tpu.memory_space<vmem>>, vector<1x64xf32>
    %c11 = arith.constant 11 : index
    %c0_16 = arith.constant 0 : index
    %36 = vector.load %arg4[%c11, %c0_16] : memref<24x512xf32, #tpu.memory_space<vmem>>, vector<1x64xf32>
    %cst_17 = arith.constant dense<0.000000e+00> : vector<64xf32>
    %37 = vector.multi_reduction <add>, %34, %cst_17 [0] : vector<8x64xf32> to vector<64xf32>
    %38 = vector.shape_cast %37 : vector<64xf32> to vector<1x64xf32>
    %cst_18 = arith.constant 8.000000e+00 : f32
    %39 = vector.broadcast %cst_18 : f32 to vector<1x64xf32>
    %40 = arith.divf %38, %39 : vector<1x64xf32>
    %41 = arith.mulf %34, %34 : vector<8x64xf32>
    %cst_19 = arith.constant dense<0.000000e+00> : vector<64xf32>
    %42 = vector.multi_reduction <add>, %41, %cst_19 [0] : vector<8x64xf32> to vector<64xf32>
    %43 = vector.shape_cast %42 : vector<64xf32> to vector<1x64xf32>
    %cst_20 = arith.constant 8.000000e+00 : f32
    %44 = vector.broadcast %cst_20 : f32 to vector<1x64xf32>
    %45 = arith.divf %43, %44 : vector<1x64xf32>
    %46 = arith.mulf %40, %40 : vector<1x64xf32>
    %47 = arith.subf %45, %46 : vector<1x64xf32>
    %cst_21 = arith.constant 0.000000e+00 : f32
    %48 = vector.broadcast %cst_21 : f32 to vector<1x64xf32>
    %49 = arith.maximumf %47, %48 : vector<1x64xf32>
    %50 = vector.broadcast %40 : vector<1x64xf32> to vector<8x64xf32>
    %51 = arith.subf %34, %50 : vector<8x64xf32>
    %cst_22 = arith.constant 9.99999974E-6 : f32
    %52 = vector.broadcast %cst_22 : f32 to vector<1x64xf32>
    %53 = arith.addf %49, %52 : vector<1x64xf32>
    %54 = math.rsqrt %53 : vector<1x64xf32>
    %55 = arith.mulf %35, %54 : vector<1x64xf32>
    %56 = vector.broadcast %55 : vector<1x64xf32> to vector<8x64xf32>
    %57 = arith.mulf %51, %56 : vector<8x64xf32>
    %58 = vector.broadcast %36 : vector<1x64xf32> to vector<8x64xf32>
    %59 = arith.addf %57, %58 : vector<8x64xf32>
    %cst_23 = arith.constant 0.00999999977 : f32
    %60 = vector.broadcast %cst_23 : f32 to vector<8x64xf32>
    %61 = arith.mulf %60, %59 : vector<8x64xf32>
    %62 = arith.maximumf %59, %61 : vector<8x64xf32>
    %c48 = arith.constant 48 : index
    %c0_24 = arith.constant 0 : index
    %63 = vector.load %arg1[%c48, %c0_24] : memref<624x128xbf16, #tpu.memory_space<vmem>>, vector<64x128xbf16>
    %64 = arith.truncf %62 : vector<8x64xf32> to vector<8x64xbf16>
    %cst_25 = arith.constant dense<0.000000e+00> : vector<8x128xf32>
    %65 = tpu.matmul %64, %63, %cst_25 {dimension_numbers = #tpu.dot_dimension_numbers<[1], [0], [0], [1], [0, 0, 1, 1], [], []>} : vector<8x64xbf16>, vector<64x128xbf16>, vector<8x128xf32> -> vector<8x128xf32>
    %c2 = arith.constant 2 : index
    %c0_26 = arith.constant 0 : index
    %66 = vector.load %arg4[%c2, %c0_26] : memref<24x512xf32, #tpu.memory_space<vmem>>, vector<1x128xf32>
    %c12 = arith.constant 12 : index
    %c0_27 = arith.constant 0 : index
    %67 = vector.load %arg4[%c12, %c0_27] : memref<24x512xf32, #tpu.memory_space<vmem>>, vector<1x128xf32>
    %cst_28 = arith.constant dense<0.000000e+00> : vector<128xf32>
    %68 = vector.multi_reduction <add>, %65, %cst_28 [0] : vector<8x128xf32> to vector<128xf32>
    %69 = vector.shape_cast %68 : vector<128xf32> to vector<1x128xf32>
    %cst_29 = arith.constant 8.000000e+00 : f32
    %70 = vector.broadcast %cst_29 : f32 to vector<1x128xf32>
    %71 = arith.divf %69, %70 : vector<1x128xf32>
    %72 = arith.mulf %65, %65 : vector<8x128xf32>
    %cst_30 = arith.constant dense<0.000000e+00> : vector<128xf32>
    %73 = vector.multi_reduction <add>, %72, %cst_30 [0] : vector<8x128xf32> to vector<128xf32>
    %74 = vector.shape_cast %73 : vector<128xf32> to vector<1x128xf32>
    %cst_31 = arith.constant 8.000000e+00 : f32
    %75 = vector.broadcast %cst_31 : f32 to vector<1x128xf32>
    %76 = arith.divf %74, %75 : vector<1x128xf32>
    %77 = arith.mulf %71, %71 : vector<1x128xf32>
    %78 = arith.subf %76, %77 : vector<1x128xf32>
    %cst_32 = arith.constant 0.000000e+00 : f32
    %79 = vector.broadcast %cst_32 : f32 to vector<1x128xf32>
    %80 = arith.maximumf %78, %79 : vector<1x128xf32>
    %81 = vector.broadcast %71 : vector<1x128xf32> to vector<8x128xf32>
    %82 = arith.subf %65, %81 : vector<8x128xf32>
    %cst_33 = arith.constant 9.99999974E-6 : f32
    %83 = vector.broadcast %cst_33 : f32 to vector<1x128xf32>
    %84 = arith.addf %80, %83 : vector<1x128xf32>
    %85 = math.rsqrt %84 : vector<1x128xf32>
    %86 = arith.mulf %66, %85 : vector<1x128xf32>
    %87 = vector.broadcast %86 : vector<1x128xf32> to vector<8x128xf32>
    %88 = arith.mulf %82, %87 : vector<8x128xf32>
    %89 = vector.broadcast %67 : vector<1x128xf32> to vector<8x128xf32>
    %90 = arith.addf %88, %89 : vector<8x128xf32>
    %cst_34 = arith.constant 0.00999999977 : f32
    %91 = vector.broadcast %cst_34 : f32 to vector<8x128xf32>
    %92 = arith.mulf %91, %90 : vector<8x128xf32>
    %93 = arith.maximumf %90, %92 : vector<8x128xf32>
    %c0_35 = arith.constant 0 : index
    %c0_36 = arith.constant 0 : index
    %94 = vector.load %arg2[%c0_35, %c0_36] : memref<1152x256xbf16, #tpu.memory_space<vmem>>, vector<128x256xbf16>
    %95 = arith.truncf %93 : vector<8x128xf32> to vector<8x128xbf16>
    %cst_37 = arith.constant dense<0.000000e+00> : vector<8x256xf32>
    %96 = tpu.matmul %95, %94, %cst_37 {dimension_numbers = #tpu.dot_dimension_numbers<[1], [0], [0], [1], [0, 0, 1, 1], [], []>} : vector<8x128xbf16>, vector<128x256xbf16>, vector<8x256xf32> -> vector<8x256xf32>
    %c3 = arith.constant 3 : index
    %c0_38 = arith.constant 0 : index
    %97 = vector.load %arg4[%c3, %c0_38] : memref<24x512xf32, #tpu.memory_space<vmem>>, vector<1x256xf32>
    %c13 = arith.constant 13 : index
    %c0_39 = arith.constant 0 : index
    %98 = vector.load %arg4[%c13, %c0_39] : memref<24x512xf32, #tpu.memory_space<vmem>>, vector<1x256xf32>
    %cst_40 = arith.constant dense<0.000000e+00> : vector<256xf32>
    %99 = vector.multi_reduction <add>, %96, %cst_40 [0] : vector<8x256xf32> to vector<256xf32>
    %100 = vector.shape_cast %99 : vector<256xf32> to vector<1x256xf32>
    %cst_41 = arith.constant 8.000000e+00 : f32
    %101 = vector.broadcast %cst_41 : f32 to vector<1x256xf32>
    %102 = arith.divf %100, %101 : vector<1x256xf32>
    %103 = arith.mulf %96, %96 : vector<8x256xf32>
    %cst_42 = arith.constant dense<0.000000e+00> : vector<256xf32>
    %104 = vector.multi_reduction <add>, %103, %cst_42 [0] : vector<8x256xf32> to vector<256xf32>
    %105 = vector.shape_cast %104 : vector<256xf32> to vector<1x256xf32>
    %cst_43 = arith.constant 8.000000e+00 : f32
    %106 = vector.broadcast %cst_43 : f32 to vector<1x256xf32>
    %107 = arith.divf %105, %106 : vector<1x256xf32>
    %108 = arith.mulf %102, %102 : vector<1x256xf32>
    %109 = arith.subf %107, %108 : vector<1x256xf32>
    %cst_44 = arith.constant 0.000000e+00 : f32
    %110 = vector.broadcast %cst_44 : f32 to vector<1x256xf32>
    %111 = arith.maximumf %109, %110 : vector<1x256xf32>
    %112 = vector.broadcast %102 : vector<1x256xf32> to vector<8x256xf32>
    %113 = arith.subf %96, %112 : vector<8x256xf32>
    %cst_45 = arith.constant 9.99999974E-6 : f32
    %114 = vector.broadcast %cst_45 : f32 to vector<1x256xf32>
    %115 = arith.addf %111, %114 : vector<1x256xf32>
    %116 = math.rsqrt %115 : vector<1x256xf32>
    %117 = arith.mulf %97, %116 : vector<1x256xf32>
    %118 = vector.broadcast %117 : vector<1x256xf32> to vector<8x256xf32>
    %119 = arith.mulf %113, %118 : vector<8x256xf32>
    %120 = vector.broadcast %98 : vector<1x256xf32> to vector<8x256xf32>
    %121 = arith.addf %119, %120 : vector<8x256xf32>
    %cst_46 = arith.constant 0.00999999977 : f32
    %122 = vector.broadcast %cst_46 : f32 to vector<8x256xf32>
    %123 = arith.mulf %122, %121 : vector<8x256xf32>
    %124 = arith.maximumf %121, %123 : vector<8x256xf32>
    %c0_47 = arith.constant 0 : index
    %c0_48 = arith.constant 0 : index
    %125 = vector.load %arg3[%c0_47, %c0_48] : memref<384x512xbf16, #tpu.memory_space<vmem>>, vector<256x512xbf16>
    %126 = arith.truncf %124 : vector<8x256xf32> to vector<8x256xbf16>
    %cst_49 = arith.constant dense<0.000000e+00> : vector<8x512xf32>
    %127 = tpu.matmul %126, %125, %cst_49 {dimension_numbers = #tpu.dot_dimension_numbers<[1], [0], [0], [1], [0, 0, 1, 1], [], []>} : vector<8x256xbf16>, vector<256x512xbf16>, vector<8x512xf32> -> vector<8x512xf32>
    %c4 = arith.constant 4 : index
    %c0_50 = arith.constant 0 : index
    %128 = vector.load %arg4[%c4, %c0_50] : memref<24x512xf32, #tpu.memory_space<vmem>>, vector<1x512xf32>
    %c14 = arith.constant 14 : index
    %c0_51 = arith.constant 0 : index
    %129 = vector.load %arg4[%c14, %c0_51] : memref<24x512xf32, #tpu.memory_space<vmem>>, vector<1x512xf32>
    %cst_52 = arith.constant dense<0.000000e+00> : vector<512xf32>
    %130 = vector.multi_reduction <add>, %127, %cst_52 [0] : vector<8x512xf32> to vector<512xf32>
    %131 = vector.shape_cast %130 : vector<512xf32> to vector<1x512xf32>
    %cst_53 = arith.constant 8.000000e+00 : f32
    %132 = vector.broadcast %cst_53 : f32 to vector<1x512xf32>
    %133 = arith.divf %131, %132 : vector<1x512xf32>
    %134 = arith.mulf %127, %127 : vector<8x512xf32>
    %cst_54 = arith.constant dense<0.000000e+00> : vector<512xf32>
    %135 = vector.multi_reduction <add>, %134, %cst_54 [0] : vector<8x512xf32> to vector<512xf32>
    %136 = vector.shape_cast %135 : vector<512xf32> to vector<1x512xf32>
    %cst_55 = arith.constant 8.000000e+00 : f32
    %137 = vector.broadcast %cst_55 : f32 to vector<1x512xf32>
    %138 = arith.divf %136, %137 : vector<1x512xf32>
    %139 = arith.mulf %133, %133 : vector<1x512xf32>
    %140 = arith.subf %138, %139 : vector<1x512xf32>
    %cst_56 = arith.constant 0.000000e+00 : f32
    %141 = vector.broadcast %cst_56 : f32 to vector<1x512xf32>
    %142 = arith.maximumf %140, %141 : vector<1x512xf32>
    %143 = vector.broadcast %133 : vector<1x512xf32> to vector<8x512xf32>
    %144 = arith.subf %127, %143 : vector<8x512xf32>
    %cst_57 = arith.constant 9.99999974E-6 : f32
    %145 = vector.broadcast %cst_57 : f32 to vector<1x512xf32>
    %146 = arith.addf %142, %145 : vector<1x512xf32>
    %147 = math.rsqrt %146 : vector<1x512xf32>
    %148 = arith.mulf %128, %147 : vector<1x512xf32>
    %149 = vector.broadcast %148 : vector<1x512xf32> to vector<8x512xf32>
    %150 = arith.mulf %144, %149 : vector<8x512xf32>
    %151 = vector.broadcast %129 : vector<1x512xf32> to vector<8x512xf32>
    %152 = arith.addf %150, %151 : vector<8x512xf32>
    %cst_58 = arith.constant 0.00999999977 : f32
    %153 = vector.broadcast %cst_58 : f32 to vector<8x512xf32>
    %154 = arith.mulf %153, %152 : vector<8x512xf32>
    %155 = arith.maximumf %152, %154 : vector<8x512xf32>
    %c128 = arith.constant 128 : index
    %c0_59 = arith.constant 0 : index
    %156 = vector.load %arg2[%c128, %c0_59] : memref<1152x256xbf16, #tpu.memory_space<vmem>>, vector<512x256xbf16>
    %157 = arith.truncf %155 : vector<8x512xf32> to vector<8x512xbf16>
    %cst_60 = arith.constant dense<0.000000e+00> : vector<8x256xf32>
    %158 = tpu.matmul %157, %156, %cst_60 {dimension_numbers = #tpu.dot_dimension_numbers<[1], [0], [0], [1], [0, 0, 1, 1], [], []>} : vector<8x512xbf16>, vector<512x256xbf16>, vector<8x256xf32> -> vector<8x256xf32>
    %c20 = arith.constant 20 : index
    %c0_61 = arith.constant 0 : index
    %159 = vector.load %arg4[%c20, %c0_61] : memref<24x512xf32, #tpu.memory_space<vmem>>, vector<1x256xf32>
    %160 = vector.broadcast %159 : vector<1x256xf32> to vector<8x256xf32>
    %161 = arith.addf %158, %160 : vector<8x256xf32>
    %c0_62 = arith.constant 0 : index
    %c128_63 = arith.constant 128 : index
    %162 = vector.load %arg5[%c0_62, %c128_63] : memref<8x384xf32, #tpu.memory_space<vmem>>, vector<8x256xf32>
    tpu.vector_store %arg5[%c0_62, %c128_63], %161 {strides = array<i32>} : memref<8x384xf32, #tpu.memory_space<vmem>>, vector<8x256xf32>,
    %c0_64 = arith.constant 0 : index
    %c128_65 = arith.constant 128 : index
    %163 = vector.load %arg0[%c0_64, %c128_65] : memref<8x256xf32, #tpu.memory_space<vmem>>, vector<8x128xf32>
    %164 = vector.extract_strided_slice %161 {offsets = [0, 128], sizes = [8, 128], strides = [1, 1]} : vector<8x256xf32> to vector<8x128xf32>
    %cst_66 = arith.constant 5.000000e-01 : f32
    %165 = vector.broadcast %cst_66 : f32 to vector<8x128xf32>
    %166 = arith.mulf %165, %164 : vector<8x128xf32>
    %167 = math.exp %166 : vector<8x128xf32>
    %168 = arith.mulf %163, %167 : vector<8x128xf32>
    %169 = vector.extract_strided_slice %161 {offsets = [0, 0], sizes = [8, 128], strides = [1, 1]} : vector<8x256xf32> to vector<8x128xf32>
    %170 = arith.addf %168, %169 : vector<8x128xf32>
    %c256 = arith.constant 256 : index
    %c0_67 = arith.constant 0 : index
    %171 = vector.load %arg3[%c256, %c0_67] : memref<384x512xbf16, #tpu.memory_space<vmem>>, vector<128x512xbf16>
    %172 = arith.truncf %170 : vector<8x128xf32> to vector<8x128xbf16>
    %cst_68 = arith.constant dense<0.000000e+00> : vector<8x512xf32>
    %173 = tpu.matmul %172, %171, %cst_68 {dimension_numbers = #tpu.dot_dimension_numbers<[1], [0], [0], [1], [0, 0, 1, 1], [], []>} : vector<8x128xbf16>, vector<128x512xbf16>, vector<8x512xf32> -> vector<8x512xf32>
    %c21 = arith.constant 21 : index
    %c0_69 = arith.constant 0 : index
    %174 = vector.load %arg4[%c21, %c0_69] : memref<24x512xf32, #tpu.memory_space<vmem>>, vector<1x512xf32>
    %175 = vector.broadcast %174 : vector<1x512xf32> to vector<8x512xf32>
    %176 = arith.addf %173, %175 : vector<8x512xf32>
    %c640 = arith.constant 640 : index
    %c0_70 = arith.constant 0 : index
    %177 = vector.load %arg2[%c640, %c0_70] : memref<1152x256xbf16, #tpu.memory_space<vmem>>, vector<512x256xbf16>
    %178 = arith.truncf %176 : vector<8x512xf32> to vector<8x512xbf16>
    %cst_71 = arith.constant dense<0.000000e+00> : vector<8x256xf32>
    %179 = tpu.matmul %178, %177, %cst_71 {dimension_numbers = #tpu.dot_dimension_numbers<[1], [0], [0], [1], [0, 0, 1, 1], [], []>} : vector<8x512xbf16>, vector<512x256xbf16>, vector<8x256xf32> -> vector<8x256xf32>
    %c5 = arith.constant 5 : index
    %c0_72 = arith.constant 0 : index
    %180 = vector.load %arg4[%c5, %c0_72] : memref<24x512xf32, #tpu.memory_space<vmem>>, vector<1x256xf32>
    %c15 = arith.constant 15 : index
    %c0_73 = arith.constant 0 : index
    %181 = vector.load %arg4[%c15, %c0_73] : memref<24x512xf32, #tpu.memory_space<vmem>>, vector<1x256xf32>
    %cst_74 = arith.constant dense<0.000000e+00> : vector<256xf32>
    %182 = vector.multi_reduction <add>, %179, %cst_74 [0] : vector<8x256xf32> to vector<256xf32>
    %183 = vector.shape_cast %182 : vector<256xf32> to vector<1x256xf32>
    %cst_75 = arith.constant 8.000000e+00 : f32
    %184 = vector.broadcast %cst_75 : f32 to vector<1x256xf32>
    %185 = arith.divf %183, %184 : vector<1x256xf32>
    %186 = arith.mulf %179, %179 : vector<8x256xf32>
    %cst_76 = arith.constant dense<0.000000e+00> : vector<256xf32>
    %187 = vector.multi_reduction <add>, %186, %cst_76 [0] : vector<8x256xf32> to vector<256xf32>
    %188 = vector.shape_cast %187 : vector<256xf32> to vector<1x256xf32>
    %cst_77 = arith.constant 8.000000e+00 : f32
    %189 = vector.broadcast %cst_77 : f32 to vector<1x256xf32>
    %190 = arith.divf %188, %189 : vector<1x256xf32>
    %191 = arith.mulf %185, %185 : vector<1x256xf32>
    %192 = arith.subf %190, %191 : vector<1x256xf32>
    %cst_78 = arith.constant 0.000000e+00 : f32
    %193 = vector.broadcast %cst_78 : f32 to vector<1x256xf32>
    %194 = arith.maximumf %192, %193 : vector<1x256xf32>
    %195 = vector.broadcast %185 : vector<1x256xf32> to vector<8x256xf32>
    %196 = arith.subf %179, %195 : vector<8x256xf32>
    %cst_79 = arith.constant 9.99999974E-6 : f32
    %197 = vector.broadcast %cst_79 : f32 to vector<1x256xf32>
    %198 = arith.addf %194, %197 : vector<1x256xf32>
    %199 = math.rsqrt %198 : vector<1x256xf32>
    %200 = arith.mulf %180, %199 : vector<1x256xf32>
    %201 = vector.broadcast %200 : vector<1x256xf32> to vector<8x256xf32>
    %202 = arith.mulf %196, %201 : vector<8x256xf32>
    %203 = vector.broadcast %181 : vector<1x256xf32> to vector<8x256xf32>
    %204 = arith.addf %202, %203 : vector<8x256xf32>
    %cst_80 = arith.constant 0.00999999977 : f32
    %205 = vector.broadcast %cst_80 : f32 to vector<8x256xf32>
    %206 = arith.mulf %205, %204 : vector<8x256xf32>
    %207 = arith.maximumf %204, %206 : vector<8x256xf32>
    %c112 = arith.constant 112 : index
    %c0_81 = arith.constant 0 : index
    %208 = vector.load %arg1[%c112, %c0_81] : memref<624x128xbf16, #tpu.memory_space<vmem>>, vector<256x128xbf16>
    %209 = arith.truncf %207 : vector<8x256xf32> to vector<8x256xbf16>
    %cst_82 = arith.constant dense<0.000000e+00> : vector<8x128xf32>
    %210 = tpu.matmul %209, %208, %cst_82 {dimension_numbers = #tpu.dot_dimension_numbers<[1], [0], [0], [1], [0, 0, 1, 1], [], []>} : vector<8x256xbf16>, vector<256x128xbf16>, vector<8x128xf32> -> vector<8x128xf32>
    %c6 = arith.constant 6 : index
    %c0_83 = arith.constant 0 : index
    %211 = vector.load %arg4[%c6, %c0_83] : memref<24x512xf32, #tpu.memory_space<vmem>>, vector<1x128xf32>
    %c16_84 = arith.constant 16 : index
    %c0_85 = arith.constant 0 : index
    %212 = vector.load %arg4[%c16_84, %c0_85] : memref<24x512xf32, #tpu.memory_space<vmem>>, vector<1x128xf32>
    %cst_86 = arith.constant dense<0.000000e+00> : vector<128xf32>
    %213 = vector.multi_reduction <add>, %210, %cst_86 [0] : vector<8x128xf32> to vector<128xf32>
    %214 = vector.shape_cast %213 : vector<128xf32> to vector<1x128xf32>
    %cst_87 = arith.constant 8.000000e+00 : f32
    %215 = vector.broadcast %cst_87 : f32 to vector<1x128xf32>
    %216 = arith.divf %214, %215 : vector<1x128xf32>
    %217 = arith.mulf %210, %210 : vector<8x128xf32>
    %cst_88 = arith.constant dense<0.000000e+00> : vector<128xf32>
    %218 = vector.multi_reduction <add>, %217, %cst_88 [0] : vector<8x128xf32> to vector<128xf32>
    %219 = vector.shape_cast %218 : vector<128xf32> to vector<1x128xf32>
    %cst_89 = arith.constant 8.000000e+00 : f32
    %220 = vector.broadcast %cst_89 : f32 to vector<1x128xf32>
    %221 = arith.divf %219, %220 : vector<1x128xf32>
    %222 = arith.mulf %216, %216 : vector<1x128xf32>
    %223 = arith.subf %221, %222 : vector<1x128xf32>
    %cst_90 = arith.constant 0.000000e+00 : f32
    %224 = vector.broadcast %cst_90 : f32 to vector<1x128xf32>
    %225 = arith.maximumf %223, %224 : vector<1x128xf32>
    %226 = vector.broadcast %216 : vector<1x128xf32> to vector<8x128xf32>
    %227 = arith.subf %210, %226 : vector<8x128xf32>
    %cst_91 = arith.constant 9.99999974E-6 : f32
    %228 = vector.broadcast %cst_91 : f32 to vector<1x128xf32>
    %229 = arith.addf %225, %228 : vector<1x128xf32>
    %230 = math.rsqrt %229 : vector<1x128xf32>
    %231 = arith.mulf %211, %230 : vector<1x128xf32>
    %232 = vector.broadcast %231 : vector<1x128xf32> to vector<8x128xf32>
    %233 = arith.mulf %227, %232 : vector<8x128xf32>
    %234 = vector.broadcast %212 : vector<1x128xf32> to vector<8x128xf32>
    %235 = arith.addf %233, %234 : vector<8x128xf32>
    %cst_92 = arith.constant 0.00999999977 : f32
    %236 = vector.broadcast %cst_92 : f32 to vector<8x128xf32>
    %237 = arith.mulf %236, %235 : vector<8x128xf32>
    %238 = arith.maximumf %235, %237 : vector<8x128xf32>
    %c368 = arith.constant 368 : index
    %c0_93 = arith.constant 0 : index
    %239 = vector.load %arg1[%c368, %c0_93] : memref<624x128xbf16, #tpu.memory_space<vmem>>, vector<128x64xbf16>
    %240 = arith.truncf %238 : vector<8x128xf32> to vector<8x128xbf16>
    %cst_94 = arith.constant dense<0.000000e+00> : vector<8x64xf32>
    %241 = tpu.matmul %240, %239, %cst_94 {dimension_numbers = #tpu.dot_dimension_numbers<[1], [0], [0], [1], [0, 0, 1, 1], [], []>} : vector<8x128xbf16>, vector<128x64xbf16>, vector<8x64xf32> -> vector<8x64xf32>
    %c7 = arith.constant 7 : index
    %c0_95 = arith.constant 0 : index
    %242 = vector.load %arg4[%c7, %c0_95] : memref<24x512xf32, #tpu.memory_space<vmem>>, vector<1x64xf32>
    %c17 = arith.constant 17 : index
    %c0_96 = arith.constant 0 : index
    %243 = vector.load %arg4[%c17, %c0_96] : memref<24x512xf32, #tpu.memory_space<vmem>>, vector<1x64xf32>
    %cst_97 = arith.constant dense<0.000000e+00> : vector<64xf32>
    %244 = vector.multi_reduction <add>, %241, %cst_97 [0] : vector<8x64xf32> to vector<64xf32>
    %245 = vector.shape_cast %244 : vector<64xf32> to vector<1x64xf32>
    %cst_98 = arith.constant 8.000000e+00 : f32
    %246 = vector.broadcast %cst_98 : f32 to vector<1x64xf32>
    %247 = arith.divf %245, %246 : vector<1x64xf32>
    %248 = arith.mulf %241, %241 : vector<8x64xf32>
    %cst_99 = arith.constant dense<0.000000e+00> : vector<64xf32>
    %249 = vector.multi_reduction <add>, %248, %cst_99 [0] : vector<8x64xf32> to vector<64xf32>
    %250 = vector.shape_cast %249 : vector<64xf32> to vector<1x64xf32>
    %cst_100 = arith.constant 8.000000e+00 : f32
    %251 = vector.broadcast %cst_100 : f32 to vector<1x64xf32>
    %252 = arith.divf %250, %251 : vector<1x64xf32>
    %253 = arith.mulf %247, %247 : vector<1x64xf32>
    %254 = arith.subf %252, %253 : vector<1x64xf32>
    %cst_101 = arith.constant 0.000000e+00 : f32
    %255 = vector.broadcast %cst_101 : f32 to vector<1x64xf32>
    %256 = arith.maximumf %254, %255 : vector<1x64xf32>
    %257 = vector.broadcast %247 : vector<1x64xf32> to vector<8x64xf32>
    %258 = arith.subf %241, %257 : vector<8x64xf32>
    %cst_102 = arith.constant 9.99999974E-6 : f32
    %259 = vector.broadcast %cst_102 : f32 to vector<1x64xf32>
    %260 = arith.addf %256, %259 : vector<1x64xf32>
    %261 = math.rsqrt %260 : vector<1x64xf32>
    %262 = arith.mulf %242, %261 : vector<1x64xf32>
    %263 = vector.broadcast %262 : vector<1x64xf32> to vector<8x64xf32>
    %264 = arith.mulf %258, %263 : vector<8x64xf32>
    %265 = vector.broadcast %243 : vector<1x64xf32> to vector<8x64xf32>
    %266 = arith.addf %264, %265 : vector<8x64xf32>
    %cst_103 = arith.constant 0.00999999977 : f32
    %267 = vector.broadcast %cst_103 : f32 to vector<8x64xf32>
    %268 = arith.mulf %267, %266 : vector<8x64xf32>
    %269 = arith.maximumf %266, %268 : vector<8x64xf32>
    %c496 = arith.constant 496 : index
    %c0_104 = arith.constant 0 : index
    %270 = vector.load %arg1[%c496, %c0_104] : memref<624x128xbf16, #tpu.memory_space<vmem>>, vector<64x32xbf16>
    %271 = arith.truncf %269 : vector<8x64xf32> to vector<8x64xbf16>
    %cst_105 = arith.constant dense<0.000000e+00> : vector<8x32xf32>
    %272 = tpu.matmul %271, %270, %cst_105 {dimension_numbers = #tpu.dot_dimension_numbers<[1], [0], [0], [1], [0, 0, 1, 1], [], []>} : vector<8x64xbf16>, vector<64x32xbf16>, vector<8x32xf32> -> vector<8x32xf32>
    %c8 = arith.constant 8 : index
    %c0_106 = arith.constant 0 : index
    %273 = vector.load %arg4[%c8, %c0_106] : memref<24x512xf32, #tpu.memory_space<vmem>>, vector<1x32xf32>
    %c18 = arith.constant 18 : index
    %c0_107 = arith.constant 0 : index
    %274 = vector.load %arg4[%c18, %c0_107] : memref<24x512xf32, #tpu.memory_space<vmem>>, vector<1x32xf32>
    %cst_108 = arith.constant dense<0.000000e+00> : vector<32xf32>
    %275 = vector.multi_reduction <add>, %272, %cst_108 [0] : vector<8x32xf32> to vector<32xf32>
    %276 = vector.shape_cast %275 : vector<32xf32> to vector<1x32xf32>
    %cst_109 = arith.constant 8.000000e+00 : f32
    %277 = vector.broadcast %cst_109 : f32 to vector<1x32xf32>
    %278 = arith.divf %276, %277 : vector<1x32xf32>
    %279 = arith.mulf %272, %272 : vector<8x32xf32>
    %cst_110 = arith.constant dense<0.000000e+00> : vector<32xf32>
    %280 = vector.multi_reduction <add>, %279, %cst_110 [0] : vector<8x32xf32> to vector<32xf32>
    %281 = vector.shape_cast %280 : vector<32xf32> to vector<1x32xf32>
    %cst_111 = arith.constant 8.000000e+00 : f32
    %282 = vector.broadcast %cst_111 : f32 to vector<1x32xf32>
    %283 = arith.divf %281, %282 : vector<1x32xf32>
    %284 = arith.mulf %278, %278 : vector<1x32xf32>
    %285 = arith.subf %283, %284 : vector<1x32xf32>
    %cst_112 = arith.constant 0.000000e+00 : f32
    %286 = vector.broadcast %cst_112 : f32 to vector<1x32xf32>
    %287 = arith.maximumf %285, %286 : vector<1x32xf32>
    %288 = vector.broadcast %278 : vector<1x32xf32> to vector<8x32xf32>
    %289 = arith.subf %272, %288 : vector<8x32xf32>
    %cst_113 = arith.constant 9.99999974E-6 : f32
    %290 = vector.broadcast %cst_113 : f32 to vector<1x32xf32>
    %291 = arith.addf %287, %290 : vector<1x32xf32>
    %292 = math.rsqrt %291 : vector<1x32xf32>
    %293 = arith.mulf %273, %292 : vector<1x32xf32>
    %294 = vector.broadcast %293 : vector<1x32xf32> to vector<8x32xf32>
    %295 = arith.mulf %289, %294 : vector<8x32xf32>
    %296 = vector.broadcast %274 : vector<1x32xf32> to vector<8x32xf32>
    %297 = arith.addf %295, %296 : vector<8x32xf32>
    %cst_114 = arith.constant 0.00999999977 : f32
    %298 = vector.broadcast %cst_114 : f32 to vector<8x32xf32>
    %299 = arith.mulf %298, %297 : vector<8x32xf32>
    %300 = arith.maximumf %297, %299 : vector<8x32xf32>
    %c560 = arith.constant 560 : index
    %c0_115 = arith.constant 0 : index
    %301 = vector.load %arg1[%c560, %c0_115] : memref<624x128xbf16, #tpu.memory_space<vmem>>, vector<32x32xbf16>
    %302 = arith.truncf %300 : vector<8x32xf32> to vector<8x32xbf16>
    %cst_116 = arith.constant dense<0.000000e+00> : vector<8x32xf32>
    %303 = tpu.matmul %302, %301, %cst_116 {dimension_numbers = #tpu.dot_dimension_numbers<[1], [0], [0], [1], [0, 0, 1, 1], [], []>} : vector<8x32xbf16>, vector<32x32xbf16>, vector<8x32xf32> -> vector<8x32xf32>
    %c9 = arith.constant 9 : index
    %c0_117 = arith.constant 0 : index
    %304 = vector.load %arg4[%c9, %c0_117] : memref<24x512xf32, #tpu.memory_space<vmem>>, vector<1x32xf32>
    %c19 = arith.constant 19 : index
    %c0_118 = arith.constant 0 : index
    %305 = vector.load %arg4[%c19, %c0_118] : memref<24x512xf32, #tpu.memory_space<vmem>>, vector<1x32xf32>
    %cst_119 = arith.constant dense<0.000000e+00> : vector<32xf32>
    %306 = vector.multi_reduction <add>, %303, %cst_119 [0] : vector<8x32xf32> to vector<32xf32>
    %307 = vector.shape_cast %306 : vector<32xf32> to vector<1x32xf32>
    %cst_120 = arith.constant 8.000000e+00 : f32
    %308 = vector.broadcast %cst_120 : f32 to vector<1x32xf32>
    %309 = arith.divf %307, %308 : vector<1x32xf32>
    %310 = arith.mulf %303, %303 : vector<8x32xf32>
    %cst_121 = arith.constant dense<0.000000e+00> : vector<32xf32>
    %311 = vector.multi_reduction <add>, %310, %cst_121 [0] : vector<8x32xf32> to vector<32xf32>
    %312 = vector.shape_cast %311 : vector<32xf32> to vector<1x32xf32>
    %cst_122 = arith.constant 8.000000e+00 : f32
    %313 = vector.broadcast %cst_122 : f32 to vector<1x32xf32>
    %314 = arith.divf %312, %313 : vector<1x32xf32>
    %315 = arith.mulf %309, %309 : vector<1x32xf32>
    %316 = arith.subf %314, %315 : vector<1x32xf32>
    %cst_123 = arith.constant 0.000000e+00 : f32
    %317 = vector.broadcast %cst_123 : f32 to vector<1x32xf32>
    %318 = arith.maximumf %316, %317 : vector<1x32xf32>
    %319 = vector.broadcast %309 : vector<1x32xf32> to vector<8x32xf32>
    %320 = arith.subf %303, %319 : vector<8x32xf32>
    %cst_124 = arith.constant 9.99999974E-6 : f32
    %321 = vector.broadcast %cst_124 : f32 to vector<1x32xf32>
    %322 = arith.addf %318, %321 : vector<1x32xf32>
    %323 = math.rsqrt %322 : vector<1x32xf32>
    %324 = arith.mulf %304, %323 : vector<1x32xf32>
    %325 = vector.broadcast %324 : vector<1x32xf32> to vector<8x32xf32>
    %326 = arith.mulf %320, %325 : vector<8x32xf32>
    %327 = vector.broadcast %305 : vector<1x32xf32> to vector<8x32xf32>
    %328 = arith.addf %326, %327 : vector<8x32xf32>
    %cst_125 = arith.constant 0.00999999977 : f32
    %329 = vector.broadcast %cst_125 : f32 to vector<8x32xf32>
    %330 = arith.mulf %329, %328 : vector<8x32xf32>
    %331 = arith.maximumf %328, %330 : vector<8x32xf32>
    %c592 = arith.constant 592 : index
    %c0_126 = arith.constant 0 : index
    %332 = vector.load %arg1[%c592, %c0_126] : memref<624x128xbf16, #tpu.memory_space<vmem>>, vector<32x128xbf16>
    %333 = arith.truncf %331 : vector<8x32xf32> to vector<8x32xbf16>
    %cst_127 = arith.constant dense<0.000000e+00> : vector<8x128xf32>
    %334 = tpu.matmul %333, %332, %cst_127 {dimension_numbers = #tpu.dot_dimension_numbers<[1], [0], [0], [1], [0, 0, 1, 1], [], []>} : vector<8x32xbf16>, vector<32x128xbf16>, vector<8x128xf32> -> vector<8x128xf32>
    %c22 = arith.constant 22 : index
    %c0_128 = arith.constant 0 : index
    %335 = vector.load %arg4[%c22, %c0_128] : memref<24x512xf32, #tpu.memory_space<vmem>>, vector<1x128xf32>
    %336 = vector.broadcast %335 : vector<1x128xf32> to vector<8x128xf32>
    %337 = arith.addf %334, %336 : vector<8x128xf32>
    %338 = math.tanh %337 : vector<8x128xf32>
    %c0_129 = arith.constant 0 : index
    %c0_130 = arith.constant 0 : index
    %339 = vector.load %arg5[%c0_129, %c0_130] : memref<8x384xf32, #tpu.memory_space<vmem>>, vector<8x128xf32>
    tpu.vector_store %arg5[%c0_129, %c0_130], %338 {strides = array<i32>} : memref<8x384xf32, #tpu.memory_space<vmem>>, vector<8x128xf32>,
    return
  }
}

</mosaic_0001>

<llo_original>
// kernel: betavae_forward.1
$region0: #{betavae_forward.1}
  #allocation0 [shape = 'u32[]', space=smem, size = 0x4, offset = 0x4, fixed_abs, tag = 'smem constant byte address 0x4 - core index']
  #allocation1 [shape = 'u32[144,128]{1,0:T(1,128)}', space=vmem, size = 0x12000, scoped, tag = 'internal scratch']
  %s0 = inlined_call_operand.vmem [shape: f32[8,256], index: 0, kind: input, shape index: {}]
  %s1 = inlined_call_operand.hbm [shape: bf16[624,128], index: 1, kind: input, shape index: {}]
  %s2 = inlined_call_operand.hbm [shape: bf16[1152,256], index: 2, kind: input, shape index: {}]
  %s3 = inlined_call_operand.hbm [shape: bf16[384,512], index: 3, kind: input, shape index: {}]
  %s4 = inlined_call_operand.hbm [shape: f32[24,512], index: 4, kind: input, shape index: {}]
  %s5 = inlined_call_operand.vmem [shape: f32[8,384], index: 5, kind: output, shape index: {}]
  %s6 = sld [smem:[#allocation0]]
  $region46: #{betavae_forward.1} parent=0
    _
  %s8 = ssub.s32 1, %s6
  %s9 = scalar_select 0, %s8, %s6
  $region1: #{betavae_forward.1} parent=0
    #allocation2 [shape = 'u8[159744]{0}', space=vmem, size = 0x27000, scoped, tag = 'input window, operand 1, single buffered']
    #allocation3 [shape = 's32[1]{0}', space=sflag, size = 0x4, scoped, tag = 'scoped memory for betavae_forward.1']
    #allocation4 [shape = 'u8[589824]{0}', space=vmem, size = 0x90000, scoped, tag = 'input window, operand 2, single buffered']
    #allocation5 [shape = 's32[1]{0}', space=sflag, size = 0x4, scoped, tag = 'scoped memory for betavae_forward.1']
    #allocation6 [shape = 'u8[393216]{0}', space=vmem, size = 0x60000, scoped, tag = 'input window, operand 3, single buffered']
    #allocation7 [shape = 'u8[49152]{0}', space=vmem, size = 0xc000, scoped, tag = 'input window, operand 4, single buffered']
    #allocation8 [shape = 's32[1]{0}', space=sflag, size = 0x4, scoped, tag = 'scoped memory for betavae_forward.1']
    %10 = vsyncpa [#allocation3], 0
    %11 = vsyncpa [#allocation5], 0
    %12 = vsyncpa [#allocation8], 0
    // Predicated region
    $region2: #{betavae_forward.1} parent=1 // pred_check
      _
    $region3: #{betavae_forward.1} parent=1 // pred_check_branch
      %14 = sbr.rel (0) target = $region5
    $region4: #{betavae_forward.1} parent=1 // pred_region
      _
    $region5: #{betavae_forward.1} parent=1 // pred_fallthru
      _
    // Predicated region
    $region6: #{betavae_forward.1} parent=1 // pred_check
      _
    $region7: #{betavae_forward.1} parent=1 // pred_check_branch
      %16 = sbr.rel (0) target = $region9
    $region8: #{betavae_forward.1} parent=1 // pred_region
      %s18 = ssub.s32 4992, 4992
      %19 = vsyncadd [#allocation3], %s18
      %s20 = sshll.u32 [#allocation2], 4
      %s21 = int_to_ptr.vmem [resolvable:$true] %s20
      %26 = dma.hbm_to_vmem [thread:$0]  %s1, 4992, %s21, [#allocation3], 64, 64, 4
    $region9: #{betavae_forward.1} parent=1 // pred_fallthru
      _
    // Predicated region
    $region10: #{betavae_forward.1} parent=1 // pred_check
      _
    $region11: #{betavae_forward.1} parent=1 // pred_check_branch
      %28 = sbr.rel (0) target = $region13
    $region12: #{betavae_forward.1} parent=1 // pred_region
      %s30 = ssub.s32 18432, 18432
      %31 = vsyncadd [#allocation5], %s30
      %s32 = sshll.u32 [#allocation4], 4
      %s33 = int_to_ptr.vmem [resolvable:$true] %s32
      %38 = dma.hbm_to_vmem [thread:$0]  %s2, 18432, %s33, [#allocation5], 128, 128, 8
    $region13: #{betavae_forward.1} parent=1 // pred_fallthru
      _
    // Predicated region
    $region14: #{betavae_forward.1} parent=1 // pred_check
      _
    $region15: #{betavae_forward.1} parent=1 // pred_check_branch
      %40 = sbr.rel (0) target = $region17
    $region16: #{betavae_forward.1} parent=1 // pred_region
      %s42 = ssub.s32 12288, 12288
      %43 = vsyncadd [#allocation5], %s42
      %s44 = sshll.u32 [#allocation6], 4
      %s45 = int_to_ptr.vmem [resolvable:$true] %s44
      %50 = dma.hbm_to_vmem [thread:$0]  %s3, 12288, %s45, [#allocation5], 256, 256, 16
    $region17: #{betavae_forward.1} parent=1 // pred_fallthru
      _
    // Predicated region
    $region18: #{betavae_forward.1} parent=1 // pred_check
      _
    $region19: #{betavae_forward.1} parent=1 // pred_check_branch
      %52 = sbr.rel (0) target = $region21
    $region20: #{betavae_forward.1} parent=1 // pred_region
      %s54 = ssub.s32 1536, 1536
      %55 = vsyncadd [#allocation8], %s54
      %s56 = sshll.u32 [#allocation7], 4
      %s57 = int_to_ptr.vmem [resolvable:$true] %s56
      %62 = dma.hbm_to_vmem [thread:$0]  %s4, 1536, %s57, [#allocation8], 512, 512, 32
    $region21: #{betavae_forward.1} parent=1 // pred_fallthru
      _
    // Predicated region
    $region22: #{betavae_forward.1} parent=1 // pred_check
      _
    $region23: #{betavae_forward.1} parent=1 // pred_check_branch
      %64 = sbr.rel (0) target = $region25
    $region24: #{betavae_forward.1} parent=1 // pred_region
      %65 = dma.done [#allocation3], 4992
    $region25: #{betavae_forward.1} parent=1 // pred_fallthru
      _
    // Predicated region
    $region26: #{betavae_forward.1} parent=1 // pred_check
      _
    $region27: #{betavae_forward.1} parent=1 // pred_check_branch
      %67 = sbr.rel (0) target = $region29
    $region28: #{betavae_forward.1} parent=1 // pred_region
      %68 = dma.done [#allocation5], 18432
    $region29: #{betavae_forward.1} parent=1 // pred_fallthru
      _
    // Predicated region
    $region30: #{betavae_forward.1} parent=1 // pred_check
      _
    $region31: #{betavae_forward.1} parent=1 // pred_check_branch
      %70 = sbr.rel (0) target = $region33
    $region32: #{betavae_forward.1} parent=1 // pred_region
      %71 = dma.done [#allocation5], 12288
    $region33: #{betavae_forward.1} parent=1 // pred_fallthru
      _
    // Predicated region
    $region34: #{betavae_forward.1} parent=1 // pred_check
      _
    $region35: #{betavae_forward.1} parent=1 // pred_check_branch
      %73 = sbr.rel (0) target = $region37
    $region36: #{betavae_forward.1} parent=1 // pred_region
      %74 = dma.done [#allocation8], 1536
    $region37: #{betavae_forward.1} parent=1 // pred_fallthru
      _
    %v76 = vld [vmem:[%s0] sm:$0xff]
    %v77 = vld [vmem:[#allocation2] sm:$0xf]
    %v78 = vld [vmem:[#allocation2 + $0x4] sm:$0xf]
    %v79 = vpack.c.bf16 %v76, %v76
    %v82 = vunpack.c.l.b16 %v77
    %v83 = vunpack.c.l.b16 %v78
    %v84 = vpack.c.b16 %v83, %v82
    %vm86 = vcmask 130048
    %v88 = vsel %vm86, %v79, 0
    %90 = vmatprep.subr.bf16.mxu0 0
    %91 = vmatpush1.bf16.msra.mxu0 %v84
    %92 = vmatprep.subr.bf16.mxu0 0
    %93 = vmatpush1.bf16.msra.mxu0 0
    %94 = vmatprep.subr.bf16.mxu0 0
    %95 = vmatpush1.bf16.msra.mxu0 0
    %96 = vmatprep.subr.bf16.mxu0 0
    %97 = vmatpush1.bf16.msra.mxu0 0
    %98 = vmatprep.subr.bf16.mxu0 0
    %99 = vmatpush1.bf16.msra.mxu0 0
    %100 = vmatprep.subr.bf16.mxu0 0
    %101 = vmatpush1.bf16.msra.mxu0 0
    %102 = vmatprep.subr.bf16.mxu0 0
    %103 = vmatpush1.bf16.msra.mxu0 0
    %104 = vmatprep.subr.bf16.mxu0 0
    %105 = vmatpush1.bf16.msra.mxu0 0
    %106 = vmatprep.subr.bf16.mxu0 0
    %107 = vmatpush1.bf16.msra.mxu0 0
    %108 = vmatprep.subr.bf16.mxu0 0
    %109 = vmatpush1.bf16.msra.mxu0 0
    %110 = vmatprep.subr.bf16.mxu0 0
    %111 = vmatpush1.bf16.msra.mxu0 0
    %112 = vmatprep.subr.bf16.mxu0 0
    %113 = vmatpush1.bf16.msra.mxu0 0
    %114 = vmatprep.subr.bf16.mxu0 0
    %115 = vmatpush1.bf16.msra.mxu0 0
    %116 = vmatprep.subr.bf16.mxu0 0
    %117 = vmatpush1.bf16.msra.mxu0 0
    %118 = vmatprep.subr.bf16.mxu0 0
    %119 = vmatpush1.bf16.msra.mxu0 0
    %120 = vmatprep.subr.bf16.mxu0 0
    %121 = vmatpush1.bf16.msra.mxu0 0
    %122 = vmatprep.mubr.bf16.mxu0 0
    %123 = vmatmul.mubr.bf16.gmra.mrb[0].mxu0 %v88
    %v124 = vpop.f32.mrb[0].mxu0
    %v125 = vadd.f32 0.0, %v124
    %v126 = vpop.f32.mrb[0].mxu0
    %v127 = vpop.f32.mrb[0].mxu0
    %v128 = vpop.f32.mrb[0].mxu0
    %129 = vdwg.mxu0
    %v130 = vld [vmem:[#allocation7] ss:$0 sm:$0xff]
    %v131 = vld [vmem:[#allocation7 + $0x22] ss:$0 sm:$0xff]
    %vm132 = vcmask 261120
    %v133 = vsel %vm132, %v125, 0.0
    %v134 = vrot.slane %v133, 4
    %v135 = vadd.f32 %v133, %v134
    %v136 = vrot.slane %v135, 2
    %v137 = vadd.f32 %v135, %v136
    %v138 = vrot.slane %v137, 1
    %v139 = vadd.f32 %v137, %v138
    %v140 = vrcp.pop 8.0
    %v141 = vmul.f32 %v139, %v140
    %v142 = vmul.f32 %v125, %v125
    %v143 = vsel %vm132, %v142, 0.0
    %v144 = vrot.slane %v143, 4
    %v145 = vadd.f32 %v143, %v144
    %v146 = vrot.slane %v145, 2
    %v147 = vadd.f32 %v145, %v146
    %v148 = vrot.slane %v147, 1
    %v149 = vadd.f32 %v147, %v148
    %v150 = vmul.f32 %v149, %v140
    %v151 = vmul.f32 %v141, %v141
    %v152 = vsub.f32 %v150, %v151
    %v153 = vmax.f32 %v152, 0.0
    %v154 = vsub.f32 %v125, %v141
    %v155 = vadd.f32 %v153, 1e-05
    %v156 = vrsqrt.pop %v155
    %v157 = vmul.f32 %v130, %v156
    %v158 = vmul.f32 %v154, %v157
    %v159 = vadd.f32 %v158, %v131
    %v160 = vmul.f32 %v159, 0.01
    %v161 = vmax.f32 %v159, %v160
    %v162 = vld [vmem:[#allocation2 + $0x8] sm:$0xf]
    %v163 = vld [vmem:[#allocation2 + $0xc] sm:$0xf]
    %v164 = vld [vmem:[#allocation2 + $0x10] sm:$0xf]
    %v165 = vld [vmem:[#allocation2 + $0x14] sm:$0xf]
    %v166 = vpack.c.bf16 %v161, %v161
    %v171 = vunpack.c.l.b16 %v162
    %v172 = vunpack.c.l.b16 %v163
    %v173 = vunpack.c.l.b16 %v164
    %v174 = vunpack.c.l.b16 %v165
    %v175 = vpack.c.b16 %v172, %v171
    %v176 = vpack.c.b16 %v174, %v173
    %v180 = vsel %vm132, %v166, 0
    %182 = vmatprep.subr.bf16.mxu0 0
    %183 = vmatpush1.bf16.msra.mxu0 %v175
    %184 = vmatprep.subr.bf16.mxu0 0
    %185 = vmatpush1.bf16.msra.mxu0 %v176
    %186 = vmatprep.subr.bf16.mxu0 0
    %187 = vmatpush1.bf16.msra.mxu0 0
    %188 = vmatprep.subr.bf16.mxu0 0
    %189 = vmatpush1.bf16.msra.mxu0 0
    %190 = vmatprep.subr.bf16.mxu0 0
    %191 = vmatpush1.bf16.msra.mxu0 0
    %192 = vmatprep.subr.bf16.mxu0 0
    %193 = vmatpush1.bf16.msra.mxu0 0
    %194 = vmatprep.subr.bf16.mxu0 0
    %195 = vmatpush1.bf16.msra.mxu0 0
    %196 = vmatprep.subr.bf16.mxu0 0
    %197 = vmatpush1.bf16.msra.mxu0 0
    %198 = vmatprep.subr.bf16.mxu0 0
    %199 = vmatpush1.bf16.msra.mxu0 0
    %200 = vmatprep.subr.bf16.mxu0 0
    %201 = vmatpush1.bf16.msra.mxu0 0
    %202 = vmatprep.subr.bf16.mxu0 0
    %203 = vmatpush1.bf16.msra.mxu0 0
    %204 = vmatprep.subr.bf16.mxu0 0
    %205 = vmatpush1.bf16.msra.mxu0 0
    %206 = vmatprep.subr.bf16.mxu0 0
    %207 = vmatpush1.bf16.msra.mxu0 0
    %208 = vmatprep.subr.bf16.mxu0 0
    %209 = vmatpush1.bf16.msra.mxu0 0
    %210 = vmatprep.subr.bf16.mxu0 0
    %211 = vmatpush1.bf16.msra.mxu0 0
    %212 = vmatprep.subr.bf16.mxu0 0
    %213 = vmatpush1.bf16.msra.mxu0 0
    %214 = vmatprep.mubr.bf16.mxu0 0
    %215 = vmatmul.mubr.bf16.gmra.mrb[0].mxu0 %v180
    %v216 = vpop.f32.mrb[0].mxu0
    %v217 = vadd.f32 0.0, %v216
    %v218 = vpop.f32.mrb[0].mxu0
    %v219 = vpop.f32.mrb[0].mxu0
    %v220 = vpop.f32.mrb[0].mxu0
    %221 = vdwg.mxu0
    %v222 = vld [vmem:[#allocation7 + $0x1] ss:$0 sm:$0xff]
    %v223 = vld [vmem:[#allocation7 + $0x23] ss:$0 sm:$0xff]
    %vm224 = vcmask 523264
    %v225 = vsel %vm224, %v217, 0.0
    %v226 = vrot.slane %v225, 4
    %v227 = vadd.f32 %v225, %v226
    %v228 = vrot.slane %v227, 2
    %v229 = vadd.f32 %v227, %v228
    %v230 = vrot.slane %v229, 1
    %v231 = vadd.f32 %v229, %v230
    %v232 = vmul.f32 %v231, %v140
    %v233 = vmul.f32 %v217, %v217
    %v234 = vsel %vm224, %v233, 0.0
    %v235 = vrot.slane %v234, 4
    %v236 = vadd.f32 %v234, %v235
    %v237 = vrot.slane %v236, 2
    %v238 = vadd.f32 %v236, %v237
    %v239 = vrot.slane %v238, 1
    %v240 = vadd.f32 %v238, %v239
    %v241 = vmul.f32 %v240, %v140
    %v242 = vmul.f32 %v232, %v232
    %v243 = vsub.f32 %v241, %v242
    %v244 = vmax.f32 %v243, 0.0
    %v245 = vsub.f32 %v217, %v232
    %v246 = vadd.f32 %v244, 1e-05
    %v247 = vrsqrt.pop %v246
    %v248 = vmul.f32 %v222, %v247
    %v249 = vmul.f32 %v245, %v248
    %v250 = vadd.f32 %v249, %v223
    %v251 = vmul.f32 %v250, 0.01
    %v252 = vmax.f32 %v250, %v251
    %v253 = vld [vmem:[#allocation2 + $0x18] sm:$0xf]
    %v254 = vld [vmem:[#allocation2 + $0x1c] sm:$0xf]
    %v255 = vld [vmem:[#allocation2 + $0x20] sm:$0xf]
    %v256 = vld [vmem:[#allocation2 + $0x24] sm:$0xf]
    %v257 = vld [vmem:[#allocation2 + $0x28] sm:$0xf]
    %v258 = vld [vmem:[#allocation2 + $0x2c] sm:$0xf]
    %v259 = vld [vmem:[#allocation2 + $0x30] sm:$0xf]
    %v260 = vld [vmem:[#allocation2 + $0x34] sm:$0xf]
    %v261 = vpack.c.bf16 %v252, %v252
    %v270 = vunpack.c.l.b16 %v253
    %v271 = vunpack.c.l.b16 %v254
    %v272 = vunpack.c.l.b16 %v255
    %v273 = vunpack.c.l.b16 %v256
    %v274 = vunpack.c.l.b16 %v257
    %v275 = vunpack.c.l.b16 %v258
    %v276 = vunpack.c.l.b16 %v259
    %v277 = vunpack.c.l.b16 %v260
    %v278 = vpack.c.b16 %v271, %v270
    %v279 = vpack.c.b16 %v273, %v272
    %v280 = vpack.c.b16 %v275, %v274
    %v281 = vpack.c.b16 %v277, %v276
    %v287 = vsel %vm224, %v261, 0
    %289 = vmatprep.subr.bf16.mxu0 0
    %290 = vmatpush1.bf16.msra.mxu0 %v278
    %291 = vmatprep.subr.bf16.mxu0 0
    %292 = vmatpush1.bf16.msra.mxu0 %v279
    %293 = vmatprep.subr.bf16.mxu0 0
    %294 = vmatpush1.bf16.msra.mxu0 %v280
    %295 = vmatprep.subr.bf16.mxu0 0
    %296 = vmatpush1.bf16.msra.mxu0 %v281
    %297 = vmatprep.subr.bf16.mxu0 0
    %298 = vmatpush1.bf16.msra.mxu0 0
    %299 = vmatprep.subr.bf16.mxu0 0
    %300 = vmatpush1.bf16.msra.mxu0 0
    %301 = vmatprep.subr.bf16.mxu0 0
    %302 = vmatpush1.bf16.msra.mxu0 0
    %303 = vmatprep.subr.bf16.mxu0 0
    %304 = vmatpush1.bf16.msra.mxu0 0
    %305 = vmatprep.subr.bf16.mxu0 0
    %306 = vmatpush1.bf16.msra.mxu0 0
    %307 = vmatprep.subr.bf16.mxu0 0
    %308 = vmatpush1.bf16.msra.mxu0 0
    %309 = vmatprep.subr.bf16.mxu0 0
    %310 = vmatpush1.bf16.msra.mxu0 0
    %311 = vmatprep.subr.bf16.mxu0 0
    %312 = vmatpush1.bf16.msra.mxu0 0
    %313 = vmatprep.subr.bf16.mxu0 0
    %314 = vmatpush1.bf16.msra.mxu0 0
    %315 = vmatprep.subr.bf16.mxu0 0
    %316 = vmatpush1.bf16.msra.mxu0 0
    %317 = vmatprep.subr.bf16.mxu0 0
    %318 = vmatpush1.bf16.msra.mxu0 0
    %319 = vmatprep.subr.bf16.mxu0 0
    %320 = vmatpush1.bf16.msra.mxu0 0
    %321 = vmatprep.mubr.bf16.mxu0 0
    %322 = vmatmul.mubr.bf16.gmra.mrb[0].mxu0 %v287
    %v323 = vpop.f32.mrb[0].mxu0
    %v324 = vadd.f32 0.0, %v323
    %v325 = vpop.f32.mrb[0].mxu0
    %v326 = vpop.f32.mrb[0].mxu0
    %v327 = vpop.f32.mrb[0].mxu0
    %328 = vdwg.mxu0
    %v329 = vld [vmem:[#allocation7 + $0x2] ss:$0 sm:$0xff]
    %v330 = vld [vmem:[#allocation7 + $0x24] ss:$0 sm:$0xff]
    %v331 = vrot.slane %v324, 4
    %v332 = vadd.f32 %v324, %v331
    %v333 = vrot.slane %v332, 2
    %v334 = vadd.f32 %v332, %v333
    %v335 = vrot.slane %v334, 1
    %v336 = vadd.f32 %v334, %v335
    %v337 = vmul.f32 %v336, %v140
    %v338 = vmul.f32 %v324, %v324
    %v339 = vrot.slane %v338, 4
    %v340 = vadd.f32 %v338, %v339
    %v341 = vrot.slane %v340, 2
    %v342 = vadd.f32 %v340, %v341
    %v343 = vrot.slane %v342, 1
    %v344 = vadd.f32 %v342, %v343
    %v345 = vmul.f32 %v344, %v140
    %v346 = vmul.f32 %v337, %v337
    %v347 = vsub.f32 %v345, %v346
    %v348 = vmax.f32 %v347, 0.0
    %v349 = vsub.f32 %v324, %v337
    %v350 = vadd.f32 %v348, 1e-05
    %v351 = vrsqrt.pop %v350
    %v352 = vmul.f32 %v329, %v351
    %v353 = vmul.f32 %v349, %v352
    %v354 = vadd.f32 %v353, %v330
    %v355 = vmul.f32 %v354, 0.01
    %v356 = vmax.f32 %v354, %v355
    %v357 = vld [vmem:[#allocation4] sm:$0xff]
    %v358 = vld [vmem:[#allocation4 + $0x8] sm:$0xff]
    %v359 = vld [vmem:[#allocation4 + $0x10] sm:$0xff]
    %v360 = vld [vmem:[#allocation4 + $0x18] sm:$0xff]
    %v361 = vld [vmem:[#allocation4 + $0x20] sm:$0xff]
    %v362 = vld [vmem:[#allocation4 + $0x28] sm:$0xff]
    %v363 = vld [vmem:[#allocation4 + $0x30] sm:$0xff]
    %v364 = vld [vmem:[#allocation4 + $0x38] sm:$0xff]
    %v365 = vld [vmem:[#allocation4 + $0x40] sm:$0xff]
    %v366 = vld [vmem:[#allocation4 + $0x48] sm:$0xff]
    %v367 = vld [vmem:[#allocation4 + $0x50] sm:$0xff]
    %v368 = vld [vmem:[#allocation4 + $0x58] sm:$0xff]
    %v369 = vld [vmem:[#allocation4 + $0x60] sm:$0xff]
    %v370 = vld [vmem:[#allocation4 + $0x68] sm:$0xff]
    %v371 = vld [vmem:[#allocation4 + $0x70] sm:$0xff]
    %v372 = vld [vmem:[#allocation4 + $0x78] sm:$0xff]
    %v373 = vpack.c.bf16 %v356, %v356
    %v390 = vunpack.c.l.b16 %v357
    %v391 = vunpack.c.h.b16 %v357
    %v392 = vunpack.c.l.b16 %v358
    %v393 = vunpack.c.h.b16 %v358
    %v394 = vunpack.c.l.b16 %v359
    %v395 = vunpack.c.h.b16 %v359
    %v396 = vunpack.c.l.b16 %v360
    %v397 = vunpack.c.h.b16 %v360
    %v398 = vunpack.c.l.b16 %v361
    %v399 = vunpack.c.h.b16 %v361
    %v400 = vunpack.c.l.b16 %v362
    %v401 = vunpack.c.h.b16 %v362
    %v402 = vunpack.c.l.b16 %v363
    %v403 = vunpack.c.h.b16 %v363
    %v404 = vunpack.c.l.b16 %v364
    %v405 = vunpack.c.h.b16 %v364
    %v406 = vunpack.c.l.b16 %v365
    %v407 = vunpack.c.h.b16 %v365
    %v408 = vunpack.c.l.b16 %v366
    %v409 = vunpack.c.h.b16 %v366
    %v410 = vunpack.c.l.b16 %v367
    %v411 = vunpack.c.h.b16 %v367
    %v412 = vunpack.c.l.b16 %v368
    %v413 = vunpack.c.h.b16 %v368
    %v414 = vunpack.c.l.b16 %v369
    %v415 = vunpack.c.h.b16 %v369
    %v416 = vunpack.c.l.b16 %v370
    %v417 = vunpack.c.h.b16 %v370
    %v418 = vunpack.c.l.b16 %v371
    %v419 = vunpack.c.h.b16 %v371
    %v420 = vunpack.c.l.b16 %v372
    %v421 = vunpack.c.h.b16 %v372
    %v422 = vpack.c.b16 %v392, %v390
    %v423 = vpack.c.b16 %v393, %v391
    %v424 = vpack.c.b16 %v396, %v394
    %v425 = vpack.c.b16 %v397, %v395
    %v426 = vpack.c.b16 %v400, %v398
    %v427 = vpack.c.b16 %v401, %v399
    %v428 = vpack.c.b16 %v404, %v402
    %v429 = vpack.c.b16 %v405, %v403
    %v430 = vpack.c.b16 %v408, %v406
    %v431 = vpack.c.b16 %v409, %v407
    %v432 = vpack.c.b16 %v412, %v410
    %v433 = vpack.c.b16 %v413, %v411
    %v434 = vpack.c.b16 %v416, %v414
    %v435 = vpack.c.b16 %v417, %v415
    %v436 = vpack.c.b16 %v420, %v418
    %v437 = vpack.c.b16 %v421, %v419
    %454 = vmatprep.subr.bf16.mxu0 %v423
    %455 = vmatpush1.bf16.msra.mxu0 %v422
    %456 = vmatprep.subr.bf16.mxu0 %v425
    %457 = vmatpush1.bf16.msra.mxu0 %v424
    %458 = vmatprep.subr.bf16.mxu0 %v427
    %459 = vmatpush1.bf16.msra.mxu0 %v426
    %460 = vmatprep.subr.bf16.mxu0 %v429
    %461 = vmatpush1.bf16.msra.mxu0 %v428
    %462 = vmatprep.subr.bf16.mxu0 %v431
    %463 = vmatpush1.bf16.msra.mxu0 %v430
    %464 = vmatprep.subr.bf16.mxu0 %v433
    %465 = vmatpush1.bf16.msra.mxu0 %v432
    %466 = vmatprep.subr.bf16.mxu0 %v435
    %467 = vmatpush1.bf16.msra.mxu0 %v434
    %468 = vmatprep.subr.bf16.mxu0 %v437
    %469 = vmatpush1.bf16.msra.mxu0 %v436
    %470 = vmatprep.subr.bf16.mxu0 0
    %471 = vmatpush1.bf16.msra.mxu0 0
    %472 = vmatprep.subr.bf16.mxu0 0
    %473 = vmatpush1.bf16.msra.mxu0 0
    %474 = vmatprep.subr.bf16.mxu0 0
    %475 = vmatpush1.bf16.msra.mxu0 0
    %476 = vmatprep.subr.bf16.mxu0 0
    %477 = vmatpush1.bf16.msra.mxu0 0
    %478 = vmatprep.subr.bf16.mxu0 0
    %479 = vmatpush1.bf16.msra.mxu0 0
    %480 = vmatprep.subr.bf16.mxu0 0
    %481 = vmatpush1.bf16.msra.mxu0 0
    %482 = vmatprep.subr.bf16.mxu0 0
    %483 = vmatpush1.bf16.msra.mxu0 0
    %484 = vmatprep.subr.bf16.mxu0 0
    %485 = vmatpush1.bf16.msra.mxu0 0
    %486 = vmatprep.mubr.bf16.mxu0 0
    %487 = vmatmul.mubr.bf16.gmra.mrb[0].mxu0 %v373
    %v488 = vpop.f32.mrb[0].mxu0
    %v489 = vadd.f32 0.0, %v488
    %v490 = vpop.f32.mrb[0].mxu0
    %v491 = vadd.f32 0.0, %v490
    %v492 = vpop.f32.mrb[0].mxu0
    %v493 = vpop.f32.mrb[0].mxu0
    %494 = vdwg.mxu0
    %s495 = scalar_lea.vmem [#allocation7], 3
    %v496 = vld [vmem:[%s495] ss:$8 sm:$0x3]
    %s497 = scalar_lea.vmem [#allocation7], 37
    %v498 = vld [vmem:[%s497] ss:$8 sm:$0x3]
    %v499 = vrot.slane %v489, 4
    %v500 = vadd.f32 %v489, %v499
    %v501 = vrot.slane %v500, 2
    %v502 = vadd.f32 %v500, %v501
    %v503 = vrot.slane %v502, 1
    %v504 = vadd.f32 %v502, %v503
    %v505 = vrot.slane %v491, 4
    %v506 = vadd.f32 %v491, %v505
    %v507 = vrot.slane %v506, 2
    %v508 = vadd.f32 %v506, %v507
    %v509 = vrot.slane %v508, 1
    %v510 = vadd.f32 %v508, %v509
    %v511 = vmul.f32 %v504, %v140
    %v512 = vmul.f32 %v510, %v140
    %v513 = vmul.f32 %v489, %v489
    %v514 = vmul.f32 %v491, %v491
    %v515 = vrot.slane %v513, 4
    %v516 = vadd.f32 %v513, %v515
    %v517 = vrot.slane %v516, 2
    %v518 = vadd.f32 %v516, %v517
    %v519 = vrot.slane %v518, 1
    %v520 = vadd.f32 %v518, %v519
    %v521 = vrot.slane %v514, 4
    %v522 = vadd.f32 %v514, %v521
    %v523 = vrot.slane %v522, 2
    %v524 = vadd.f32 %v522, %v523
    %v525 = vrot.slane %v524, 1
    %v526 = vadd.f32 %v524, %v525
    %v527 = vmul.f32 %v520, %v140
    %v528 = vmul.f32 %v526, %v140
    %v529 = vmul.f32 %v511, %v511
    %v530 = vmul.f32 %v512, %v512
    %v531 = vsub.f32 %v527, %v529
    %v532 = vsub.f32 %v528, %v530
    %v533 = vmax.f32 %v531, 0.0
    %v534 = vmax.f32 %v532, 0.0
    %v535 = vsub.f32 %v489, %v511
    %v536 = vsub.f32 %v491, %v512
    %v537 = vadd.f32 %v533, 1e-05
    %v538 = vadd.f32 %v534, 1e-05
    %v539 = vrsqrt.pop %v537
    %v540 = vrsqrt.pop %v538
    %v543 = vcombine.low %v539, %v540
    %v545 = vunpack.c.l.s4 1966171168
    %v546 = vunpack.c.0.s8 %v545
    %v547 = vlaneseq
    %v548 = vshrl.u32 %v547, 7
    %v549 = vsub.s32 %v546, %v548
    %v550 = vrot.slane %v543, %v549
    %v552 = vunpack.c.l.s4 1966171168
    %v553 = vunpack.c.0.s8 %v552
    %v554 = vlaneseq
    %v555 = vshrl.u32 %v554, 7
    %v556 = vsub.s32 %v553, %v555
    %v557 = vrot.slane %v550, %v556
    %v559 = vmul.f32 %v496, %v557
    %v561 = vlaneseq
    %v562 = vshrl.u32 %v561, 7
    %v563 = vsub.s32 0, %v562
    %v564 = vrot.slane %v559, %v563
    %v565 = vlaneseq
    %v566 = vshrl.u32 %v565, 7
    %v567 = vsub.s32 1, %v566
    %v568 = vrot.slane %v559, %v567
    %v571 = vmul.f32 %v535, %v564
    %v572 = vmul.f32 %v536, %v568
    %v574 = vlaneseq
    %v575 = vshrl.u32 %v574, 7
    %v576 = vsub.s32 0, %v575
    %v577 = vrot.slane %v498, %v576
    %v578 = vlaneseq
    %v579 = vshrl.u32 %v578, 7
    %v580 = vsub.s32 1, %v579
    %v581 = vrot.slane %v498, %v580
    %v584 = vadd.f32 %v571, %v577
    %v585 = vadd.f32 %v572, %v581
    %v586 = vmul.f32 %v584, 0.01
    %v587 = vmul.f32 %v585, 0.01
    %v588 = vmax.f32 %v584, %v586
    %v589 = vmax.f32 %v585, %v587
    %v590 = vld [vmem:[#allocation6] sm:$0xff]
    %v591 = vld [vmem:[#allocation6 + $0x8] sm:$0xff]
    %v592 = vld [vmem:[#allocation6 + $0x10] sm:$0xff]
    %v593 = vld [vmem:[#allocation6 + $0x18] sm:$0xff]
    %v594 = vld [vmem:[#allocation6 + $0x20] sm:$0xff]
    %v595 = vld [vmem:[#allocation6 + $0x28] sm:$0xff]
    %v596 = vld [vmem:[#allocation6 + $0x30] sm:$0xff]
    %v597 = vld [vmem:[#allocation6 + $0x38] sm:$0xff]
    %v598 = vld [vmem:[#allocation6 + $0x40] sm:$0xff]
    %v599 = vld [vmem:[#allocation6 + $0x48] sm:$0xff]
    %v600 = vld [vmem:[#allocation6 + $0x50] sm:$0xff]
    %v601 = vld [vmem:[#allocation6 + $0x58] sm:$0xff]
    %v602 = vld [vmem:[#allocation6 + $0x60] sm:$0xff]
    %v603 = vld [vmem:[#allocation6 + $0x68] sm:$0xff]
    %v604 = vld [vmem:[#allocation6 + $0x70] sm:$0xff]
    %v605 = vld [vmem:[#allocation6 + $0x78] sm:$0xff]
    %v606 = vld [vmem:[#allocation6 + $0x80] sm:$0xff]
    %v607 = vld [vmem:[#allocation6 + $0x88] sm:$0xff]
    %v608 = vld [vmem:[#allocation6 + $0x90] sm:$0xff]
    %v609 = vld [vmem:[#allocation6 + $0x98] sm:$0xff]
    %v610 = vld [vmem:[#allocation6 + $0xa0] sm:$0xff]
    %v611 = vld [vmem:[#allocation6 + $0xa8] sm:$0xff]
    %v612 = vld [vmem:[#allocation6 + $0xb0] sm:$0xff]
    %v613 = vld [vmem:[#allocation6 + $0xb8] sm:$0xff]
    %v614 = vld [vmem:[#allocation6 + $0xc0] sm:$0xff]
    %v615 = vld [vmem:[#allocation6 + $0xc8] sm:$0xff]
    %v616 = vld [vmem:[#allocation6 + $0xd0] sm:$0xff]
    %v617 = vld [vmem:[#allocation6 + $0xd8] sm:$0xff]
    %v618 = vld [vmem:[#allocation6 + $0xe0] sm:$0xff]
    %v619 = vld [vmem:[#allocation6 + $0xe8] sm:$0xff]
    %v620 = vld [vmem:[#allocation6 + $0xf0] sm:$0xff]
    %v621 = vld [vmem:[#allocation6 + $0xf8] sm:$0xff]
    %v622 = vld [vmem:[#allocation6 + $0x100] sm:$0xff]
    %v623 = vld [vmem:[#allocation6 + $0x108] sm:$0xff]
    %v624 = vld [vmem:[#allocation6 + $0x110] sm:$0xff]
    %v625 = vld [vmem:[#allocation6 + $0x118] sm:$0xff]
    %v626 = vld [vmem:[#allocation6 + $0x120] sm:$0xff]
    %v627 = vld [vmem:[#allocation6 + $0x128] sm:$0xff]
    %v628 = vld [vmem:[#allocation6 + $0x130] sm:$0xff]
    %v629 = vld [vmem:[#allocation6 + $0x138] sm:$0xff]
    %v630 = vld [vmem:[#allocation6 + $0x140] sm:$0xff]
    %v631 = vld [vmem:[#allocation6 + $0x148] sm:$0xff]
    %v632 = vld [vmem:[#allocation6 + $0x150] sm:$0xff]
    %v633 = vld [vmem:[#allocation6 + $0x158] sm:$0xff]
    %v634 = vld [vmem:[#allocation6 + $0x160] sm:$0xff]
    %v635 = vld [vmem:[#allocation6 + $0x168] sm:$0xff]
    %v636 = vld [vmem:[#allocation6 + $0x170] sm:$0xff]
    %v637 = vld [vmem:[#allocation6 + $0x178] sm:$0xff]
    %v638 = vld [vmem:[#allocation6 + $0x180] sm:$0xff]
    %v639 = vld [vmem:[#allocation6 + $0x188] sm:$0xff]
    %v640 = vld [vmem:[#allocation6 + $0x190] sm:$0xff]
    %v641 = vld [vmem:[#allocation6 + $0x198] sm:$0xff]
    %v642 = vld [vmem:[#allocation6 + $0x1a0] sm:$0xff]
    %v643 = vld [vmem:[#allocation6 + $0x1a8] sm:$0xff]
    %v644 = vld [vmem:[#allocation6 + $0x1b0] sm:$0xff]
    %v645 = vld [vmem:[#allocation6 + $0x1b8] sm:$0xff]
    %v646 = vld [vmem:[#allocation6 + $0x1c0] sm:$0xff]
    %v647 = vld [vmem:[#allocation6 + $0x1c8] sm:$0xff]
    %v648 = vld [vmem:[#allocation6 + $0x1d0] sm:$0xff]
    %v649 = vld [vmem:[#allocation6 + $0x1d8] sm:$0xff]
    %v650 = vld [vmem:[#allocation6 + $0x1e0] sm:$0xff]
    %v651 = vld [vmem:[#allocation6 + $0x1e8] sm:$0xff]
    %v652 = vld [vmem:[#allocation6 + $0x1f0] sm:$0xff]
    %v653 = vld [vmem:[#allocation6 + $0x1f8] sm:$0xff]
    %v654 = vpack.c.bf16 %v588, %v588
    %v655 = vpack.c.bf16 %v589, %v589
    %v720 = vunpack.c.l.b16 %v590
    %v721 = vunpack.c.h.b16 %v590
    %v722 = vunpack.c.l.b16 %v591
    %v723 = vunpack.c.h.b16 %v591
    %v724 = vunpack.c.l.b16 %v592
    %v725 = vunpack.c.h.b16 %v592
    %v726 = vunpack.c.l.b16 %v593
    %v727 = vunpack.c.h.b16 %v593
    %v728 = vunpack.c.l.b16 %v594
    %v729 = vunpack.c.h.b16 %v594
    %v730 = vunpack.c.l.b16 %v595
    %v731 = vunpack.c.h.b16 %v595
    %v732 = vunpack.c.l.b16 %v596
    %v733 = vunpack.c.h.b16 %v596
    %v734 = vunpack.c.l.b16 %v597
    %v735 = vunpack.c.h.b16 %v597
    %v736 = vunpack.c.l.b16 %v598
    %v737 = vunpack.c.h.b16 %v598
    %v738 = vunpack.c.l.b16 %v599
    %v739 = vunpack.c.h.b16 %v599
    %v740 = vunpack.c.l.b16 %v600
    %v741 = vunpack.c.h.b16 %v600
    %v742 = vunpack.c.l.b16 %v601
    %v743 = vunpack.c.h.b16 %v601
    %v744 = vunpack.c.l.b16 %v602
    %v745 = vunpack.c.h.b16 %v602
    %v746 = vunpack.c.l.b16 %v603
    %v747 = vunpack.c.h.b16 %v603
    %v748 = vunpack.c.l.b16 %v604
    %v749 = vunpack.c.h.b16 %v604
    %v750 = vunpack.c.l.b16 %v605
    %v751 = vunpack.c.h.b16 %v605
    %v752 = vunpack.c.l.b16 %v606
    %v753 = vunpack.c.h.b16 %v606
    %v754 = vunpack.c.l.b16 %v607
    %v755 = vunpack.c.h.b16 %v607
    %v756 = vunpack.c.l.b16 %v608
    %v757 = vunpack.c.h.b16 %v608
    %v758 = vunpack.c.l.b16 %v609
    %v759 = vunpack.c.h.b16 %v609
    %v760 = vunpack.c.l.b16 %v610
    %v761 = vunpack.c.h.b16 %v610
    %v762 = vunpack.c.l.b16 %v611
    %v763 = vunpack.c.h.b16 %v611
    %v764 = vunpack.c.l.b16 %v612
    %v765 = vunpack.c.h.b16 %v612
    %v766 = vunpack.c.l.b16 %v613
    %v767 = vunpack.c.h.b16 %v613
    %v768 = vunpack.c.l.b16 %v614
    %v769 = vunpack.c.h.b16 %v614
    %v770 = vunpack.c.l.b16 %v615
    %v771 = vunpack.c.h.b16 %v615
    %v772 = vunpack.c.l.b16 %v616
    %v773 = vunpack.c.h.b16 %v616
    %v774 = vunpack.c.l.b16 %v617
    %v775 = vunpack.c.h.b16 %v617
    %v776 = vunpack.c.l.b16 %v618
    %v777 = vunpack.c.h.b16 %v618
    %v778 = vunpack.c.l.b16 %v619
    %v779 = vunpack.c.h.b16 %v619
    %v780 = vunpack.c.l.b16 %v620
    %v781 = vunpack.c.h.b16 %v620
    %v782 = vunpack.c.l.b16 %v621
    %v783 = vunpack.c.h.b16 %v621
    %v784 = vunpack.c.l.b16 %v622
    %v785 = vunpack.c.h.b16 %v622
    %v786 = vunpack.c.l.b16 %v623
    %v787 = vunpack.c.h.b16 %v623
    %v788 = vunpack.c.l.b16 %v624
    %v789 = vunpack.c.h.b16 %v624
    %v790 = vunpack.c.l.b16 %v625
    %v791 = vunpack.c.h.b16 %v625
    %v792 = vunpack.c.l.b16 %v626
    %v793 = vunpack.c.h.b16 %v626
    %v794 = vunpack.c.l.b16 %v627
    %v795 = vunpack.c.h.b16 %v627
    %v796 = vunpack.c.l.b16 %v628
    %v797 = vunpack.c.h.b16 %v628
    %v798 = vunpack.c.l.b16 %v629
    %v799 = vunpack.c.h.b16 %v629
    %v800 = vunpack.c.l.b16 %v630
    %v801 = vunpack.c.h.b16 %v630
    %v802 = vunpack.c.l.b16 %v631
    %v803 = vunpack.c.h.b16 %v631
    %v804 = vunpack.c.l.b16 %v632
    %v805 = vunpack.c.h.b16 %v632
    %v806 = vunpack.c.l.b16 %v633
    %v807 = vunpack.c.h.b16 %v633
    %v808 = vunpack.c.l.b16 %v634
    %v809 = vunpack.c.h.b16 %v634
    %v810 = vunpack.c.l.b16 %v635
    %v811 = vunpack.c.h.b16 %v635
    %v812 = vunpack.c.l.b16 %v636
    %v813 = vunpack.c.h.b16 %v636
    %v814 = vunpack.c.l.b16 %v637
    %v815 = vunpack.c.h.b16 %v637
    %v816 = vunpack.c.l.b16 %v638
    %v817 = vunpack.c.h.b16 %v638
    %v818 = vunpack.c.l.b16 %v639
    %v819 = vunpack.c.h.b16 %v639
    %v820 = vunpack.c.l.b16 %v640
    %v821 = vunpack.c.h.b16 %v640
    %v822 = vunpack.c.l.b16 %v641
    %v823 = vunpack.c.h.b16 %v641
    %v824 = vunpack.c.l.b16 %v642
    %v825 = vunpack.c.h.b16 %v642
    %v826 = vunpack.c.l.b16 %v643
    %v827 = vunpack.c.h.b16 %v643
    %v828 = vunpack.c.l.b16 %v644
    %v829 = vunpack.c.h.b16 %v644
    %v830 = vunpack.c.l.b16 %v645
    %v831 = vunpack.c.h.b16 %v645
    %v832 = vunpack.c.l.b16 %v646
    %v833 = vunpack.c.h.b16 %v646
    %v834 = vunpack.c.l.b16 %v647
    %v835 = vunpack.c.h.b16 %v647
    %v836 = vunpack.c.l.b16 %v648
    %v837 = vunpack.c.h.b16 %v648
    %v838 = vunpack.c.l.b16 %v649
    %v839 = vunpack.c.h.b16 %v649
    %v840 = vunpack.c.l.b16 %v650
    %v841 = vunpack.c.h.b16 %v650
    %v842 = vunpack.c.l.b16 %v651
    %v843 = vunpack.c.h.b16 %v651
    %v844 = vunpack.c.l.b16 %v652
    %v845 = vunpack.c.h.b16 %v652
    %v846 = vunpack.c.l.b16 %v653
    %v847 = vunpack.c.h.b16 %v653
    %v848 = vpack.c.b16 %v724, %v720
    %v849 = vpack.c.b16 %v725, %v721
    %v850 = vpack.c.b16 %v726, %v722
    %v851 = vpack.c.b16 %v727, %v723
    %v852 = vpack.c.b16 %v732, %v728
    %v853 = vpack.c.b16 %v733, %v729
    %v854 = vpack.c.b16 %v734, %v730
    %v855 = vpack.c.b16 %v735, %v731
    %v856 = vpack.c.b16 %v740, %v736
    %v857 = vpack.c.b16 %v741, %v737
    %v858 = vpack.c.b16 %v742, %v738
    %v859 = vpack.c.b16 %v743, %v739
    %v860 = vpack.c.b16 %v748, %v744
    %v861 = vpack.c.b16 %v749, %v745
    %v862 = vpack.c.b16 %v750, %v746
    %v863 = vpack.c.b16 %v751, %v747
    %v864 = vpack.c.b16 %v756, %v752
    %v865 = vpack.c.b16 %v757, %v753
    %v866 = vpack.c.b16 %v758, %v754
    %v867 = vpack.c.b16 %v759, %v755
    %v868 = vpack.c.b16 %v764, %v760
    %v869 = vpack.c.b16 %v765, %v761
    %v870 = vpack.c.b16 %v766, %v762
    %v871 = vpack.c.b16 %v767, %v763
    %v872 = vpack.c.b16 %v772, %v768
    %v873 = vpack.c.b16 %v773, %v769
    %v874 = vpack.c.b16 %v774, %v770
    %v875 = vpack.c.b16 %v775, %v771
    %v876 = vpack.c.b16 %v780, %v776
    %v877 = vpack.c.b16 %v781, %v777
    %v878 = vpack.c.b16 %v782, %v778
    %v879 = vpack.c.b16 %v783, %v779
    %v880 = vpack.c.b16 %v788, %v784
    %v881 = vpack.c.b16 %v789, %v785
    %v882 = vpack.c.b16 %v790, %v786
    %v883 = vpack.c.b16 %v791, %v787
    %v884 = vpack.c.b16 %v796, %v792
    %v885 = vpack.c.b16 %v797, %v793
    %v886 = vpack.c.b16 %v798, %v794
    %v887 = vpack.c.b16 %v799, %v795
    %v888 = vpack.c.b16 %v804, %v800
    %v889 = vpack.c.b16 %v805, %v801
    %v890 = vpack.c.b16 %v806, %v802
    %v891 = vpack.c.b16 %v807, %v803
    %v892 = vpack.c.b16 %v812, %v808
    %v893 = vpack.c.b16 %v813, %v809
    %v894 = vpack.c.b16 %v814, %v810
    %v895 = vpack.c.b16 %v815, %v811
    %v896 = vpack.c.b16 %v820, %v816
    %v897 = vpack.c.b16 %v821, %v817
    %v898 = vpack.c.b16 %v822, %v818
    %v899 = vpack.c.b16 %v823, %v819
    %v900 = vpack.c.b16 %v828, %v824
    %v901 = vpack.c.b16 %v829, %v825
    %v902 = vpack.c.b16 %v830, %v826
    %v903 = vpack.c.b16 %v831, %v827
    %v904 = vpack.c.b16 %v836, %v832
    %v905 = vpack.c.b16 %v837, %v833
    %v906 = vpack.c.b16 %v838, %v834
    %v907 = vpack.c.b16 %v839, %v835
    %v908 = vpack.c.b16 %v844, %v840
    %v909 = vpack.c.b16 %v845, %v841
    %v910 = vpack.c.b16 %v846, %v842
    %v911 = vpack.c.b16 %v847, %v843
    %976 = vmatprep.subr.bf16.mxu0 %v849
    %977 = vmatpush1.bf16.msra.mxu0 %v848
    %978 = vmatprep.subr.bf16.mxu0 %v853
    %979 = vmatpush1.bf16.msra.mxu0 %v852
    %980 = vmatprep.subr.bf16.mxu0 %v857
    %981 = vmatpush1.bf16.msra.mxu0 %v856
    %982 = vmatprep.subr.bf16.mxu0 %v861
    %983 = vmatpush1.bf16.msra.mxu0 %v860
    %984 = vmatprep.subr.bf16.mxu0 %v865
    %985 = vmatpush1.bf16.msra.mxu0 %v864
    %986 = vmatprep.subr.bf16.mxu0 %v869
    %987 = vmatpush1.bf16.msra.mxu0 %v868
    %988 = vmatprep.subr.bf16.mxu0 %v873
    %989 = vmatpush1.bf16.msra.mxu0 %v872
    %990 = vmatprep.subr.bf16.mxu0 %v877
    %991 = vmatpush1.bf16.msra.mxu0 %v876
    %992 = vmatprep.subr.bf16.mxu0 %v881
    %993 = vmatpush1.bf16.msra.mxu0 %v880
    %994 = vmatprep.subr.bf16.mxu0 %v885
    %995 = vmatpush1.bf16.msra.mxu0 %v884
    %996 = vmatprep.subr.bf16.mxu0 %v889
    %997 = vmatpush1.bf16.msra.mxu0 %v888
    %998 = vmatprep.subr.bf16.mxu0 %v893
    %999 = vmatpush1.bf16.msra.mxu0 %v892
    %1000 = vmatprep.subr.bf16.mxu0 %v897
    %1001 = vmatpush1.bf16.msra.mxu0 %v896
    %1002 = vmatprep.subr.bf16.mxu0 %v901
    %1003 = vmatpush1.bf16.msra.mxu0 %v900
    %1004 = vmatprep.subr.bf16.mxu0 %v905
    %1005 = vmatpush1.bf16.msra.mxu0 %v904
    %1006 = vmatprep.subr.bf16.mxu0 %v909
    %1007 = vmatpush1.bf16.msra.mxu0 %v908
    %1008 = vmatprep.mubr.bf16.mxu0 %v655
    %1009 = vmatmul.mubr.bf16.gmra.mrb[0].mxu0 %v654
    %v1010 = vpop.f32.mrb[0].mxu0
    %v1011 = vadd.f32 0.0, %v1010
    %v1012 = vpop.f32.mrb[0].mxu0
    %v1013 = vadd.f32 0.0, %v1012
    %v1014 = vpop.f32.mrb[0].mxu0
    %v1015 = vpop.f32.mrb[0].mxu0
    %1016 = vdwg.mxu0
    %1017 = vmatprep.subr.bf16.mxu0 %v851
    %1018 = vmatpush1.bf16.msra.mxu0 %v850
    %1019 = vmatprep.subr.bf16.mxu0 %v855
    %1020 = vmatpush1.bf16.msra.mxu0 %v854
    %1021 = vmatprep.subr.bf16.mxu0 %v859
    %1022 = vmatpush1.bf16.msra.mxu0 %v858
    %1023 = vmatprep.subr.bf16.mxu0 %v863
    %1024 = vmatpush1.bf16.msra.mxu0 %v862
    %1025 = vmatprep.subr.bf16.mxu0 %v867
    %1026 = vmatpush1.bf16.msra.mxu0 %v866
    %1027 = vmatprep.subr.bf16.mxu0 %v871
    %1028 = vmatpush1.bf16.msra.mxu0 %v870
    %1029 = vmatprep.subr.bf16.mxu0 %v875
    %1030 = vmatpush1.bf16.msra.mxu0 %v874
    %1031 = vmatprep.subr.bf16.mxu0 %v879
    %1032 = vmatpush1.bf16.msra.mxu0 %v878
    %1033 = vmatprep.subr.bf16.mxu0 %v883
    %1034 = vmatpush1.bf16.msra.mxu0 %v882
    %1035 = vmatprep.subr.bf16.mxu0 %v887
    %1036 = vmatpush1.bf16.msra.mxu0 %v886
    %1037 = vmatprep.subr.bf16.mxu0 %v891
    %1038 = vmatpush1.bf16.msra.mxu0 %v890
    %1039 = vmatprep.subr.bf16.mxu0 %v895
    %1040 = vmatpush1.bf16.msra.mxu0 %v894
    %1041 = vmatprep.subr.bf16.mxu0 %v899
    %1042 = vmatpush1.bf16.msra.mxu0 %v898
    %1043 = vmatprep.subr.bf16.mxu0 %v903
    %1044 = vmatpush1.bf16.msra.mxu0 %v902
    %1045 = vmatprep.subr.bf16.mxu0 %v907
    %1046 = vmatpush1.bf16.msra.mxu0 %v906
    %1047 = vmatprep.subr.bf16.mxu0 %v911
    %1048 = vmatpush1.bf16.msra.mxu0 %v910
    %1049 = vmatprep.mubr.bf16.mxu0 %v655
    %1050 = vmatmul.mubr.bf16.gmra.mrb[0].mxu0 %v654
    %v1051 = vpop.f32.mrb[0].mxu0
    %v1052 = vadd.f32 0.0, %v1051
    %v1053 = vpop.f32.mrb[0].mxu0
    %v1054 = vadd.f32 0.0, %v1053
    %v1055 = vpop.f32.mrb[0].mxu0
    %v1056 = vpop.f32.mrb[0].mxu0
    %1057 = vdwg.mxu0
    %s1058 = scalar_lea.vmem [#allocation7], 4
    %v1059 = vld [vmem:[%s1058] ss:$8 sm:$0xf]
    %s1060 = scalar_lea.vmem [#allocation7], 38
    %v1061 = vld [vmem:[%s1060] ss:$8 sm:$0xf]
    %v1062 = vrot.slane %v1011, 4
    %v1063 = vadd.f32 %v1011, %v1062
    %v1064 = vrot.slane %v1063, 2
    %v1065 = vadd.f32 %v1063, %v1064
    %v1066 = vrot.slane %v1065, 1
    %v1067 = vadd.f32 %v1065, %v1066
    %v1068 = vrot.slane %v1013, 4
    %v1069 = vadd.f32 %v1013, %v1068
    %v1070 = vrot.slane %v1069, 2
    %v1071 = vadd.f32 %v1069, %v1070
    %v1072 = vrot.slane %v1071, 1
    %v1073 = vadd.f32 %v1071, %v1072
    %v1074 = vrot.slane %v1052, 4
    %v1075 = vadd.f32 %v1052, %v1074
    %v1076 = vrot.slane %v1075, 2
    %v1077 = vadd.f32 %v1075, %v1076
    %v1078 = vrot.slane %v1077, 1
    %v1079 = vadd.f32 %v1077, %v1078
    %v1080 = vrot.slane %v1054, 4
    %v1081 = vadd.f32 %v1054, %v1080
    %v1082 = vrot.slane %v1081, 2
    %v1083 = vadd.f32 %v1081, %v1082
    %v1084 = vrot.slane %v1083, 1
    %v1085 = vadd.f32 %v1083, %v1084
    %v1086 = vmul.f32 %v1067, %v140
    %v1087 = vmul.f32 %v1073, %v140
    %v1088 = vmul.f32 %v1079, %v140
    %v1089 = vmul.f32 %v1085, %v140
    %v1090 = vmul.f32 %v1011, %v1011
    %v1091 = vmul.f32 %v1013, %v1013
    %v1092 = vmul.f32 %v1052, %v1052
    %v1093 = vmul.f32 %v1054, %v1054
    %v1094 = vrot.slane %v1090, 4
    %v1095 = vadd.f32 %v1090, %v1094
    %v1096 = vrot.slane %v1095, 2
    %v1097 = vadd.f32 %v1095, %v1096
    %v1098 = vrot.slane %v1097, 1
    %v1099 = vadd.f32 %v1097, %v1098
    %v1100 = vrot.slane %v1091, 4
    %v1101 = vadd.f32 %v1091, %v1100
    %v1102 = vrot.slane %v1101, 2
    %v1103 = vadd.f32 %v1101, %v1102
    %v1104 = vrot.slane %v1103, 1
    %v1105 = vadd.f32 %v1103, %v1104
    %v1106 = vrot.slane %v1092, 4
    %v1107 = vadd.f32 %v1092, %v1106
    %v1108 = vrot.slane %v1107, 2
    %v1109 = vadd.f32 %v1107, %v1108
    %v1110 = vrot.slane %v1109, 1
    %v1111 = vadd.f32 %v1109, %v1110
    %v1112 = vrot.slane %v1093, 4
    %v1113 = vadd.f32 %v1093, %v1112
    %v1114 = vrot.slane %v1113, 2
    %v1115 = vadd.f32 %v1113, %v1114
    %v1116 = vrot.slane %v1115, 1
    %v1117 = vadd.f32 %v1115, %v1116
    %v1118 = vmul.f32 %v1099, %v140
    %v1119 = vmul.f32 %v1105, %v140
    %v1120 = vmul.f32 %v1111, %v140
    %v1121 = vmul.f32 %v1117, %v140
    %v1122 = vmul.f32 %v1086, %v1086
    %v1123 = vmul.f32 %v1087, %v1087
    %v1124 = vmul.f32 %v1088, %v1088
    %v1125 = vmul.f32 %v1089, %v1089
    %v1126 = vsub.f32 %v1118, %v1122
    %v1127 = vsub.f32 %v1119, %v1123
    %v1128 = vsub.f32 %v1120, %v1124
    %v1129 = vsub.f32 %v1121, %v1125
    %v1130 = vmax.f32 %v1126, 0.0
    %v1131 = vmax.f32 %v1127, 0.0
    %v1132 = vmax.f32 %v1128, 0.0
    %v1133 = vmax.f32 %v1129, 0.0
    %v1134 = vsub.f32 %v1011, %v1086
    %v1135 = vsub.f32 %v1013, %v1087
    %v1136 = vsub.f32 %v1052, %v1088
    %v1137 = vsub.f32 %v1054, %v1089
    %v1138 = vadd.f32 %v1130, 1e-05
    %v1139 = vadd.f32 %v1131, 1e-05
    %v1140 = vadd.f32 %v1132, 1e-05
    %v1141 = vadd.f32 %v1133, 1e-05
    %v1142 = vrsqrt.pop %v1138
    %v1143 = vrsqrt.pop %v1139
    %v1144 = vrsqrt.pop %v1140
    %v1145 = vrsqrt.pop %v1141
    %v1150 = vcombine.low %v1142, %v1143
    %v1151 = vcombine.low %v1144, %v1145
    %v1153 = vunpack.c.l.s4 1966171168
    %v1154 = vunpack.c.0.s8 %v1153
    %v1155 = vlaneseq
    %v1156 = vshrl.u32 %v1155, 7
    %v1157 = vsub.s32 %v1154, %v1156
    %v1158 = vrot.slane %v1150, %v1157
    %v1160 = vunpack.c.l.s4 1966171168
    %v1161 = vunpack.c.0.s8 %v1160
    %v1162 = vlaneseq
    %v1163 = vshrl.u32 %v1162, 7
    %v1164 = vsub.s32 %v1161, %v1163
    %v1165 = vrot.slane %v1151, %v1164
    %v1166 = vcombine.low %v1158, %v1165
    %v1168 = vunpack.c.l.s4 1966171168
    %v1169 = vunpack.c.0.s8 %v1168
    %v1170 = vlaneseq
    %v1171 = vshrl.u32 %v1170, 7
    %v1172 = vsub.s32 %v1169, %v1171
    %v1173 = vrot.slane %v1166, %v1172
    %v1175 = vmul.f32 %v1059, %v1173
    %v1177 = vlaneseq
    %v1178 = vshrl.u32 %v1177, 7
    %v1179 = vsub.s32 0, %v1178
    %v1180 = vrot.slane %v1175, %v1179
    %v1181 = vlaneseq
    %v1182 = vshrl.u32 %v1181, 7
    %v1183 = vsub.s32 1, %v1182
    %v1184 = vrot.slane %v1175, %v1183
    %v1185 = vlaneseq
    %v1186 = vshrl.u32 %v1185, 7
    %v1187 = vsub.s32 2, %v1186
    %v1188 = vrot.slane %v1175, %v1187
    %v1189 = vlaneseq
    %v1190 = vshrl.u32 %v1189, 7
    %v1191 = vsub.s32 3, %v1190
    %v1192 = vrot.slane %v1175, %v1191
    %v1197 = vmul.f32 %v1134, %v1180
    %v1198 = vmul.f32 %v1135, %v1184
    %v1199 = vmul.f32 %v1136, %v1188
    %v1200 = vmul.f32 %v1137, %v1192
    %v1202 = vlaneseq
    %v1203 = vshrl.u32 %v1202, 7
    %v1204 = vsub.s32 0, %v1203
    %v1205 = vrot.slane %v1061, %v1204
    %v1206 = vlaneseq
    %v1207 = vshrl.u32 %v1206, 7
    %v1208 = vsub.s32 1, %v1207
    %v1209 = vrot.slane %v1061, %v1208
    %v1210 = vlaneseq
    %v1211 = vshrl.u32 %v1210, 7
    %v1212 = vsub.s32 2, %v1211
    %v1213 = vrot.slane %v1061, %v1212
    %v1214 = vlaneseq
    %v1215 = vshrl.u32 %v1214, 7
    %v1216 = vsub.s32 3, %v1215
    %v1217 = vrot.slane %v1061, %v1216
    %v1222 = vadd.f32 %v1197, %v1205
    %v1223 = vadd.f32 %v1198, %v1209
    %v1224 = vadd.f32 %v1199, %v1213
    %v1225 = vadd.f32 %v1200, %v1217
    %v1226 = vmul.f32 %v1222, 0.01
    %v1227 = vmul.f32 %v1223, 0.01
    %v1228 = vmul.f32 %v1224, 0.01
    %v1229 = vmul.f32 %v1225, 0.01
    %v1230 = vmax.f32 %v1222, %v1226
    %v1231 = vmax.f32 %v1223, %v1227
    %v1232 = vmax.f32 %v1224, %v1228
    %v1233 = vmax.f32 %v1225, %v1229
    %v1234 = vld [vmem:[#allocation4 + $0x80] sm:$0xff]
    %v1235 = vld [vmem:[#allocation4 + $0x88] sm:$0xff]
    %v1236 = vld [vmem:[#allocation4 + $0x90] sm:$0xff]
    %v1237 = vld [vmem:[#allocation4 + $0x98] sm:$0xff]
    %v1238 = vld [vmem:[#allocation4 + $0xa0] sm:$0xff]
    %v1239 = vld [vmem:[#allocation4 + $0xa8] sm:$0xff]
    %v1240 = vld [vmem:[#allocation4 + $0xb0] sm:$0xff]
    %v1241 = vld [vmem:[#allocation4 + $0xb8] sm:$0xff]
    %v1242 = vld [vmem:[#allocation4 + $0xc0] sm:$0xff]
    %v1243 = vld [vmem:[#allocation4 + $0xc8] sm:$0xff]
    %v1244 = vld [vmem:[#allocation4 + $0xd0] sm:$0xff]
    %v1245 = vld [vmem:[#allocation4 + $0xd8] sm:$0xff]
    %v1246 = vld [vmem:[#allocation4 + $0xe0] sm:$0xff]
    %v1247 = vld [vmem:[#allocation4 + $0xe8] sm:$0xff]
    %v1248 = vld [vmem:[#allocation4 + $0xf0] sm:$0xff]
    %v1249 = vld [vmem:[#allocation4 + $0xf8] sm:$0xff]
    %v1250 = vld [vmem:[#allocation4 + $0x100] sm:$0xff]
    %v1251 = vld [vmem:[#allocation4 + $0x108] sm:$0xff]
    %v1252 = vld [vmem:[#allocation4 + $0x110] sm:$0xff]
    %v1253 = vld [vmem:[#allocation4 + $0x118] sm:$0xff]
    %v1254 = vld [vmem:[#allocation4 + $0x120] sm:$0xff]
    %v1255 = vld [vmem:[#allocation4 + $0x128] sm:$0xff]
    %v1256 = vld [vmem:[#allocation4 + $0x130] sm:$0xff]
    %v1257 = vld [vmem:[#allocation4 + $0x138] sm:$0xff]
    %v1258 = vld [vmem:[#allocation4 + $0x140] sm:$0xff]
    %v1259 = vld [vmem:[#allocation4 + $0x148] sm:$0xff]
    %v1260 = vld [vmem:[#allocation4 + $0x150] sm:$0xff]
    %v1261 = vld [vmem:[#allocation4 + $0x158] sm:$0xff]
    %v1262 = vld [vmem:[#allocation4 + $0x160] sm:$0xff]
    %v1263 = vld [vmem:[#allocation4 + $0x168] sm:$0xff]
    %v1264 = vld [vmem:[#allocation4 + $0x170] sm:$0xff]
    %v1265 = vld [vmem:[#allocation4 + $0x178] sm:$0xff]
    %v1266 = vld [vmem:[#allocation4 + $0x180] sm:$0xff]
    %v1267 = vld [vmem:[#allocation4 + $0x188] sm:$0xff]
    %v1268 = vld [vmem:[#allocation4 + $0x190] sm:$0xff]
    %v1269 = vld [vmem:[#allocation4 + $0x198] sm:$0xff]
    %v1270 = vld [vmem:[#allocation4 + $0x1a0] sm:$0xff]
    %v1271 = vld [vmem:[#allocation4 + $0x1a8] sm:$0xff]
    %v1272 = vld [vmem:[#allocation4 + $0x1b0] sm:$0xff]
    %v1273 = vld [vmem:[#allocation4 + $0x1b8] sm:$0xff]
    %v1274 = vld [vmem:[#allocation4 + $0x1c0] sm:$0xff]
    %v1275 = vld [vmem:[#allocation4 + $0x1c8] sm:$0xff]
    %v1276 = vld [vmem:[#allocation4 + $0x1d0] sm:$0xff]
    %v1277 = vld [vmem:[#allocation4 + $0x1d8] sm:$0xff]
    %v1278 = vld [vmem:[#allocation4 + $0x1e0] sm:$0xff]
    %v1279 = vld [vmem:[#allocation4 + $0x1e8] sm:$0xff]
    %v1280 = vld [vmem:[#allocation4 + $0x1f0] sm:$0xff]
    %v1281 = vld [vmem:[#allocation4 + $0x1f8] sm:$0xff]
    %v1282 = vld [vmem:[#allocation4 + $0x200] sm:$0xff]
    %v1283 = vld [vmem:[#allocation4 + $0x208] sm:$0xff]
    %v1284 = vld [vmem:[#allocation4 + $0x210] sm:$0xff]
    %v1285 = vld [vmem:[#allocation4 + $0x218] sm:$0xff]
    %v1286 = vld [vmem:[#allocation4 + $0x220] sm:$0xff]
    %v1287 = vld [vmem:[#allocation4 + $0x228] sm:$0xff]
    %v1288 = vld [vmem:[#allocation4 + $0x230] sm:$0xff]
    %v1289 = vld [vmem:[#allocation4 + $0x238] sm:$0xff]
    %v1290 = vld [vmem:[#allocation4 + $0x240] sm:$0xff]
    %v1291 = vld [vmem:[#allocation4 + $0x248] sm:$0xff]
    %v1292 = vld [vmem:[#allocation4 + $0x250] sm:$0xff]
    %v1293 = vld [vmem:[#allocation4 + $0x258] sm:$0xff]
    %v1294 = vld [vmem:[#allocation4 + $0x260] sm:$0xff]
    %v1295 = vld [vmem:[#allocation4 + $0x268] sm:$0xff]
    %v1296 = vld [vmem:[#allocation4 + $0x270] sm:$0xff]
    %v1297 = vld [vmem:[#allocation4 + $0x278] sm:$0xff]
    %v1298 = vpack.c.bf16 %v1230, %v1230
    %v1299 = vpack.c.bf16 %v1231, %v1231
    %v1300 = vpack.c.bf16 %v1232, %v1232
    %v1301 = vpack.c.bf16 %v1233, %v1233
    %s1302 = scalar_lea.vmem [#allocation7], 68
    %v1303 = vld [vmem:[%s1302] ss:$8 sm:$0x3]
    %v1305 = vlaneseq
    %v1306 = vshrl.u32 %v1305, 7
    %v1307 = vsub.s32 0, %v1306
    %v1308 = vrot.slane %v1303, %v1307
    %v1309 = vlaneseq
    %v1310 = vshrl.u32 %v1309, 7
    %v1311 = vsub.s32 1, %v1310
    %v1312 = vrot.slane %v1303, %v1311
    %v1379 = vunpack.c.l.b16 %v1234
    %v1380 = vunpack.c.h.b16 %v1234
    %v1381 = vunpack.c.l.b16 %v1235
    %v1382 = vunpack.c.h.b16 %v1235
    %v1383 = vunpack.c.l.b16 %v1236
    %v1384 = vunpack.c.h.b16 %v1236
    %v1385 = vunpack.c.l.b16 %v1237
    %v1386 = vunpack.c.h.b16 %v1237
    %v1387 = vunpack.c.l.b16 %v1238
    %v1388 = vunpack.c.h.b16 %v1238
    %v1389 = vunpack.c.l.b16 %v1239
    %v1390 = vunpack.c.h.b16 %v1239
    %v1391 = vunpack.c.l.b16 %v1240
    %v1392 = vunpack.c.h.b16 %v1240
    %v1393 = vunpack.c.l.b16 %v1241
    %v1394 = vunpack.c.h.b16 %v1241
    %v1395 = vunpack.c.l.b16 %v1242
    %v1396 = vunpack.c.h.b16 %v1242
    %v1397 = vunpack.c.l.b16 %v1243
    %v1398 = vunpack.c.h.b16 %v1243
    %v1399 = vunpack.c.l.b16 %v1244
    %v1400 = vunpack.c.h.b16 %v1244
    %v1401 = vunpack.c.l.b16 %v1245
    %v1402 = vunpack.c.h.b16 %v1245
    %v1403 = vunpack.c.l.b16 %v1246
    %v1404 = vunpack.c.h.b16 %v1246
    %v1405 = vunpack.c.l.b16 %v1247
    %v1406 = vunpack.c.h.b16 %v1247
    %v1407 = vunpack.c.l.b16 %v1248
    %v1408 = vunpack.c.h.b16 %v1248
    %v1409 = vunpack.c.l.b16 %v1249
    %v1410 = vunpack.c.h.b16 %v1249
    %v1411 = vunpack.c.l.b16 %v1250
    %v1412 = vunpack.c.h.b16 %v1250
    %v1413 = vunpack.c.l.b16 %v1251
    %v1414 = vunpack.c.h.b16 %v1251
    %v1415 = vunpack.c.l.b16 %v1252
    %v1416 = vunpack.c.h.b16 %v1252
    %v1417 = vunpack.c.l.b16 %v1253
    %v1418 = vunpack.c.h.b16 %v1253
    %v1419 = vunpack.c.l.b16 %v1254
    %v1420 = vunpack.c.h.b16 %v1254
    %v1421 = vunpack.c.l.b16 %v1255
    %v1422 = vunpack.c.h.b16 %v1255
    %v1423 = vunpack.c.l.b16 %v1256
    %v1424 = vunpack.c.h.b16 %v1256
    %v1425 = vunpack.c.l.b16 %v1257
    %v1426 = vunpack.c.h.b16 %v1257
    %v1427 = vunpack.c.l.b16 %v1258
    %v1428 = vunpack.c.h.b16 %v1258
    %v1429 = vunpack.c.l.b16 %v1259
    %v1430 = vunpack.c.h.b16 %v1259
    %v1431 = vunpack.c.l.b16 %v1260
    %v1432 = vunpack.c.h.b16 %v1260
    %v1433 = vunpack.c.l.b16 %v1261
    %v1434 = vunpack.c.h.b16 %v1261
    %v1435 = vunpack.c.l.b16 %v1262
    %v1436 = vunpack.c.h.b16 %v1262
    %v1437 = vunpack.c.l.b16 %v1263
    %v1438 = vunpack.c.h.b16 %v1263
    %v1439 = vunpack.c.l.b16 %v1264
    %v1440 = vunpack.c.h.b16 %v1264
    %v1441 = vunpack.c.l.b16 %v1265
    %v1442 = vunpack.c.h.b16 %v1265
    %v1443 = vunpack.c.l.b16 %v1266
    %v1444 = vunpack.c.h.b16 %v1266
    %v1445 = vunpack.c.l.b16 %v1267
    %v1446 = vunpack.c.h.b16 %v1267
    %v1447 = vunpack.c.l.b16 %v1268
    %v1448 = vunpack.c.h.b16 %v1268
    %v1449 = vunpack.c.l.b16 %v1269
    %v1450 = vunpack.c.h.b16 %v1269
    %v1451 = vunpack.c.l.b16 %v1270
    %v1452 = vunpack.c.h.b16 %v1270
    %v1453 = vunpack.c.l.b16 %v1271
    %v1454 = vunpack.c.h.b16 %v1271
    %v1455 = vunpack.c.l.b16 %v1272
    %v1456 = vunpack.c.h.b16 %v1272
    %v1457 = vunpack.c.l.b16 %v1273
    %v1458 = vunpack.c.h.b16 %v1273
    %v1459 = vunpack.c.l.b16 %v1274
    %v1460 = vunpack.c.h.b16 %v1274
    %v1461 = vunpack.c.l.b16 %v1275
    %v1462 = vunpack.c.h.b16 %v1275
    %v1463 = vunpack.c.l.b16 %v1276
    %v1464 = vunpack.c.h.b16 %v1276
    %v1465 = vunpack.c.l.b16 %v1277
    %v1466 = vunpack.c.h.b16 %v1277
    %v1467 = vunpack.c.l.b16 %v1278
    %v1468 = vunpack.c.h.b16 %v1278
    %v1469 = vunpack.c.l.b16 %v1279
    %v1470 = vunpack.c.h.b16 %v1279
    %v1471 = vunpack.c.l.b16 %v1280
    %v1472 = vunpack.c.h.b16 %v1280
    %v1473 = vunpack.c.l.b16 %v1281
    %v1474 = vunpack.c.h.b16 %v1281
    %v1475 = vunpack.c.l.b16 %v1282
    %v1476 = vunpack.c.h.b16 %v1282
    %v1477 = vunpack.c.l.b16 %v1283
    %v1478 = vunpack.c.h.b16 %v1283
    %v1479 = vunpack.c.l.b16 %v1284
    %v1480 = vunpack.c.h.b16 %v1284
    %v1481 = vunpack.c.l.b16 %v1285
    %v1482 = vunpack.c.h.b16 %v1285
    %v1483 = vunpack.c.l.b16 %v1286
    %v1484 = vunpack.c.h.b16 %v1286
    %v1485 = vunpack.c.l.b16 %v1287
    %v1486 = vunpack.c.h.b16 %v1287
    %v1487 = vunpack.c.l.b16 %v1288
    %v1488 = vunpack.c.h.b16 %v1288
    %v1489 = vunpack.c.l.b16 %v1289
    %v1490 = vunpack.c.h.b16 %v1289
    %v1491 = vunpack.c.l.b16 %v1290
    %v1492 = vunpack.c.h.b16 %v1290
    %v1493 = vunpack.c.l.b16 %v1291
    %v1494 = vunpack.c.h.b16 %v1291
    %v1495 = vunpack.c.l.b16 %v1292
    %v1496 = vunpack.c.h.b16 %v1292
    %v1497 = vunpack.c.l.b16 %v1293
    %v1498 = vunpack.c.h.b16 %v1293
    %v1499 = vunpack.c.l.b16 %v1294
    %v1500 = vunpack.c.h.b16 %v1294
    %v1501 = vunpack.c.l.b16 %v1295
    %v1502 = vunpack.c.h.b16 %v1295
    %v1503 = vunpack.c.l.b16 %v1296
    %v1504 = vunpack.c.h.b16 %v1296
    %v1505 = vunpack.c.l.b16 %v1297
    %v1506 = vunpack.c.h.b16 %v1297
    %v1507 = vpack.c.b16 %v1381, %v1379
    %v1508 = vpack.c.b16 %v1382, %v1380
    %v1509 = vpack.c.b16 %v1385, %v1383
    %v1510 = vpack.c.b16 %v1386, %v1384
    %v1511 = vpack.c.b16 %v1389, %v1387
    %v1512 = vpack.c.b16 %v1390, %v1388
    %v1513 = vpack.c.b16 %v1393, %v1391
    %v1514 = vpack.c.b16 %v1394, %v1392
    %v1515 = vpack.c.b16 %v1397, %v1395
    %v1516 = vpack.c.b16 %v1398, %v1396
    %v1517 = vpack.c.b16 %v1401, %v1399
    %v1518 = vpack.c.b16 %v1402, %v1400
    %v1519 = vpack.c.b16 %v1405, %v1403
    %v1520 = vpack.c.b16 %v1406, %v1404
    %v1521 = vpack.c.b16 %v1409, %v1407
    %v1522 = vpack.c.b16 %v1410, %v1408
    %v1523 = vpack.c.b16 %v1413, %v1411
    %v1524 = vpack.c.b16 %v1414, %v1412
    %v1525 = vpack.c.b16 %v1417, %v1415
    %v1526 = vpack.c.b16 %v1418, %v1416
    %v1527 = vpack.c.b16 %v1421, %v1419
    %v1528 = vpack.c.b16 %v1422, %v1420
    %v1529 = vpack.c.b16 %v1425, %v1423
    %v1530 = vpack.c.b16 %v1426, %v1424
    %v1531 = vpack.c.b16 %v1429, %v1427
    %v1532 = vpack.c.b16 %v1430, %v1428
    %v1533 = vpack.c.b16 %v1433, %v1431
    %v1534 = vpack.c.b16 %v1434, %v1432
    %v1535 = vpack.c.b16 %v1437, %v1435
    %v1536 = vpack.c.b16 %v1438, %v1436
    %v1537 = vpack.c.b16 %v1441, %v1439
    %v1538 = vpack.c.b16 %v1442, %v1440
    %v1539 = vpack.c.b16 %v1445, %v1443
    %v1540 = vpack.c.b16 %v1446, %v1444
    %v1541 = vpack.c.b16 %v1449, %v1447
    %v1542 = vpack.c.b16 %v1450, %v1448
    %v1543 = vpack.c.b16 %v1453, %v1451
    %v1544 = vpack.c.b16 %v1454, %v1452
    %v1545 = vpack.c.b16 %v1457, %v1455
    %v1546 = vpack.c.b16 %v1458, %v1456
    %v1547 = vpack.c.b16 %v1461, %v1459
    %v1548 = vpack.c.b16 %v1462, %v1460
    %v1549 = vpack.c.b16 %v1465, %v1463
    %v1550 = vpack.c.b16 %v1466, %v1464
    %v1551 = vpack.c.b16 %v1469, %v1467
    %v1552 = vpack.c.b16 %v1470, %v1468
    %v1553 = vpack.c.b16 %v1473, %v1471
    %v1554 = vpack.c.b16 %v1474, %v1472
    %v1555 = vpack.c.b16 %v1477, %v1475
    %v1556 = vpack.c.b16 %v1478, %v1476
    %v1557 = vpack.c.b16 %v1481, %v1479
    %v1558 = vpack.c.b16 %v1482, %v1480
    %v1559 = vpack.c.b16 %v1485, %v1483
    %v1560 = vpack.c.b16 %v1486, %v1484
    %v1561 = vpack.c.b16 %v1489, %v1487
    %v1562 = vpack.c.b16 %v1490, %v1488
    %v1563 = vpack.c.b16 %v1493, %v1491
    %v1564 = vpack.c.b16 %v1494, %v1492
    %v1565 = vpack.c.b16 %v1497, %v1495
    %v1566 = vpack.c.b16 %v1498, %v1496
    %v1567 = vpack.c.b16 %v1501, %v1499
    %v1568 = vpack.c.b16 %v1502, %v1500
    %v1569 = vpack.c.b16 %v1505, %v1503
    %v1570 = vpack.c.b16 %v1506, %v1504
    %1635 = vmatprep.subr.bf16.mxu0 %v1508
    %1636 = vmatpush1.bf16.msra.mxu0 %v1507
    %1637 = vmatprep.subr.bf16.mxu0 %v1510
    %1638 = vmatpush1.bf16.msra.mxu0 %v1509
    %1639 = vmatprep.subr.bf16.mxu0 %v1512
    %1640 = vmatpush1.bf16.msra.mxu0 %v1511
    %1641 = vmatprep.subr.bf16.mxu0 %v1514
    %1642 = vmatpush1.bf16.msra.mxu0 %v1513
    %1643 = vmatprep.subr.bf16.mxu0 %v1516
    %1644 = vmatpush1.bf16.msra.mxu0 %v1515
    %1645 = vmatprep.subr.bf16.mxu0 %v1518
    %1646 = vmatpush1.bf16.msra.mxu0 %v1517
    %1647 = vmatprep.subr.bf16.mxu0 %v1520
    %1648 = vmatpush1.bf16.msra.mxu0 %v1519
    %1649 = vmatprep.subr.bf16.mxu0 %v1522
    %1650 = vmatpush1.bf16.msra.mxu0 %v1521
    %1651 = vmatprep.subr.bf16.mxu0 %v1524
    %1652 = vmatpush1.bf16.msra.mxu0 %v1523
    %1653 = vmatprep.subr.bf16.mxu0 %v1526
    %1654 = vmatpush1.bf16.msra.mxu0 %v1525
    %1655 = vmatprep.subr.bf16.mxu0 %v1528
    %1656 = vmatpush1.bf16.msra.mxu0 %v1527
    %1657 = vmatprep.subr.bf16.mxu0 %v1530
    %1658 = vmatpush1.bf16.msra.mxu0 %v1529
    %1659 = vmatprep.subr.bf16.mxu0 %v1532
    %1660 = vmatpush1.bf16.msra.mxu0 %v1531
    %1661 = vmatprep.subr.bf16.mxu0 %v1534
    %1662 = vmatpush1.bf16.msra.mxu0 %v1533
    %1663 = vmatprep.subr.bf16.mxu0 %v1536
    %1664 = vmatpush1.bf16.msra.mxu0 %v1535
    %1665 = vmatprep.subr.bf16.mxu0 %v1538
    %1666 = vmatpush1.bf16.msra.mxu0 %v1537
    %1667 = vmatprep.mubr.bf16.mxu0 %v1299
    %1668 = vmatmul.mubr.bf16.gmra.mrb[0].mxu0 %v1298
    %v1669 = vpop.f32.mrb[0].mxu0
    %v1670 = vadd.f32 %v1308, %v1669
    %v1671 = vpop.f32.mrb[0].mxu0
    %v1672 = vadd.f32 %v1312, %v1671
    %v1673 = vpop.f32.mrb[0].mxu0
    %v1674 = vpop.f32.mrb[0].mxu0
    %1675 = vdwg.mxu0
    %1676 = vmatprep.subr.bf16.mxu0 %v1540
    %1677 = vmatpush1.bf16.msra.mxu0 %v1539
    %1678 = vmatprep.subr.bf16.mxu0 %v1542
    %1679 = vmatpush1.bf16.msra.mxu0 %v1541
    %1680 = vmatprep.subr.bf16.mxu0 %v1544
    %1681 = vmatpush1.bf16.msra.mxu0 %v1543
    %1682 = vmatprep.subr.bf16.mxu0 %v1546
    %1683 = vmatpush1.bf16.msra.mxu0 %v1545
    %1684 = vmatprep.subr.bf16.mxu0 %v1548
    %1685 = vmatpush1.bf16.msra.mxu0 %v1547
    %1686 = vmatprep.subr.bf16.mxu0 %v1550
    %1687 = vmatpush1.bf16.msra.mxu0 %v1549
    %1688 = vmatprep.subr.bf16.mxu0 %v1552
    %1689 = vmatpush1.bf16.msra.mxu0 %v1551
    %1690 = vmatprep.subr.bf16.mxu0 %v1554
    %1691 = vmatpush1.bf16.msra.mxu0 %v1553
    %1692 = vmatprep.subr.bf16.mxu0 %v1556
    %1693 = vmatpush1.bf16.msra.mxu0 %v1555
    %1694 = vmatprep.subr.bf16.mxu0 %v1558
    %1695 = vmatpush1.bf16.msra.mxu0 %v1557
    %1696 = vmatprep.subr.bf16.mxu0 %v1560
    %1697 = vmatpush1.bf16.msra.mxu0 %v1559
    %1698 = vmatprep.subr.bf16.mxu0 %v1562
    %1699 = vmatpush1.bf16.msra.mxu0 %v1561
    %1700 = vmatprep.subr.bf16.mxu0 %v1564
    %1701 = vmatpush1.bf16.msra.mxu0 %v1563
    %1702 = vmatprep.subr.bf16.mxu0 %v1566
    %1703 = vmatpush1.bf16.msra.mxu0 %v1565
    %1704 = vmatprep.subr.bf16.mxu0 %v1568
    %1705 = vmatpush1.bf16.msra.mxu0 %v1567
    %1706 = vmatprep.subr.bf16.mxu0 %v1570
    %1707 = vmatpush1.bf16.msra.mxu0 %v1569
    %1708 = vmatprep.mubr.bf16.mxu0 %v1301
    %1709 = vmatmul.mubr.bf16.gmra.mrb[0].mxu0 %v1300
    %v1710 = vpop.f32.mrb[0].mxu0
    %v1711 = vadd.f32 %v1670, %v1710
    %v1712 = vpop.f32.mrb[0].mxu0
    %v1713 = vadd.f32 %v1672, %v1712
    %v1714 = vpop.f32.mrb[0].mxu0
    %v1715 = vpop.f32.mrb[0].mxu0
    %1716 = vdwg.mxu0
    %1717 = vst [vmem:[%s5 + $0x8] sm:$0xff] %v1711
    %1718 = vst [vmem:[%s5 + $0x10] sm:$0xff] %v1713
    %v1719 = vld [vmem:[%s0 + $0x8] sm:$0xff]
    %v1720 = vmul.f32 %v1713, 0.5
    %v1721 = vmul.f32 %v1720, 1.442695
    %v1722 = vpow.pop %v1721
    %v1723 = vmul.f32 %v1719, %v1722
    %v1724 = vadd.f32 %v1723, %v1711
    %v1725 = vld [vmem:[#allocation6 + $0x200] sm:$0xff]
    %v1726 = vld [vmem:[#allocation6 + $0x208] sm:$0xff]
    %v1727 = vld [vmem:[#allocation6 + $0x210] sm:$0xff]
    %v1728 = vld [vmem:[#allocation6 + $0x218] sm:$0xff]
    %v1729 = vld [vmem:[#allocation6 + $0x220] sm:$0xff]
    %v1730 = vld [vmem:[#allocation6 + $0x228] sm:$0xff]
    %v1731 = vld [vmem:[#allocation6 + $0x230] sm:$0xff]
    %v1732 = vld [vmem:[#allocation6 + $0x238] sm:$0xff]
    %v1733 = vld [vmem:[#allocation6 + $0x240] sm:$0xff]
    %v1734 = vld [vmem:[#allocation6 + $0x248] sm:$0xff]
    %v1735 = vld [vmem:[#allocation6 + $0x250] sm:$0xff]
    %v1736 = vld [vmem:[#allocation6 + $0x258] sm:$0xff]
    %v1737 = vld [vmem:[#allocation6 + $0x260] sm:$0xff]
    %v1738 = vld [vmem:[#allocation6 + $0x268] sm:$0xff]
    %v1739 = vld [vmem:[#allocation6 + $0x270] sm:$0xff]
    %v1740 = vld [vmem:[#allocation6 + $0x278] sm:$0xff]
    %v1741 = vld [vmem:[#allocation6 + $0x280] sm:$0xff]
    %v1742 = vld [vmem:[#allocation6 + $0x288] sm:$0xff]
    %v1743 = vld [vmem:[#allocation6 + $0x290] sm:$0xff]
    %v1744 = vld [vmem:[#allocation6 + $0x298] sm:$0xff]
    %v1745 = vld [vmem:[#allocation6 + $0x2a0] sm:$0xff]
    %v1746 = vld [vmem:[#allocation6 + $0x2a8] sm:$0xff]
    %v1747 = vld [vmem:[#allocation6 + $0x2b0] sm:$0xff]
    %v1748 = vld [vmem:[#allocation6 + $0x2b8] sm:$0xff]
    %v1749 = vld [vmem:[#allocation6 + $0x2c0] sm:$0xff]
    %v1750 = vld [vmem:[#allocation6 + $0x2c8] sm:$0xff]
    %v1751 = vld [vmem:[#allocation6 + $0x2d0] sm:$0xff]
    %v1752 = vld [vmem:[#allocation6 + $0x2d8] sm:$0xff]
    %v1753 = vld [vmem:[#allocation6 + $0x2e0] sm:$0xff]
    %v1754 = vld [vmem:[#allocation6 + $0x2e8] sm:$0xff]
    %v1755 = vld [vmem:[#allocation6 + $0x2f0] sm:$0xff]
    %v1756 = vld [vmem:[#allocation6 + $0x2f8] sm:$0xff]
    %v1757 = vpack.c.bf16 %v1724, %v1724
    %s1758 = scalar_lea.vmem [#allocation7], 69
    %v1759 = vld [vmem:[%s1758] ss:$8 sm:$0xf]
    %v1761 = vlaneseq
    %v1762 = vshrl.u32 %v1761, 7
    %v1763 = vsub.s32 0, %v1762
    %v1764 = vrot.slane %v1759, %v1763
    %v1765 = vlaneseq
    %v1766 = vshrl.u32 %v1765, 7
    %v1767 = vsub.s32 1, %v1766
    %v1768 = vrot.slane %v1759, %v1767
    %v1769 = vlaneseq
    %v1770 = vshrl.u32 %v1769, 7
    %v1771 = vsub.s32 2, %v1770
    %v1772 = vrot.slane %v1759, %v1771
    %v1773 = vlaneseq
    %v1774 = vshrl.u32 %v1773, 7
    %v1775 = vsub.s32 3, %v1774
    %v1776 = vrot.slane %v1759, %v1775
    %v1813 = vunpack.c.l.b16 %v1725
    %v1814 = vunpack.c.h.b16 %v1725
    %v1815 = vunpack.c.l.b16 %v1726
    %v1816 = vunpack.c.h.b16 %v1726
    %v1817 = vunpack.c.l.b16 %v1727
    %v1818 = vunpack.c.h.b16 %v1727
    %v1819 = vunpack.c.l.b16 %v1728
    %v1820 = vunpack.c.h.b16 %v1728
    %v1821 = vunpack.c.l.b16 %v1729
    %v1822 = vunpack.c.h.b16 %v1729
    %v1823 = vunpack.c.l.b16 %v1730
    %v1824 = vunpack.c.h.b16 %v1730
    %v1825 = vunpack.c.l.b16 %v1731
    %v1826 = vunpack.c.h.b16 %v1731
    %v1827 = vunpack.c.l.b16 %v1732
    %v1828 = vunpack.c.h.b16 %v1732
    %v1829 = vunpack.c.l.b16 %v1733
    %v1830 = vunpack.c.h.b16 %v1733
    %v1831 = vunpack.c.l.b16 %v1734
    %v1832 = vunpack.c.h.b16 %v1734
    %v1833 = vunpack.c.l.b16 %v1735
    %v1834 = vunpack.c.h.b16 %v1735
    %v1835 = vunpack.c.l.b16 %v1736
    %v1836 = vunpack.c.h.b16 %v1736
    %v1837 = vunpack.c.l.b16 %v1737
    %v1838 = vunpack.c.h.b16 %v1737
    %v1839 = vunpack.c.l.b16 %v1738
    %v1840 = vunpack.c.h.b16 %v1738
    %v1841 = vunpack.c.l.b16 %v1739
    %v1842 = vunpack.c.h.b16 %v1739
    %v1843 = vunpack.c.l.b16 %v1740
    %v1844 = vunpack.c.h.b16 %v1740
    %v1845 = vunpack.c.l.b16 %v1741
    %v1846 = vunpack.c.h.b16 %v1741
    %v1847 = vunpack.c.l.b16 %v1742
    %v1848 = vunpack.c.h.b16 %v1742
    %v1849 = vunpack.c.l.b16 %v1743
    %v1850 = vunpack.c.h.b16 %v1743
    %v1851 = vunpack.c.l.b16 %v1744
    %v1852 = vunpack.c.h.b16 %v1744
    %v1853 = vunpack.c.l.b16 %v1745
    %v1854 = vunpack.c.h.b16 %v1745
    %v1855 = vunpack.c.l.b16 %v1746
    %v1856 = vunpack.c.h.b16 %v1746
    %v1857 = vunpack.c.l.b16 %v1747
    %v1858 = vunpack.c.h.b16 %v1747
    %v1859 = vunpack.c.l.b16 %v1748
    %v1860 = vunpack.c.h.b16 %v1748
    %v1861 = vunpack.c.l.b16 %v1749
    %v1862 = vunpack.c.h.b16 %v1749
    %v1863 = vunpack.c.l.b16 %v1750
    %v1864 = vunpack.c.h.b16 %v1750
    %v1865 = vunpack.c.l.b16 %v1751
    %v1866 = vunpack.c.h.b16 %v1751
    %v1867 = vunpack.c.l.b16 %v1752
    %v1868 = vunpack.c.h.b16 %v1752
    %v1869 = vunpack.c.l.b16 %v1753
    %v1870 = vunpack.c.h.b16 %v1753
    %v1871 = vunpack.c.l.b16 %v1754
    %v1872 = vunpack.c.h.b16 %v1754
    %v1873 = vunpack.c.l.b16 %v1755
    %v1874 = vunpack.c.h.b16 %v1755
    %v1875 = vunpack.c.l.b16 %v1756
    %v1876 = vunpack.c.h.b16 %v1756
    %v1877 = vpack.c.b16 %v1817, %v1813
    %v1878 = vpack.c.b16 %v1818, %v1814
    %v1879 = vpack.c.b16 %v1819, %v1815
    %v1880 = vpack.c.b16 %v1820, %v1816
    %v1881 = vpack.c.b16 %v1825, %v1821
    %v1882 = vpack.c.b16 %v1826, %v1822
    %v1883 = vpack.c.b16 %v1827, %v1823
    %v1884 = vpack.c.b16 %v1828, %v1824
    %v1885 = vpack.c.b16 %v1833, %v1829
    %v1886 = vpack.c.b16 %v1834, %v1830
    %v1887 = vpack.c.b16 %v1835, %v1831
    %v1888 = vpack.c.b16 %v1836, %v1832
    %v1889 = vpack.c.b16 %v1841, %v1837
    %v1890 = vpack.c.b16 %v1842, %v1838
    %v1891 = vpack.c.b16 %v1843, %v1839
    %v1892 = vpack.c.b16 %v1844, %v1840
    %v1893 = vpack.c.b16 %v1849, %v1845
    %v1894 = vpack.c.b16 %v1850, %v1846
    %v1895 = vpack.c.b16 %v1851, %v1847
    %v1896 = vpack.c.b16 %v1852, %v1848
    %v1897 = vpack.c.b16 %v1857, %v1853
    %v1898 = vpack.c.b16 %v1858, %v1854
    %v1899 = vpack.c.b16 %v1859, %v1855
    %v1900 = vpack.c.b16 %v1860, %v1856
    %v1901 = vpack.c.b16 %v1865, %v1861
    %v1902 = vpack.c.b16 %v1866, %v1862
    %v1903 = vpack.c.b16 %v1867, %v1863
    %v1904 = vpack.c.b16 %v1868, %v1864
    %v1905 = vpack.c.b16 %v1873, %v1869
    %v1906 = vpack.c.b16 %v1874, %v1870
    %v1907 = vpack.c.b16 %v1875, %v1871
    %v1908 = vpack.c.b16 %v1876, %v1872
    %1941 = vmatprep.subr.bf16.mxu0 %v1878
    %1942 = vmatpush1.bf16.msra.mxu0 %v1877
    %1943 = vmatprep.subr.bf16.mxu0 %v1882
    %1944 = vmatpush1.bf16.msra.mxu0 %v1881
    %1945 = vmatprep.subr.bf16.mxu0 %v1886
    %1946 = vmatpush1.bf16.msra.mxu0 %v1885
    %1947 = vmatprep.subr.bf16.mxu0 %v1890
    %1948 = vmatpush1.bf16.msra.mxu0 %v1889
    %1949 = vmatprep.subr.bf16.mxu0 %v1894
    %1950 = vmatpush1.bf16.msra.mxu0 %v1893
    %1951 = vmatprep.subr.bf16.mxu0 %v1898
    %1952 = vmatpush1.bf16.msra.mxu0 %v1897
    %1953 = vmatprep.subr.bf16.mxu0 %v1902
    %1954 = vmatpush1.bf16.msra.mxu0 %v1901
    %1955 = vmatprep.subr.bf16.mxu0 %v1906
    %1956 = vmatpush1.bf16.msra.mxu0 %v1905
    %1957 = vmatprep.subr.bf16.mxu0 0
    %1958 = vmatpush1.bf16.msra.mxu0 0
    %1959 = vmatprep.subr.bf16.mxu0 0
    %1960 = vmatpush1.bf16.msra.mxu0 0
    %1961 = vmatprep.subr.bf16.mxu0 0
    %1962 = vmatpush1.bf16.msra.mxu0 0
    %1963 = vmatprep.subr.bf16.mxu0 0
    %1964 = vmatpush1.bf16.msra.mxu0 0
    %1965 = vmatprep.subr.bf16.mxu0 0
    %1966 = vmatpush1.bf16.msra.mxu0 0
    %1967 = vmatprep.subr.bf16.mxu0 0
    %1968 = vmatpush1.bf16.msra.mxu0 0
    %1969 = vmatprep.subr.bf16.mxu0 0
    %1970 = vmatpush1.bf16.msra.mxu0 0
    %1971 = vmatprep.subr.bf16.mxu0 0
    %1972 = vmatpush1.bf16.msra.mxu0 0
    %1973 = vmatprep.mubr.bf16.mxu0 0
    %1974 = vmatmul.mubr.bf16.gmra.mrb[0].mxu0 %v1757
    %v1975 = vpop.f32.mrb[0].mxu0
    %v1976 = vadd.f32 %v1764, %v1975
    %v1977 = vpop.f32.mrb[0].mxu0
    %v1978 = vadd.f32 %v1768, %v1977
    %v1979 = vpop.f32.mrb[0].mxu0
    %v1980 = vpop.f32.mrb[0].mxu0
    %1981 = vdwg.mxu0
    %1982 = vmatprep.subr.bf16.mxu0 %v1880
    %1983 = vmatpush1.bf16.msra.mxu0 %v1879
    %1984 = vmatprep.subr.bf16.mxu0 %v1884
    %1985 = vmatpush1.bf16.msra.mxu0 %v1883
    %1986 = vmatprep.subr.bf16.mxu0 %v1888
    %1987 = vmatpush1.bf16.msra.mxu0 %v1887
    %1988 = vmatprep.subr.bf16.mxu0 %v1892
    %1989 = vmatpush1.bf16.msra.mxu0 %v1891
    %1990 = vmatprep.subr.bf16.mxu0 %v1896
    %1991 = vmatpush1.bf16.msra.mxu0 %v1895
    %1992 = vmatprep.subr.bf16.mxu0 %v1900
    %1993 = vmatpush1.bf16.msra.mxu0 %v1899
    %1994 = vmatprep.subr.bf16.mxu0 %v1904
    %1995 = vmatpush1.bf16.msra.mxu0 %v1903
    %1996 = vmatprep.subr.bf16.mxu0 %v1908
    %1997 = vmatpush1.bf16.msra.mxu0 %v1907
    %1998 = vmatprep.subr.bf16.mxu0 0
    %1999 = vmatpush1.bf16.msra.mxu0 0
    %2000 = vmatprep.subr.bf16.mxu0 0
    %2001 = vmatpush1.bf16.msra.mxu0 0
    %2002 = vmatprep.subr.bf16.mxu0 0
    %2003 = vmatpush1.bf16.msra.mxu0 0
    %2004 = vmatprep.subr.bf16.mxu0 0
    %2005 = vmatpush1.bf16.msra.mxu0 0
    %2006 = vmatprep.subr.bf16.mxu0 0
    %2007 = vmatpush1.bf16.msra.mxu0 0
    %2008 = vmatprep.subr.bf16.mxu0 0
    %2009 = vmatpush1.bf16.msra.mxu0 0
    %2010 = vmatprep.subr.bf16.mxu0 0
    %2011 = vmatpush1.bf16.msra.mxu0 0
    %2012 = vmatprep.subr.bf16.mxu0 0
    %2013 = vmatpush1.bf16.msra.mxu0 0
    %2014 = vmatprep.mubr.bf16.mxu0 0
    %2015 = vmatmul.mubr.bf16.gmra.mrb[0].mxu0 %v1757
    %v2016 = vpop.f32.mrb[0].mxu0
    %v2017 = vadd.f32 %v1772, %v2016
    %v2018 = vpop.f32.mrb[0].mxu0
    %v2019 = vadd.f32 %v1776, %v2018
    %v2020 = vpop.f32.mrb[0].mxu0
    %v2021 = vpop.f32.mrb[0].mxu0
    %2022 = vdwg.mxu0
    %v2023 = vld [vmem:[#allocation4 + $0x280] sm:$0xff]
    %v2024 = vld [vmem:[#allocation4 + $0x288] sm:$0xff]
    %v2025 = vld [vmem:[#allocation4 + $0x290] sm:$0xff]
    %v2026 = vld [vmem:[#allocation4 + $0x298] sm:$0xff]
    %v2027 = vld [vmem:[#allocation4 + $0x2a0] sm:$0xff]
    %v2028 = vld [vmem:[#allocation4 + $0x2a8] sm:$0xff]
    %v2029 = vld [vmem:[#allocation4 + $0x2b0] sm:$0xff]
    %v2030 = vld [vmem:[#allocation4 + $0x2b8] sm:$0xff]
    %v2031 = vld [vmem:[#allocation4 + $0x2c0] sm:$0xff]
    %v2032 = vld [vmem:[#allocation4 + $0x2c8] sm:$0xff]
    %v2033 = vld [vmem:[#allocation4 + $0x2d0] sm:$0xff]
    %v2034 = vld [vmem:[#allocation4 + $0x2d8] sm:$0xff]
    %v2035 = vld [vmem:[#allocation4 + $0x2e0] sm:$0xff]
    %v2036 = vld [vmem:[#allocation4 + $0x2e8] sm:$0xff]
    %v2037 = vld [vmem:[#allocation4 + $0x2f0] sm:$0xff]
    %v2038 = vld [vmem:[#allocation4 + $0x2f8] sm:$0xff]
    %v2039 = vld [vmem:[#allocation4 + $0x300] sm:$0xff]
    %v2040 = vld [vmem:[#allocation4 + $0x308] sm:$0xff]
    %v2041 = vld [vmem:[#allocation4 + $0x310] sm:$0xff]
    %v2042 = vld [vmem:[#allocation4 + $0x318] sm:$0xff]
    %v2043 = vld [vmem:[#allocation4 + $0x320] sm:$0xff]
    %v2044 = vld [vmem:[#allocation4 + $0x328] sm:$0xff]
    %v2045 = vld [vmem:[#allocation4 + $0x330] sm:$0xff]
    %v2046 = vld [vmem:[#allocation4 + $0x338] sm:$0xff]
    %v2047 = vld [vmem:[#allocation4 + $0x340] sm:$0xff]
    %v2048 = vld [vmem:[#allocation4 + $0x348] sm:$0xff]
    %v2049 = vld [vmem:[#allocation4 + $0x350] sm:$0xff]
    %v2050 = vld [vmem:[#allocation4 + $0x358] sm:$0xff]
    %v2051 = vld [vmem:[#allocation4 + $0x360] sm:$0xff]
    %v2052 = vld [vmem:[#allocation4 + $0x368] sm:$0xff]
    %v2053 = vld [vmem:[#allocation4 + $0x370] sm:$0xff]
    %v2054 = vld [vmem:[#allocation4 + $0x378] sm:$0xff]
    %v2055 = vld [vmem:[#allocation4 + $0x380] sm:$0xff]
    %v2056 = vld [vmem:[#allocation4 + $0x388] sm:$0xff]
    %v2057 = vld [vmem:[#allocation4 + $0x390] sm:$0xff]
    %v2058 = vld [vmem:[#allocation4 + $0x398] sm:$0xff]
    %v2059 = vld [vmem:[#allocation4 + $0x3a0] sm:$0xff]
    %v2060 = vld [vmem:[#allocation4 + $0x3a8] sm:$0xff]
    %v2061 = vld [vmem:[#allocation4 + $0x3b0] sm:$0xff]
    %v2062 = vld [vmem:[#allocation4 + $0x3b8] sm:$0xff]
    %v2063 = vld [vmem:[#allocation4 + $0x3c0] sm:$0xff]
    %v2064 = vld [vmem:[#allocation4 + $0x3c8] sm:$0xff]
    %v2065 = vld [vmem:[#allocation4 + $0x3d0] sm:$0xff]
    %v2066 = vld [vmem:[#allocation4 + $0x3d8] sm:$0xff]
    %v2067 = vld [vmem:[#allocation4 + $0x3e0] sm:$0xff]
    %v2068 = vld [vmem:[#allocation4 + $0x3e8] sm:$0xff]
    %v2069 = vld [vmem:[#allocation4 + $0x3f0] sm:$0xff]
    %v2070 = vld [vmem:[#allocation4 + $0x3f8] sm:$0xff]
    %v2071 = vld [vmem:[#allocation4 + $0x400] sm:$0xff]
    %v2072 = vld [vmem:[#allocation4 + $0x408] sm:$0xff]
    %v2073 = vld [vmem:[#allocation4 + $0x410] sm:$0xff]
    %v2074 = vld [vmem:[#allocation4 + $0x418] sm:$0xff]
    %v2075 = vld [vmem:[#allocation4 + $0x420] sm:$0xff]
    %v2076 = vld [vmem:[#allocation4 + $0x428] sm:$0xff]
    %v2077 = vld [vmem:[#allocation4 + $0x430] sm:$0xff]
    %v2078 = vld [vmem:[#allocation4 + $0x438] sm:$0xff]
    %v2079 = vld [vmem:[#allocation4 + $0x440] sm:$0xff]
    %v2080 = vld [vmem:[#allocation4 + $0x448] sm:$0xff]
    %v2081 = vld [vmem:[#allocation4 + $0x450] sm:$0xff]
    %v2082 = vld [vmem:[#allocation4 + $0x458] sm:$0xff]
    %v2083 = vld [vmem:[#allocation4 + $0x460] sm:$0xff]
    %v2084 = vld [vmem:[#allocation4 + $0x468] sm:$0xff]
    %v2085 = vld [vmem:[#allocation4 + $0x470] sm:$0xff]
    %v2086 = vld [vmem:[#allocation4 + $0x478] sm:$0xff]
    %v2087 = vpack.c.bf16 %v1976, %v1976
    %v2088 = vpack.c.bf16 %v1978, %v1978
    %v2089 = vpack.c.bf16 %v2017, %v2017
    %v2090 = vpack.c.bf16 %v2019, %v2019
    %v2155 = vunpack.c.l.b16 %v2023
    %v2156 = vunpack.c.h.b16 %v2023
    %v2157 = vunpack.c.l.b16 %v2024
    %v2158 = vunpack.c.h.b16 %v2024
    %v2159 = vunpack.c.l.b16 %v2025
    %v2160 = vunpack.c.h.b16 %v2025
    %v2161 = vunpack.c.l.b16 %v2026
    %v2162 = vunpack.c.h.b16 %v2026
    %v2163 = vunpack.c.l.b16 %v2027
    %v2164 = vunpack.c.h.b16 %v2027
    %v2165 = vunpack.c.l.b16 %v2028
    %v2166 = vunpack.c.h.b16 %v2028
    %v2167 = vunpack.c.l.b16 %v2029
    %v2168 = vunpack.c.h.b16 %v2029
    %v2169 = vunpack.c.l.b16 %v2030
    %v2170 = vunpack.c.h.b16 %v2030
    %v2171 = vunpack.c.l.b16 %v2031
    %v2172 = vunpack.c.h.b16 %v2031
    %v2173 = vunpack.c.l.b16 %v2032
    %v2174 = vunpack.c.h.b16 %v2032
    %v2175 = vunpack.c.l.b16 %v2033
    %v2176 = vunpack.c.h.b16 %v2033
    %v2177 = vunpack.c.l.b16 %v2034
    %v2178 = vunpack.c.h.b16 %v2034
    %v2179 = vunpack.c.l.b16 %v2035
    %v2180 = vunpack.c.h.b16 %v2035
    %v2181 = vunpack.c.l.b16 %v2036
    %v2182 = vunpack.c.h.b16 %v2036
    %v2183 = vunpack.c.l.b16 %v2037
    %v2184 = vunpack.c.h.b16 %v2037
    %v2185 = vunpack.c.l.b16 %v2038
    %v2186 = vunpack.c.h.b16 %v2038
    %v2187 = vunpack.c.l.b16 %v2039
    %v2188 = vunpack.c.h.b16 %v2039
    %v2189 = vunpack.c.l.b16 %v2040
    %v2190 = vunpack.c.h.b16 %v2040
    %v2191 = vunpack.c.l.b16 %v2041
    %v2192 = vunpack.c.h.b16 %v2041
    %v2193 = vunpack.c.l.b16 %v2042
    %v2194 = vunpack.c.h.b16 %v2042
    %v2195 = vunpack.c.l.b16 %v2043
    %v2196 = vunpack.c.h.b16 %v2043
    %v2197 = vunpack.c.l.b16 %v2044
    %v2198 = vunpack.c.h.b16 %v2044
    %v2199 = vunpack.c.l.b16 %v2045
    %v2200 = vunpack.c.h.b16 %v2045
    %v2201 = vunpack.c.l.b16 %v2046
    %v2202 = vunpack.c.h.b16 %v2046
    %v2203 = vunpack.c.l.b16 %v2047
    %v2204 = vunpack.c.h.b16 %v2047
    %v2205 = vunpack.c.l.b16 %v2048
    %v2206 = vunpack.c.h.b16 %v2048
    %v2207 = vunpack.c.l.b16 %v2049
    %v2208 = vunpack.c.h.b16 %v2049
    %v2209 = vunpack.c.l.b16 %v2050
    %v2210 = vunpack.c.h.b16 %v2050
    %v2211 = vunpack.c.l.b16 %v2051
    %v2212 = vunpack.c.h.b16 %v2051
    %v2213 = vunpack.c.l.b16 %v2052
    %v2214 = vunpack.c.h.b16 %v2052
    %v2215 = vunpack.c.l.b16 %v2053
    %v2216 = vunpack.c.h.b16 %v2053
    %v2217 = vunpack.c.l.b16 %v2054
    %v2218 = vunpack.c.h.b16 %v2054
    %v2219 = vunpack.c.l.b16 %v2055
    %v2220 = vunpack.c.h.b16 %v2055
    %v2221 = vunpack.c.l.b16 %v2056
    %v2222 = vunpack.c.h.b16 %v2056
    %v2223 = vunpack.c.l.b16 %v2057
    %v2224 = vunpack.c.h.b16 %v2057
    %v2225 = vunpack.c.l.b16 %v2058
    %v2226 = vunpack.c.h.b16 %v2058
    %v2227 = vunpack.c.l.b16 %v2059
    %v2228 = vunpack.c.h.b16 %v2059
    %v2229 = vunpack.c.l.b16 %v2060
    %v2230 = vunpack.c.h.b16 %v2060
    %v2231 = vunpack.c.l.b16 %v2061
    %v2232 = vunpack.c.h.b16 %v2061
    %v2233 = vunpack.c.l.b16 %v2062
    %v2234 = vunpack.c.h.b16 %v2062
    %v2235 = vunpack.c.l.b16 %v2063
    %v2236 = vunpack.c.h.b16 %v2063
    %v2237 = vunpack.c.l.b16 %v2064
    %v2238 = vunpack.c.h.b16 %v2064
    %v2239 = vunpack.c.l.b16 %v2065
    %v2240 = vunpack.c.h.b16 %v2065
    %v2241 = vunpack.c.l.b16 %v2066
    %v2242 = vunpack.c.h.b16 %v2066
    %v2243 = vunpack.c.l.b16 %v2067
    %v2244 = vunpack.c.h.b16 %v2067
    %v2245 = vunpack.c.l.b16 %v2068
    %v2246 = vunpack.c.h.b16 %v2068
    %v2247 = vunpack.c.l.b16 %v2069
    %v2248 = vunpack.c.h.b16 %v2069
    %v2249 = vunpack.c.l.b16 %v2070
    %v2250 = vunpack.c.h.b16 %v2070
    %v2251 = vunpack.c.l.b16 %v2071
    %v2252 = vunpack.c.h.b16 %v2071
    %v2253 = vunpack.c.l.b16 %v2072
    %v2254 = vunpack.c.h.b16 %v2072
    %v2255 = vunpack.c.l.b16 %v2073
    %v2256 = vunpack.c.h.b16 %v2073
    %v2257 = vunpack.c.l.b16 %v2074
    %v2258 = vunpack.c.h.b16 %v2074
    %v2259 = vunpack.c.l.b16 %v2075
    %v2260 = vunpack.c.h.b16 %v2075
    %v2261 = vunpack.c.l.b16 %v2076
    %v2262 = vunpack.c.h.b16 %v2076
    %v2263 = vunpack.c.l.b16 %v2077
    %v2264 = vunpack.c.h.b16 %v2077
    %v2265 = vunpack.c.l.b16 %v2078
    %v2266 = vunpack.c.h.b16 %v2078
    %v2267 = vunpack.c.l.b16 %v2079
    %v2268 = vunpack.c.h.b16 %v2079
    %v2269 = vunpack.c.l.b16 %v2080
    %v2270 = vunpack.c.h.b16 %v2080
    %v2271 = vunpack.c.l.b16 %v2081
    %v2272 = vunpack.c.h.b16 %v2081
    %v2273 = vunpack.c.l.b16 %v2082
    %v2274 = vunpack.c.h.b16 %v2082
    %v2275 = vunpack.c.l.b16 %v2083
    %v2276 = vunpack.c.h.b16 %v2083
    %v2277 = vunpack.c.l.b16 %v2084
    %v2278 = vunpack.c.h.b16 %v2084
    %v2279 = vunpack.c.l.b16 %v2085
    %v2280 = vunpack.c.h.b16 %v2085
    %v2281 = vunpack.c.l.b16 %v2086
    %v2282 = vunpack.c.h.b16 %v2086
    %v2283 = vpack.c.b16 %v2157, %v2155
    %v2284 = vpack.c.b16 %v2158, %v2156
    %v2285 = vpack.c.b16 %v2161, %v2159
    %v2286 = vpack.c.b16 %v2162, %v2160
    %v2287 = vpack.c.b16 %v2165, %v2163
    %v2288 = vpack.c.b16 %v2166, %v2164
    %v2289 = vpack.c.b16 %v2169, %v2167
    %v2290 = vpack.c.b16 %v2170, %v2168
    %v2291 = vpack.c.b16 %v2173, %v2171
    %v2292 = vpack.c.b16 %v2174, %v2172
    %v2293 = vpack.c.b16 %v2177, %v2175
    %v2294 = vpack.c.b16 %v2178, %v2176
    %v2295 = vpack.c.b16 %v2181, %v2179
    %v2296 = vpack.c.b16 %v2182, %v2180
    %v2297 = vpack.c.b16 %v2185, %v2183
    %v2298 = vpack.c.b16 %v2186, %v2184
    %v2299 = vpack.c.b16 %v2189, %v2187
    %v2300 = vpack.c.b16 %v2190, %v2188
    %v2301 = vpack.c.b16 %v2193, %v2191
    %v2302 = vpack.c.b16 %v2194, %v2192
    %v2303 = vpack.c.b16 %v2197, %v2195
    %v2304 = vpack.c.b16 %v2198, %v2196
    %v2305 = vpack.c.b16 %v2201, %v2199
    %v2306 = vpack.c.b16 %v2202, %v2200
    %v2307 = vpack.c.b16 %v2205, %v2203
    %v2308 = vpack.c.b16 %v2206, %v2204
    %v2309 = vpack.c.b16 %v2209, %v2207
    %v2310 = vpack.c.b16 %v2210, %v2208
    %v2311 = vpack.c.b16 %v2213, %v2211
    %v2312 = vpack.c.b16 %v2214, %v2212
    %v2313 = vpack.c.b16 %v2217, %v2215
    %v2314 = vpack.c.b16 %v2218, %v2216
    %v2315 = vpack.c.b16 %v2221, %v2219
    %v2316 = vpack.c.b16 %v2222, %v2220
    %v2317 = vpack.c.b16 %v2225, %v2223
    %v2318 = vpack.c.b16 %v2226, %v2224
    %v2319 = vpack.c.b16 %v2229, %v2227
    %v2320 = vpack.c.b16 %v2230, %v2228
    %v2321 = vpack.c.b16 %v2233, %v2231
    %v2322 = vpack.c.b16 %v2234, %v2232
    %v2323 = vpack.c.b16 %v2237, %v2235
    %v2324 = vpack.c.b16 %v2238, %v2236
    %v2325 = vpack.c.b16 %v2241, %v2239
    %v2326 = vpack.c.b16 %v2242, %v2240
    %v2327 = vpack.c.b16 %v2245, %v2243
    %v2328 = vpack.c.b16 %v2246, %v2244
    %v2329 = vpack.c.b16 %v2249, %v2247
    %v2330 = vpack.c.b16 %v2250, %v2248
    %v2331 = vpack.c.b16 %v2253, %v2251
    %v2332 = vpack.c.b16 %v2254, %v2252
    %v2333 = vpack.c.b16 %v2257, %v2255
    %v2334 = vpack.c.b16 %v2258, %v2256
    %v2335 = vpack.c.b16 %v2261, %v2259
    %v2336 = vpack.c.b16 %v2262, %v2260
    %v2337 = vpack.c.b16 %v2265, %v2263
    %v2338 = vpack.c.b16 %v2266, %v2264
    %v2339 = vpack.c.b16 %v2269, %v2267
    %v2340 = vpack.c.b16 %v2270, %v2268
    %v2341 = vpack.c.b16 %v2273, %v2271
    %v2342 = vpack.c.b16 %v2274, %v2272
    %v2343 = vpack.c.b16 %v2277, %v2275
    %v2344 = vpack.c.b16 %v2278, %v2276
    %v2345 = vpack.c.b16 %v2281, %v2279
    %v2346 = vpack.c.b16 %v2282, %v2280
    %2411 = vmatprep.subr.bf16.mxu0 %v2284
    %2412 = vmatpush1.bf16.msra.mxu0 %v2283
    %2413 = vmatprep.subr.bf16.mxu0 %v2286
    %2414 = vmatpush1.bf16.msra.mxu0 %v2285
    %2415 = vmatprep.subr.bf16.mxu0 %v2288
    %2416 = vmatpush1.bf16.msra.mxu0 %v2287
    %2417 = vmatprep.subr.bf16.mxu0 %v2290
    %2418 = vmatpush1.bf16.msra.mxu0 %v2289
    %2419 = vmatprep.subr.bf16.mxu0 %v2292
    %2420 = vmatpush1.bf16.msra.mxu0 %v2291
    %2421 = vmatprep.subr.bf16.mxu0 %v2294
    %2422 = vmatpush1.bf16.msra.mxu0 %v2293
    %2423 = vmatprep.subr.bf16.mxu0 %v2296
    %2424 = vmatpush1.bf16.msra.mxu0 %v2295
    %2425 = vmatprep.subr.bf16.mxu0 %v2298
    %2426 = vmatpush1.bf16.msra.mxu0 %v2297
    %2427 = vmatprep.subr.bf16.mxu0 %v2300
    %2428 = vmatpush1.bf16.msra.mxu0 %v2299
    %2429 = vmatprep.subr.bf16.mxu0 %v2302
    %2430 = vmatpush1.bf16.msra.mxu0 %v2301
    %2431 = vmatprep.subr.bf16.mxu0 %v2304
    %2432 = vmatpush1.bf16.msra.mxu0 %v2303
    %2433 = vmatprep.subr.bf16.mxu0 %v2306
    %2434 = vmatpush1.bf16.msra.mxu0 %v2305
    %2435 = vmatprep.subr.bf16.mxu0 %v2308
    %2436 = vmatpush1.bf16.msra.mxu0 %v2307
    %2437 = vmatprep.subr.bf16.mxu0 %v2310
    %2438 = vmatpush1.bf16.msra.mxu0 %v2309
    %2439 = vmatprep.subr.bf16.mxu0 %v2312
    %2440 = vmatpush1.bf16.msra.mxu0 %v2311
    %2441 = vmatprep.subr.bf16.mxu0 %v2314
    %2442 = vmatpush1.bf16.msra.mxu0 %v2313
    %2443 = vmatprep.mubr.bf16.mxu0 %v2088
    %2444 = vmatmul.mubr.bf16.gmra.mrb[0].mxu0 %v2087
    %v2445 = vpop.f32.mrb[0].mxu0
    %v2446 = vadd.f32 0.0, %v2445
    %v2447 = vpop.f32.mrb[0].mxu0
    %v2448 = vadd.f32 0.0, %v2447
    %v2449 = vpop.f32.mrb[0].mxu0
    %v2450 = vpop.f32.mrb[0].mxu0
    %2451 = vdwg.mxu0
    %2452 = vmatprep.subr.bf16.mxu0 %v2316
    %2453 = vmatpush1.bf16.msra.mxu0 %v2315
    %2454 = vmatprep.subr.bf16.mxu0 %v2318
    %2455 = vmatpush1.bf16.msra.mxu0 %v2317
    %2456 = vmatprep.subr.bf16.mxu0 %v2320
    %2457 = vmatpush1.bf16.msra.mxu0 %v2319
    %2458 = vmatprep.subr.bf16.mxu0 %v2322
    %2459 = vmatpush1.bf16.msra.mxu0 %v2321
    %2460 = vmatprep.subr.bf16.mxu0 %v2324
    %2461 = vmatpush1.bf16.msra.mxu0 %v2323
    %2462 = vmatprep.subr.bf16.mxu0 %v2326
    %2463 = vmatpush1.bf16.msra.mxu0 %v2325
    %2464 = vmatprep.subr.bf16.mxu0 %v2328
    %2465 = vmatpush1.bf16.msra.mxu0 %v2327
    %2466 = vmatprep.subr.bf16.mxu0 %v2330
    %2467 = vmatpush1.bf16.msra.mxu0 %v2329
    %2468 = vmatprep.subr.bf16.mxu0 %v2332
    %2469 = vmatpush1.bf16.msra.mxu0 %v2331
    %2470 = vmatprep.subr.bf16.mxu0 %v2334
    %2471 = vmatpush1.bf16.msra.mxu0 %v2333
    %2472 = vmatprep.subr.bf16.mxu0 %v2336
    %2473 = vmatpush1.bf16.msra.mxu0 %v2335
    %2474 = vmatprep.subr.bf16.mxu0 %v2338
    %2475 = vmatpush1.bf16.msra.mxu0 %v2337
    %2476 = vmatprep.subr.bf16.mxu0 %v2340
    %2477 = vmatpush1.bf16.msra.mxu0 %v2339
    %2478 = vmatprep.subr.bf16.mxu0 %v2342
    %2479 = vmatpush1.bf16.msra.mxu0 %v2341
    %2480 = vmatprep.subr.bf16.mxu0 %v2344
    %2481 = vmatpush1.bf16.msra.mxu0 %v2343
    %2482 = vmatprep.subr.bf16.mxu0 %v2346
    %2483 = vmatpush1.bf16.msra.mxu0 %v2345
    %2484 = vmatprep.mubr.bf16.mxu0 %v2090
    %2485 = vmatmul.mubr.bf16.gmra.mrb[0].mxu0 %v2089
    %v2486 = vpop.f32.mrb[0].mxu0
    %v2487 = vadd.f32 %v2446, %v2486
    %v2488 = vpop.f32.mrb[0].mxu0
    %v2489 = vadd.f32 %v2448, %v2488
    %v2490 = vpop.f32.mrb[0].mxu0
    %v2491 = vpop.f32.mrb[0].mxu0
    %2492 = vdwg.mxu0
    %s2493 = scalar_lea.vmem [#allocation7], 5
    %v2494 = vld [vmem:[%s2493] ss:$8 sm:$0x3]
    %s2495 = scalar_lea.vmem [#allocation7], 39
    %v2496 = vld [vmem:[%s2495] ss:$8 sm:$0x3]
    %v2497 = vrot.slane %v2487, 4
    %v2498 = vadd.f32 %v2487, %v2497
    %v2499 = vrot.slane %v2498, 2
    %v2500 = vadd.f32 %v2498, %v2499
    %v2501 = vrot.slane %v2500, 1
    %v2502 = vadd.f32 %v2500, %v2501
    %v2503 = vrot.slane %v2489, 4
    %v2504 = vadd.f32 %v2489, %v2503
    %v2505 = vrot.slane %v2504, 2
    %v2506 = vadd.f32 %v2504, %v2505
    %v2507 = vrot.slane %v2506, 1
    %v2508 = vadd.f32 %v2506, %v2507
    %v2509 = vmul.f32 %v2502, %v140
    %v2510 = vmul.f32 %v2508, %v140
    %v2511 = vmul.f32 %v2487, %v2487
    %v2512 = vmul.f32 %v2489, %v2489
    %v2513 = vrot.slane %v2511, 4
    %v2514 = vadd.f32 %v2511, %v2513
    %v2515 = vrot.slane %v2514, 2
    %v2516 = vadd.f32 %v2514, %v2515
    %v2517 = vrot.slane %v2516, 1
    %v2518 = vadd.f32 %v2516, %v2517
    %v2519 = vrot.slane %v2512, 4
    %v2520 = vadd.f32 %v2512, %v2519
    %v2521 = vrot.slane %v2520, 2
    %v2522 = vadd.f32 %v2520, %v2521
    %v2523 = vrot.slane %v2522, 1
    %v2524 = vadd.f32 %v2522, %v2523
    %v2525 = vmul.f32 %v2518, %v140
    %v2526 = vmul.f32 %v2524, %v140
    %v2527 = vmul.f32 %v2509, %v2509
    %v2528 = vmul.f32 %v2510, %v2510
    %v2529 = vsub.f32 %v2525, %v2527
    %v2530 = vsub.f32 %v2526, %v2528
    %v2531 = vmax.f32 %v2529, 0.0
    %v2532 = vmax.f32 %v2530, 0.0
    %v2533 = vsub.f32 %v2487, %v2509
    %v2534 = vsub.f32 %v2489, %v2510
    %v2535 = vadd.f32 %v2531, 1e-05
    %v2536 = vadd.f32 %v2532, 1e-05
    %v2537 = vrsqrt.pop %v2535
    %v2538 = vrsqrt.pop %v2536
    %v2541 = vcombine.low %v2537, %v2538
    %v2543 = vunpack.c.l.s4 1966171168
    %v2544 = vunpack.c.0.s8 %v2543
    %v2545 = vlaneseq
    %v2546 = vshrl.u32 %v2545, 7
    %v2547 = vsub.s32 %v2544, %v2546
    %v2548 = vrot.slane %v2541, %v2547
    %v2550 = vunpack.c.l.s4 1966171168
    %v2551 = vunpack.c.0.s8 %v2550
    %v2552 = vlaneseq
    %v2553 = vshrl.u32 %v2552, 7
    %v2554 = vsub.s32 %v2551, %v2553
    %v2555 = vrot.slane %v2548, %v2554
    %v2557 = vmul.f32 %v2494, %v2555
    %v2559 = vlaneseq
    %v2560 = vshrl.u32 %v2559, 7
    %v2561 = vsub.s32 0, %v2560
    %v2562 = vrot.slane %v2557, %v2561
    %v2563 = vlaneseq
    %v2564 = vshrl.u32 %v2563, 7
    %v2565 = vsub.s32 1, %v2564
    %v2566 = vrot.slane %v2557, %v2565
    %v2569 = vmul.f32 %v2533, %v2562
    %v2570 = vmul.f32 %v2534, %v2566
    %v2572 = vlaneseq
    %v2573 = vshrl.u32 %v2572, 7
    %v2574 = vsub.s32 0, %v2573
    %v2575 = vrot.slane %v2496, %v2574
    %v2576 = vlaneseq
    %v2577 = vshrl.u32 %v2576, 7
    %v2578 = vsub.s32 1, %v2577
    %v2579 = vrot.slane %v2496, %v2578
    %v2582 = vadd.f32 %v2569, %v2575
    %v2583 = vadd.f32 %v2570, %v2579
    %v2584 = vmul.f32 %v2582, 0.01
    %v2585 = vmul.f32 %v2583, 0.01
    %v2586 = vmax.f32 %v2582, %v2584
    %v2587 = vmax.f32 %v2583, %v2585
    %v2588 = vld [vmem:[#allocation2 + $0x38] sm:$0xf]
    %v2589 = vld [vmem:[#allocation2 + $0x3c] sm:$0xf]
    %v2590 = vld [vmem:[#allocation2 + $0x40] sm:$0xf]
    %v2591 = vld [vmem:[#allocation2 + $0x44] sm:$0xf]
    %v2592 = vld [vmem:[#allocation2 + $0x48] sm:$0xf]
    %v2593 = vld [vmem:[#allocation2 + $0x4c] sm:$0xf]
    %v2594 = vld [vmem:[#allocation2 + $0x50] sm:$0xf]
    %v2595 = vld [vmem:[#allocation2 + $0x54] sm:$0xf]
    %v2596 = vld [vmem:[#allocation2 + $0x58] sm:$0xf]
    %v2597 = vld [vmem:[#allocation2 + $0x5c] sm:$0xf]
    %v2598 = vld [vmem:[#allocation2 + $0x60] sm:$0xf]
    %v2599 = vld [vmem:[#allocation2 + $0x64] sm:$0xf]
    %v2600 = vld [vmem:[#allocation2 + $0x68] sm:$0xf]
    %v2601 = vld [vmem:[#allocation2 + $0x6c] sm:$0xf]
    %v2602 = vld [vmem:[#allocation2 + $0x70] sm:$0xf]
    %v2603 = vld [vmem:[#allocation2 + $0x74] sm:$0xf]
    %v2604 = vld [vmem:[#allocation2 + $0x78] sm:$0xf]
    %v2605 = vld [vmem:[#allocation2 + $0x7c] sm:$0xf]
    %v2606 = vld [vmem:[#allocation2 + $0x80] sm:$0xf]
    %v2607 = vld [vmem:[#allocation2 + $0x84] sm:$0xf]
    %v2608 = vld [vmem:[#allocation2 + $0x88] sm:$0xf]
    %v2609 = vld [vmem:[#allocation2 + $0x8c] sm:$0xf]
    %v2610 = vld [vmem:[#allocation2 + $0x90] sm:$0xf]
    %v2611 = vld [vmem:[#allocation2 + $0x94] sm:$0xf]
    %v2612 = vld [vmem:[#allocation2 + $0x98] sm:$0xf]
    %v2613 = vld [vmem:[#allocation2 + $0x9c] sm:$0xf]
    %v2614 = vld [vmem:[#allocation2 + $0xa0] sm:$0xf]
    %v2615 = vld [vmem:[#allocation2 + $0xa4] sm:$0xf]
    %v2616 = vld [vmem:[#allocation2 + $0xa8] sm:$0xf]
    %v2617 = vld [vmem:[#allocation2 + $0xac] sm:$0xf]
    %v2618 = vld [vmem:[#allocation2 + $0xb0] sm:$0xf]
    %v2619 = vld [vmem:[#allocation2 + $0xb4] sm:$0xf]
    %v2620 = vpack.c.bf16 %v2586, %v2586
    %v2621 = vpack.c.bf16 %v2587, %v2587
    %v2654 = vunpack.c.l.b16 %v2588
    %v2655 = vunpack.c.l.b16 %v2589
    %v2656 = vunpack.c.l.b16 %v2590
    %v2657 = vunpack.c.l.b16 %v2591
    %v2658 = vunpack.c.l.b16 %v2592
    %v2659 = vunpack.c.l.b16 %v2593
    %v2660 = vunpack.c.l.b16 %v2594
    %v2661 = vunpack.c.l.b16 %v2595
    %v2662 = vunpack.c.l.b16 %v2596
    %v2663 = vunpack.c.l.b16 %v2597
    %v2664 = vunpack.c.l.b16 %v2598
    %v2665 = vunpack.c.l.b16 %v2599
    %v2666 = vunpack.c.l.b16 %v2600
    %v2667 = vunpack.c.l.b16 %v2601
    %v2668 = vunpack.c.l.b16 %v2602
    %v2669 = vunpack.c.l.b16 %v2603
    %v2670 = vunpack.c.l.b16 %v2604
    %v2671 = vunpack.c.l.b16 %v2605
    %v2672 = vunpack.c.l.b16 %v2606
    %v2673 = vunpack.c.l.b16 %v2607
    %v2674 = vunpack.c.l.b16 %v2608
    %v2675 = vunpack.c.l.b16 %v2609
    %v2676 = vunpack.c.l.b16 %v2610
    %v2677 = vunpack.c.l.b16 %v2611
    %v2678 = vunpack.c.l.b16 %v2612
    %v2679 = vunpack.c.l.b16 %v2613
    %v2680 = vunpack.c.l.b16 %v2614
    %v2681 = vunpack.c.l.b16 %v2615
    %v2682 = vunpack.c.l.b16 %v2616
    %v2683 = vunpack.c.l.b16 %v2617
    %v2684 = vunpack.c.l.b16 %v2618
    %v2685 = vunpack.c.l.b16 %v2619
    %v2686 = vpack.c.b16 %v2655, %v2654
    %v2687 = vpack.c.b16 %v2657, %v2656
    %v2688 = vpack.c.b16 %v2659, %v2658
    %v2689 = vpack.c.b16 %v2661, %v2660
    %v2690 = vpack.c.b16 %v2663, %v2662
    %v2691 = vpack.c.b16 %v2665, %v2664
    %v2692 = vpack.c.b16 %v2667, %v2666
    %v2693 = vpack.c.b16 %v2669, %v2668
    %v2694 = vpack.c.b16 %v2671, %v2670
    %v2695 = vpack.c.b16 %v2673, %v2672
    %v2696 = vpack.c.b16 %v2675, %v2674
    %v2697 = vpack.c.b16 %v2677, %v2676
    %v2698 = vpack.c.b16 %v2679, %v2678
    %v2699 = vpack.c.b16 %v2681, %v2680
    %v2700 = vpack.c.b16 %v2683, %v2682
    %v2701 = vpack.c.b16 %v2685, %v2684
    %2718 = vmatprep.subr.bf16.mxu0 0
    %2719 = vmatpush1.bf16.msra.mxu0 %v2686
    %2720 = vmatprep.subr.bf16.mxu0 0
    %2721 = vmatpush1.bf16.msra.mxu0 %v2687
    %2722 = vmatprep.subr.bf16.mxu0 0
    %2723 = vmatpush1.bf16.msra.mxu0 %v2688
    %2724 = vmatprep.subr.bf16.mxu0 0
    %2725 = vmatpush1.bf16.msra.mxu0 %v2689
    %2726 = vmatprep.subr.bf16.mxu0 0
    %2727 = vmatpush1.bf16.msra.mxu0 %v2690
    %2728 = vmatprep.subr.bf16.mxu0 0
    %2729 = vmatpush1.bf16.msra.mxu0 %v2691
    %2730 = vmatprep.subr.bf16.mxu0 0
    %2731 = vmatpush1.bf16.msra.mxu0 %v2692
    %2732 = vmatprep.subr.bf16.mxu0 0
    %2733 = vmatpush1.bf16.msra.mxu0 %v2693
    %2734 = vmatprep.subr.bf16.mxu0 0
    %2735 = vmatpush1.bf16.msra.mxu0 %v2694
    %2736 = vmatprep.subr.bf16.mxu0 0
    %2737 = vmatpush1.bf16.msra.mxu0 %v2695
    %2738 = vmatprep.subr.bf16.mxu0 0
    %2739 = vmatpush1.bf16.msra.mxu0 %v2696
    %2740 = vmatprep.subr.bf16.mxu0 0
    %2741 = vmatpush1.bf16.msra.mxu0 %v2697
    %2742 = vmatprep.subr.bf16.mxu0 0
    %2743 = vmatpush1.bf16.msra.mxu0 %v2698
    %2744 = vmatprep.subr.bf16.mxu0 0
    %2745 = vmatpush1.bf16.msra.mxu0 %v2699
    %2746 = vmatprep.subr.bf16.mxu0 0
    %2747 = vmatpush1.bf16.msra.mxu0 %v2700
    %2748 = vmatprep.subr.bf16.mxu0 0
    %2749 = vmatpush1.bf16.msra.mxu0 %v2701
    %2750 = vmatprep.mubr.bf16.mxu0 %v2621
    %2751 = vmatmul.mubr.bf16.gmra.mrb[0].mxu0 %v2620
    %v2752 = vpop.f32.mrb[0].mxu0
    %v2753 = vadd.f32 0.0, %v2752
    %v2754 = vpop.f32.mrb[0].mxu0
    %v2755 = vpop.f32.mrb[0].mxu0
    %v2756 = vpop.f32.mrb[0].mxu0
    %2757 = vdwg.mxu0
    %v2758 = vld [vmem:[#allocation7 + $0x6] ss:$0 sm:$0xff]
    %v2759 = vld [vmem:[#allocation7 + $0x40] ss:$0 sm:$0xff]
    %v2760 = vrot.slane %v2753, 4
    %v2761 = vadd.f32 %v2753, %v2760
    %v2762 = vrot.slane %v2761, 2
    %v2763 = vadd.f32 %v2761, %v2762
    %v2764 = vrot.slane %v2763, 1
    %v2765 = vadd.f32 %v2763, %v2764
    %v2766 = vmul.f32 %v2765, %v140
    %v2767 = vmul.f32 %v2753, %v2753
    %v2768 = vrot.slane %v2767, 4
    %v2769 = vadd.f32 %v2767, %v2768
    %v2770 = vrot.slane %v2769, 2
    %v2771 = vadd.f32 %v2769, %v2770
    %v2772 = vrot.slane %v2771, 1
    %v2773 = vadd.f32 %v2771, %v2772
    %v2774 = vmul.f32 %v2773, %v140
    %v2775 = vmul.f32 %v2766, %v2766
    %v2776 = vsub.f32 %v2774, %v2775
    %v2777 = vmax.f32 %v2776, 0.0
    %v2778 = vsub.f32 %v2753, %v2766
    %v2779 = vadd.f32 %v2777, 1e-05
    %v2780 = vrsqrt.pop %v2779
    %v2781 = vmul.f32 %v2758, %v2780
    %v2782 = vmul.f32 %v2778, %v2781
    %v2783 = vadd.f32 %v2782, %v2759
    %v2784 = vmul.f32 %v2783, 0.01
    %v2785 = vmax.f32 %v2783, %v2784
    %v2786 = vld [vmem:[#allocation2 + $0xb8] sm:$0xf]
    %v2787 = vld [vmem:[#allocation2 + $0xbc] sm:$0xf]
    %v2788 = vld [vmem:[#allocation2 + $0xc0] sm:$0xf]
    %v2789 = vld [vmem:[#allocation2 + $0xc4] sm:$0xf]
    %v2790 = vld [vmem:[#allocation2 + $0xc8] sm:$0xf]
    %v2791 = vld [vmem:[#allocation2 + $0xcc] sm:$0xf]
    %v2792 = vld [vmem:[#allocation2 + $0xd0] sm:$0xf]
    %v2793 = vld [vmem:[#allocation2 + $0xd4] sm:$0xf]
    %v2794 = vld [vmem:[#allocation2 + $0xd8] sm:$0xf]
    %v2795 = vld [vmem:[#allocation2 + $0xdc] sm:$0xf]
    %v2796 = vld [vmem:[#allocation2 + $0xe0] sm:$0xf]
    %v2797 = vld [vmem:[#allocation2 + $0xe4] sm:$0xf]
    %v2798 = vld [vmem:[#allocation2 + $0xe8] sm:$0xf]
    %v2799 = vld [vmem:[#allocation2 + $0xec] sm:$0xf]
    %v2800 = vld [vmem:[#allocation2 + $0xf0] sm:$0xf]
    %v2801 = vld [vmem:[#allocation2 + $0xf4] sm:$0xf]
    %v2802 = vpack.c.bf16 %v2785, %v2785
    %v2819 = vunpack.c.l.b16 %v2786
    %v2820 = vunpack.c.l.b16 %v2787
    %v2821 = vunpack.c.l.b16 %v2788
    %v2822 = vunpack.c.l.b16 %v2789
    %v2823 = vunpack.c.l.b16 %v2790
    %v2824 = vunpack.c.l.b16 %v2791
    %v2825 = vunpack.c.l.b16 %v2792
    %v2826 = vunpack.c.l.b16 %v2793
    %v2827 = vunpack.c.l.b16 %v2794
    %v2828 = vunpack.c.l.b16 %v2795
    %v2829 = vunpack.c.l.b16 %v2796
    %v2830 = vunpack.c.l.b16 %v2797
    %v2831 = vunpack.c.l.b16 %v2798
    %v2832 = vunpack.c.l.b16 %v2799
    %v2833 = vunpack.c.l.b16 %v2800
    %v2834 = vunpack.c.l.b16 %v2801
    %v2835 = vpack.c.b16 %v2820, %v2819
    %v2836 = vpack.c.b16 %v2822, %v2821
    %v2837 = vpack.c.b16 %v2824, %v2823
    %v2838 = vpack.c.b16 %v2826, %v2825
    %v2839 = vpack.c.b16 %v2828, %v2827
    %v2840 = vpack.c.b16 %v2830, %v2829
    %v2841 = vpack.c.b16 %v2832, %v2831
    %v2842 = vpack.c.b16 %v2834, %v2833
    %2851 = vmatprep.subr.bf16.mxu0 0
    %2852 = vmatpush1.bf16.msra.mxu0 %v2835
    %2853 = vmatprep.subr.bf16.mxu0 0
    %2854 = vmatpush1.bf16.msra.mxu0 %v2836
    %2855 = vmatprep.subr.bf16.mxu0 0
    %2856 = vmatpush1.bf16.msra.mxu0 %v2837
    %2857 = vmatprep.subr.bf16.mxu0 0
    %2858 = vmatpush1.bf16.msra.mxu0 %v2838
    %2859 = vmatprep.subr.bf16.mxu0 0
    %2860 = vmatpush1.bf16.msra.mxu0 %v2839
    %2861 = vmatprep.subr.bf16.mxu0 0
    %2862 = vmatpush1.bf16.msra.mxu0 %v2840
    %2863 = vmatprep.subr.bf16.mxu0 0
    %2864 = vmatpush1.bf16.msra.mxu0 %v2841
    %2865 = vmatprep.subr.bf16.mxu0 0
    %2866 = vmatpush1.bf16.msra.mxu0 %v2842
    %2867 = vmatprep.subr.bf16.mxu0 0
    %2868 = vmatpush1.bf16.msra.mxu0 0
    %2869 = vmatprep.subr.bf16.mxu0 0
    %2870 = vmatpush1.bf16.msra.mxu0 0
    %2871 = vmatprep.subr.bf16.mxu0 0
    %2872 = vmatpush1.bf16.msra.mxu0 0
    %2873 = vmatprep.subr.bf16.mxu0 0
    %2874 = vmatpush1.bf16.msra.mxu0 0
    %2875 = vmatprep.subr.bf16.mxu0 0
    %2876 = vmatpush1.bf16.msra.mxu0 0
    %2877 = vmatprep.subr.bf16.mxu0 0
    %2878 = vmatpush1.bf16.msra.mxu0 0
    %2879 = vmatprep.subr.bf16.mxu0 0
    %2880 = vmatpush1.bf16.msra.mxu0 0
    %2881 = vmatprep.subr.bf16.mxu0 0
    %2882 = vmatpush1.bf16.msra.mxu0 0
    %2883 = vmatprep.mubr.bf16.mxu0 0
    %2884 = vmatmul.mubr.bf16.gmra.mrb[0].mxu0 %v2802
    %v2885 = vpop.f32.mrb[0].mxu0
    %v2886 = vadd.f32 0.0, %v2885
    %v2887 = vpop.f32.mrb[0].mxu0
    %v2888 = vpop.f32.mrb[0].mxu0
    %v2889 = vpop.f32.mrb[0].mxu0
    %2890 = vdwg.mxu0
    %v2891 = vld [vmem:[#allocation7 + $0x7] ss:$0 sm:$0xff]
    %v2892 = vld [vmem:[#allocation7 + $0x41] ss:$0 sm:$0xff]
    %v2893 = vsel %vm224, %v2886, 0.0
    %v2894 = vrot.slane %v2893, 4
    %v2895 = vadd.f32 %v2893, %v2894
    %v2896 = vrot.slane %v2895, 2
    %v2897 = vadd.f32 %v2895, %v2896
    %v2898 = vrot.slane %v2897, 1
    %v2899 = vadd.f32 %v2897, %v2898
    %v2900 = vmul.f32 %v2899, %v140
    %v2901 = vmul.f32 %v2886, %v2886
    %v2902 = vsel %vm224, %v2901, 0.0
    %v2903 = vrot.slane %v2902, 4
    %v2904 = vadd.f32 %v2902, %v2903
    %v2905 = vrot.slane %v2904, 2
    %v2906 = vadd.f32 %v2904, %v2905
    %v2907 = vrot.slane %v2906, 1
    %v2908 = vadd.f32 %v2906, %v2907
    %v2909 = vmul.f32 %v2908, %v140
    %v2910 = vmul.f32 %v2900, %v2900
    %v2911 = vsub.f32 %v2909, %v2910
    %v2912 = vmax.f32 %v2911, 0.0
    %v2913 = vsub.f32 %v2886, %v2900
    %v2914 = vadd.f32 %v2912, 1e-05
    %v2915 = vrsqrt.pop %v2914
    %v2916 = vmul.f32 %v2891, %v2915
    %v2917 = vmul.f32 %v2913, %v2916
    %v2918 = vadd.f32 %v2917, %v2892
    %v2919 = vmul.f32 %v2918, 0.01
    %v2920 = vmax.f32 %v2918, %v2919
    %v2921 = vld [vmem:[#allocation2 + $0xf8] sm:$0xf]
    %v2922 = vld [vmem:[#allocation2 + $0xfc] sm:$0xf]
    %v2923 = vld [vmem:[#allocation2 + $0x100] sm:$0xf]
    %v2924 = vld [vmem:[#allocation2 + $0x104] sm:$0xf]
    %v2925 = vld [vmem:[#allocation2 + $0x108] sm:$0xf]
    %v2926 = vld [vmem:[#allocation2 + $0x10c] sm:$0xf]
    %v2927 = vld [vmem:[#allocation2 + $0x110] sm:$0xf]
    %v2928 = vld [vmem:[#allocation2 + $0x114] sm:$0xf]
    %v2929 = vpack.c.bf16 %v2920, %v2920
    %v2938 = vunpack.c.l.b16 %v2921
    %v2939 = vunpack.c.l.b16 %v2922
    %v2940 = vunpack.c.l.b16 %v2923
    %v2941 = vunpack.c.l.b16 %v2924
    %v2942 = vunpack.c.l.b16 %v2925
    %v2943 = vunpack.c.l.b16 %v2926
    %v2944 = vunpack.c.l.b16 %v2927
    %v2945 = vunpack.c.l.b16 %v2928
    %v2946 = vpack.c.b16 %v2939, %v2938
    %v2947 = vpack.c.b16 %v2941, %v2940
    %v2948 = vpack.c.b16 %v2943, %v2942
    %v2949 = vpack.c.b16 %v2945, %v2944
    %v2955 = vsel %vm224, %v2929, 0
    %2957 = vmatprep.subr.bf16.mxu0 0
    %2958 = vmatpush1.bf16.msra.mxu0 %v2946
    %2959 = vmatprep.subr.bf16.mxu0 0
    %2960 = vmatpush1.bf16.msra.mxu0 %v2947
    %2961 = vmatprep.subr.bf16.mxu0 0
    %2962 = vmatpush1.bf16.msra.mxu0 %v2948
    %2963 = vmatprep.subr.bf16.mxu0 0
    %2964 = vmatpush1.bf16.msra.mxu0 %v2949
    %2965 = vmatprep.subr.bf16.mxu0 0
    %2966 = vmatpush1.bf16.msra.mxu0 0
    %2967 = vmatprep.subr.bf16.mxu0 0
    %2968 = vmatpush1.bf16.msra.mxu0 0
    %2969 = vmatprep.subr.bf16.mxu0 0
    %2970 = vmatpush1.bf16.msra.mxu0 0
    %2971 = vmatprep.subr.bf16.mxu0 0
    %2972 = vmatpush1.bf16.msra.mxu0 0
    %2973 = vmatprep.subr.bf16.mxu0 0
    %2974 = vmatpush1.bf16.msra.mxu0 0
    %2975 = vmatprep.subr.bf16.mxu0 0
    %2976 = vmatpush1.bf16.msra.mxu0 0
    %2977 = vmatprep.subr.bf16.mxu0 0
    %2978 = vmatpush1.bf16.msra.mxu0 0
    %2979 = vmatprep.subr.bf16.mxu0 0
    %2980 = vmatpush1.bf16.msra.mxu0 0
    %2981 = vmatprep.subr.bf16.mxu0 0
    %2982 = vmatpush1.bf16.msra.mxu0 0
    %2983 = vmatprep.subr.bf16.mxu0 0
    %2984 = vmatpush1.bf16.msra.mxu0 0
    %2985 = vmatprep.subr.bf16.mxu0 0
    %2986 = vmatpush1.bf16.msra.mxu0 0
    %2987 = vmatprep.subr.bf16.mxu0 0
    %2988 = vmatpush1.bf16.msra.mxu0 0
    %2989 = vmatprep.mubr.bf16.mxu0 0
    %2990 = vmatmul.mubr.bf16.gmra.mrb[0].mxu0 %v2955
    %v2991 = vpop.f32.mrb[0].mxu0
    %v2992 = vadd.f32 0.0, %v2991
    %v2993 = vpop.f32.mrb[0].mxu0
    %v2994 = vpop.f32.mrb[0].mxu0
    %v2995 = vpop.f32.mrb[0].mxu0
    %2996 = vdwg.mxu0
    %v2997 = vld [vmem:[#allocation7 + $0x20] ss:$0 sm:$0xff]
    %v2998 = vld [vmem:[#allocation7 + $0x42] ss:$0 sm:$0xff]
    %v2999 = vsel %vm132, %v2992, 0.0
    %v3000 = vrot.slane %v2999, 4
    %v3001 = vadd.f32 %v2999, %v3000
    %v3002 = vrot.slane %v3001, 2
    %v3003 = vadd.f32 %v3001, %v3002
    %v3004 = vrot.slane %v3003, 1
    %v3005 = vadd.f32 %v3003, %v3004
    %v3006 = vmul.f32 %v3005, %v140
    %v3007 = vmul.f32 %v2992, %v2992
    %v3008 = vsel %vm132, %v3007, 0.0
    %v3009 = vrot.slane %v3008, 4
    %v3010 = vadd.f32 %v3008, %v3009
    %v3011 = vrot.slane %v3010, 2
    %v3012 = vadd.f32 %v3010, %v3011
    %v3013 = vrot.slane %v3012, 1
    %v3014 = vadd.f32 %v3012, %v3013
    %v3015 = vmul.f32 %v3014, %v140
    %v3016 = vmul.f32 %v3006, %v3006
    %v3017 = vsub.f32 %v3015, %v3016
    %v3018 = vmax.f32 %v3017, 0.0
    %v3019 = vsub.f32 %v2992, %v3006
    %v3020 = vadd.f32 %v3018, 1e-05
    %v3021 = vrsqrt.pop %v3020
    %v3022 = vmul.f32 %v2997, %v3021
    %v3023 = vmul.f32 %v3019, %v3022
    %v3024 = vadd.f32 %v3023, %v2998
    %v3025 = vmul.f32 %v3024, 0.01
    %v3026 = vmax.f32 %v3024, %v3025
    %v3027 = vld [vmem:[#allocation2 + $0x118] sm:$0xf]
    %v3028 = vld [vmem:[#allocation2 + $0x11c] sm:$0xf]
    %v3029 = vld [vmem:[#allocation2 + $0x120] sm:$0xf]
    %v3030 = vld [vmem:[#allocation2 + $0x124] sm:$0xf]
    %v3031 = vpack.c.bf16 %v3026, %v3026
    %v3036 = vunpack.c.l.b16 %v3027
    %v3037 = vunpack.c.l.b16 %v3028
    %v3038 = vunpack.c.l.b16 %v3029
    %v3039 = vunpack.c.l.b16 %v3030
    %v3040 = vpack.c.b16 %v3037, %v3036
    %v3041 = vpack.c.b16 %v3039, %v3038
    %v3045 = vsel %vm132, %v3031, 0
    %3047 = vmatprep.subr.bf16.mxu0 0
    %3048 = vmatpush1.bf16.msra.mxu0 %v3040
    %3049 = vmatprep.subr.bf16.mxu0 0
    %3050 = vmatpush1.bf16.msra.mxu0 %v3041
    %3051 = vmatprep.subr.bf16.mxu0 0
    %3052 = vmatpush1.bf16.msra.mxu0 0
    %3053 = vmatprep.subr.bf16.mxu0 0
    %3054 = vmatpush1.bf16.msra.mxu0 0
    %3055 = vmatprep.subr.bf16.mxu0 0
    %3056 = vmatpush1.bf16.msra.mxu0 0
    %3057 = vmatprep.subr.bf16.mxu0 0
    %3058 = vmatpush1.bf16.msra.mxu0 0
    %3059 = vmatprep.subr.bf16.mxu0 0
    %3060 = vmatpush1.bf16.msra.mxu0 0
    %3061 = vmatprep.subr.bf16.mxu0 0
    %3062 = vmatpush1.bf16.msra.mxu0 0
    %3063 = vmatprep.subr.bf16.mxu0 0
    %3064 = vmatpush1.bf16.msra.mxu0 0
    %3065 = vmatprep.subr.bf16.mxu0 0
    %3066 = vmatpush1.bf16.msra.mxu0 0
    %3067 = vmatprep.subr.bf16.mxu0 0
    %3068 = vmatpush1.bf16.msra.mxu0 0
    %3069 = vmatprep.subr.bf16.mxu0 0
    %3070 = vmatpush1.bf16.msra.mxu0 0
    %3071 = vmatprep.subr.bf16.mxu0 0
    %3072 = vmatpush1.bf16.msra.mxu0 0
    %3073 = vmatprep.subr.bf16.mxu0 0
    %3074 = vmatpush1.bf16.msra.mxu0 0
    %3075 = vmatprep.subr.bf16.mxu0 0
    %3076 = vmatpush1.bf16.msra.mxu0 0
    %3077 = vmatprep.subr.bf16.mxu0 0
    %3078 = vmatpush1.bf16.msra.mxu0 0
    %3079 = vmatprep.mubr.bf16.mxu0 0
    %3080 = vmatmul.mubr.bf16.gmra.mrb[0].mxu0 %v3045
    %v3081 = vpop.f32.mrb[0].mxu0
    %v3082 = vadd.f32 0.0, %v3081
    %v3083 = vpop.f32.mrb[0].mxu0
    %v3084 = vpop.f32.mrb[0].mxu0
    %v3085 = vpop.f32.mrb[0].mxu0
    %3086 = vdwg.mxu0
    %v3087 = vld [vmem:[#allocation7 + $0x21] ss:$0 sm:$0xff]
    %v3088 = vld [vmem:[#allocation7 + $0x43] ss:$0 sm:$0xff]
    %v3089 = vsel %vm132, %v3082, 0.0
    %v3090 = vrot.slane %v3089, 4
    %v3091 = vadd.f32 %v3089, %v3090
    %v3092 = vrot.slane %v3091, 2
    %v3093 = vadd.f32 %v3091, %v3092
    %v3094 = vrot.slane %v3093, 1
    %v3095 = vadd.f32 %v3093, %v3094
    %v3096 = vmul.f32 %v3095, %v140
    %v3097 = vmul.f32 %v3082, %v3082
    %v3098 = vsel %vm132, %v3097, 0.0
    %v3099 = vrot.slane %v3098, 4
    %v3100 = vadd.f32 %v3098, %v3099
    %v3101 = vrot.slane %v3100, 2
    %v3102 = vadd.f32 %v3100, %v3101
    %v3103 = vrot.slane %v3102, 1
    %v3104 = vadd.f32 %v3102, %v3103
    %v3105 = vmul.f32 %v3104, %v140
    %v3106 = vmul.f32 %v3096, %v3096
    %v3107 = vsub.f32 %v3105, %v3106
    %v3108 = vmax.f32 %v3107, 0.0
    %v3109 = vsub.f32 %v3082, %v3096
    %v3110 = vadd.f32 %v3108, 1e-05
    %v3111 = vrsqrt.pop %v3110
    %v3112 = vmul.f32 %v3087, %v3111
    %v3113 = vmul.f32 %v3109, %v3112
    %v3114 = vadd.f32 %v3113, %v3088
    %v3115 = vmul.f32 %v3114, 0.01
    %v3116 = vmax.f32 %v3114, %v3115
    %v3117 = vld [vmem:[#allocation2 + $0x128] sm:$0xf]
    %v3118 = vld [vmem:[#allocation2 + $0x12c] sm:$0xf]
    %v3119 = vld [vmem:[#allocation2 + $0x130] sm:$0xf]
    %v3120 = vld [vmem:[#allocation2 + $0x134] sm:$0xf]
    %v3121 = vpack.c.bf16 %v3116, %v3116
    %v3122 = vld [vmem:[#allocation7 + $0x46] ss:$0 sm:$0xff]
    %v3127 = vunpack.c.l.b16 %v3117
    %v3128 = vunpack.c.l.b16 %v3118
    %v3129 = vunpack.c.l.b16 %v3119
    %v3130 = vunpack.c.l.b16 %v3120
    %v3131 = vpack.c.b16 %v3128, %v3127
    %v3132 = vpack.c.b16 %v3130, %v3129
    %v3136 = vsel %vm132, %v3121, 0
    %3138 = vmatprep.subr.bf16.mxu0 0
    %3139 = vmatpush1.bf16.msra.mxu0 %v3131
    %3140 = vmatprep.subr.bf16.mxu0 0
    %3141 = vmatpush1.bf16.msra.mxu0 %v3132
    %3142 = vmatprep.subr.bf16.mxu0 0
    %3143 = vmatpush1.bf16.msra.mxu0 0
    %3144 = vmatprep.subr.bf16.mxu0 0
    %3145 = vmatpush1.bf16.msra.mxu0 0
    %3146 = vmatprep.subr.bf16.mxu0 0
    %3147 = vmatpush1.bf16.msra.mxu0 0
    %3148 = vmatprep.subr.bf16.mxu0 0
    %3149 = vmatpush1.bf16.msra.mxu0 0
    %3150 = vmatprep.subr.bf16.mxu0 0
    %3151 = vmatpush1.bf16.msra.mxu0 0
    %3152 = vmatprep.subr.bf16.mxu0 0
    %3153 = vmatpush1.bf16.msra.mxu0 0
    %3154 = vmatprep.subr.bf16.mxu0 0
    %3155 = vmatpush1.bf16.msra.mxu0 0
    %3156 = vmatprep.subr.bf16.mxu0 0
    %3157 = vmatpush1.bf16.msra.mxu0 0
    %3158 = vmatprep.subr.bf16.mxu0 0
    %3159 = vmatpush1.bf16.msra.mxu0 0
    %3160 = vmatprep.subr.bf16.mxu0 0
    %3161 = vmatpush1.bf16.msra.mxu0 0
    %3162 = vmatprep.subr.bf16.mxu0 0
    %3163 = vmatpush1.bf16.msra.mxu0 0
    %3164 = vmatprep.subr.bf16.mxu0 0
    %3165 = vmatpush1.bf16.msra.mxu0 0
    %3166 = vmatprep.subr.bf16.mxu0 0
    %3167 = vmatpush1.bf16.msra.mxu0 0
    %3168 = vmatprep.subr.bf16.mxu0 0
    %3169 = vmatpush1.bf16.msra.mxu0 0
    %3170 = vmatprep.mubr.bf16.mxu0 0
    %3171 = vmatmul.mubr.bf16.gmra.mrb[0].mxu0 %v3136
    %v3172 = vpop.f32.mrb[0].mxu0
    %v3173 = vadd.f32 %v3122, %v3172
    %v3174 = vpop.f32.mrb[0].mxu0
    %v3175 = vpop.f32.mrb[0].mxu0
    %v3176 = vpop.f32.mrb[0].mxu0
    %3177 = vdwg.mxu0
    %v3178 = vtanh.pop %v3173
    %3179 = vst [vmem:[%s5] sm:$0xff] %v3178
    // Predicated region
    $region38: #{betavae_forward.1} parent=1 // pred_check
      _
    $region39: #{betavae_forward.1} parent=1 // pred_check_branch
      %3181 = sbr.rel (0) target = $region41
    $region40: #{betavae_forward.1} parent=1 // pred_region
      _
    $region41: #{betavae_forward.1} parent=1 // pred_fallthru
      _
    // Predicated region
    $region42: #{betavae_forward.1} parent=1 // pred_check
      _
    $region43: #{betavae_forward.1} parent=1 // pred_check_branch
      %3183 = sbr.rel (0) target = $region45
    $region44: #{betavae_forward.1} parent=1 // pred_region
      _
    $region45: #{betavae_forward.1} parent=1 // pred_fallthru
      _
    %3184 = vsyncpa [#allocation3], 1
    %3185 = vsyncpa [#allocation5], 1
    %3186 = vsyncpa [#allocation8], 1

</llo_original>
